<compile_context>
chip_gen: v7x
topology: tpu7x:2x2x1
jax: 0.10.0
libtpu: 0.0.40
codegen_flags: <defaults>
</compile_context>

<pallas_src>
import functools

import jax
import jax.numpy as jnp
from jax import lax
from jax.experimental import pallas as pl
from jax.experimental.pallas import tpu as pltpu

_LANE = 128  # lane width of one vreg group; each LSTM gate gets its own group


def _gate_pad(a, hidden_dim, group):
    """(..., 4H) -> (..., 4*group): gate k occupies lanes [k*group, k*group+H)."""
    lead = a.shape[:-1]
    a4 = a.reshape(lead + (4, hidden_dim))
    pad = [(0, 0)] * len(lead) + [(0, 0), (0, group - hidden_dim)]
    return jnp.pad(a4, pad).reshape(lead + (4 * group,))


def pack_params(params, *, embedding_dim, len_cutoff, encoding_dim, n_voc):
    """One-time parameter packing (hoisted out of the per-forward path)."""
    D, L, H, V = embedding_dim, len_cutoff, encoding_dim, n_voc
    G = ((H + _LANE - 1) // _LANE) * _LANE     # lane-group width per gate

    emb = params["embedding"]                               # (V, D), row 0 == 0
    w_ih = params["w_ih"].reshape(4 * H, L, D)              # (4H, L, D)
    # Fold embedding gather + flatten + input projection into a per-(position,
    # token) table:  w_pos[l*V + v, :] = emb[v] @ W_ih[:, l*D:(l+1)*D]^T.
    w_pos = jnp.einsum("vd,hld->lvh", emb, w_ih,
                       precision=lax.Precision.HIGHEST)     # (L, V, 4H)
    w_pos = _gate_pad(w_pos, H, G).reshape(L * V, 4 * G)    # gate-aligned

    w_hh_g = _gate_pad(params["w_hh"].T, H, G)              # (H, 4G)
    b_g = _gate_pad((params["b_ih"] + params["b_hh"]).reshape(1, 4 * H), H, G)

    w_out_t = jnp.concatenate([params["w_a"], params["w_t"]], axis=0).T   # (H, O)
    b_out = jnp.concatenate([params["b_a"], params["b_t"]]).reshape(1, -1)

    return {"w_pos": w_pos, "w_hh": w_hh_g, "b_g": b_g,
            "w_out_t": w_out_t, "b_out": b_out}


def _encoder_decoder_kernel(ids_ref, w_pos_ref, w_hh_ref, b_g_ref,
                            w_out_ref, b_out_ref, out_ref, xp_ref, *,
                            batch, seq_len, n_voc, hidden_dim, lane_group):
    """Fused embedding-gather + LSTM recurrence (time axis == B) + decoder heads.

    ids_ref   : (B, L) int32 token ids in SMEM
    w_pos_ref : (L*V, 4G)   folded embedding+input-projection table, gate-aligned
    w_hh_ref  : (H, 4G)     recurrent weights, transposed, gate-aligned
    b_g_ref   : (1, 4G)     b_ih + b_hh, gate-aligned
    w_out_ref : (H, O)      [fca.weight ; fct.weight]^T
    b_out_ref : (1, O)      [fca.bias , fct.bias]
    out_ref   : (B, O)      hstack((a_idx, t_idx))
    xp_ref    : (B, 4G)     VMEM scratch: per-step input projection
    """
    B, L, V, H, G = batch, seq_len, n_voc, hidden_dim, lane_group

    # ---- Phase 1: fused embedding gather + input projection (off the serial chain)
    # xproj[b] = (b_ih + b_hh) + sum_l emb[x[b,l]] @ W_ih[:, l*D:(l+1)*D]^T,
    # realised as B*L dynamic row loads from the precomputed table (padding token 0
    # contributes a zero row, matching padding_idx=0).
    b_g = b_g_ref[...]                                      # (1, 4G)
    for b in range(B):
        row = b_g
        for l in range(L):
            idx = l * V + ids_ref[b, l]                     # scalar from SMEM
            row = row + w_pos_ref[pl.ds(idx, 1), :]         # (1, 4G) row gather
        xp_ref[pl.ds(b, 1), :] = row

    # ---- Phase 2: LSTM recurrence over the batch axis (fully unrolled).
    # h / c live in vregs; w_hh is loaded once.  Holding it in the MXU weight
    # registers (matmul_push_rhs) would save the per-step restage but is not
    # portable across chip generations, so it is not used here.
    w_hh = w_hh_ref[...]                                    # (H, 4G)
    h = jnp.zeros((1, H), jnp.float32)
    c = jnp.zeros((1, H), jnp.float32)
    hs = []
    for t in range(B):
        gates = xp_ref[pl.ds(t, 1), :] + jnp.dot(
            h, w_hh, preferred_element_type=jnp.float32)    # (1, 4G)
        # Gate-aligned layout: each gate starts at lane 0 of its own 128-lane
        # group, so every slice below is vreg-aligned (no XLU rolls) and lines up
        # with c / h, which also live at lane offset 0.
        i_g = jax.nn.sigmoid(gates[:, 0 * G:0 * G + H])
        f_g = jax.nn.sigmoid(gates[:, 1 * G:1 * G + H])
        g_g = jnp.tanh(gates[:, 2 * G:2 * G + H])
        o_g = jax.nn.sigmoid(gates[:, 3 * G:3 * G + H])
        c = f_g * c + i_g * g_g
        h = o_g * jnp.tanh(c)
        hs.append(h)

    h_all = jnp.concatenate(hs, axis=0)                     # (B, H), vreg-resident

    # ---- Decoder: hstack(Linear_a(h_d), Linear_t(h_d)) == one fused matmul,
    # written straight to the (B, O) output (no wrapper-side slice).
    out_ref[...] = (jnp.dot(h_all, w_out_ref[...],
                            preferred_element_type=jnp.float32)
                    + b_out_ref[...]).astype(out_ref.dtype)


def encoder_decoder_forward(x, packed):
    """Per-forward path: exactly one pallas_call, everything else pre-packed."""
    B, L = x.shape
    w_pos, w_hh, b_g = packed["w_pos"], packed["w_hh"], packed["b_g"]
    w_out_t, b_out = packed["w_out_t"], packed["b_out"]
    H = w_hh.shape[0]
    G = w_hh.shape[1] // 4
    V = w_pos.shape[0] // L
    O = w_out_t.shape[1]

    kernel = functools.partial(_encoder_decoder_kernel, batch=B, seq_len=L,
                               n_voc=V, hidden_dim=H, lane_group=G)

    return pl.pallas_call(
        kernel,
        out_shape=jax.ShapeDtypeStruct((B, O), jnp.float32),
        in_specs=[pl.BlockSpec(memory_space=pltpu.MemorySpace.SMEM)]      # token ids
                 + [pl.BlockSpec(memory_space=pltpu.MemorySpace.VMEM)] * 5,
        out_specs=pl.BlockSpec(memory_space=pltpu.MemorySpace.VMEM),
        scratch_shapes=[pltpu.VMEM((B, 4 * G), jnp.float32)],             # xproj
    )(x, w_pos, w_hh, b_g, w_out_t, b_out)


def reference_forward(x, params, *, embedding_dim, encoding_dim):
    """Pure-JAX reference matching the PyTorch forward."""
    B, L = x.shape
    H = encoding_dim
    embeds = jnp.take(params["embedding"], x, axis=0).reshape(B, L * embedding_dim)
    xproj = embeds @ params["w_ih"].T + params["b_ih"] + params["b_hh"]

    def step(carry, xp):
        h, c = carry
        gates = xp + params["w_hh"] @ h
        i_g = jax.nn.sigmoid(gates[0:H])
        f_g = jax.nn.sigmoid(gates[H:2 * H])
        g_g = jnp.tanh(gates[2 * H:3 * H])
        o_g = jax.nn.sigmoid(gates[3 * H:4 * H])
        c = f_g * c + i_g * g_g
        h = o_g * jnp.tanh(c)
        return (h, c), h

    (_, _), h_d = lax.scan(step, (jnp.zeros(H), jnp.zeros(H)), xproj)
    a = h_d @ params["w_a"].T + params["b_a"]
    t = h_d @ params["w_t"].T + params["b_t"]
    return jnp.concatenate([a, t], axis=1)


def init_params(key, *, n_voc, embedding_dim, len_cutoff, encoding_dim,
                n_acts, n_targets):
    D, L, H = embedding_dim, len_cutoff, encoding_dim
    ks = jax.random.split(key, 9)
    scale = 0.1
    emb = scale * jax.random.normal(ks[0], (n_voc, D), jnp.float32)
    emb = emb.at[0].set(0.0)  # padding_idx=0
    return {
        "embedding": emb,
        "w_ih": scale * jax.random.normal(ks[1], (4 * H, L * D), jnp.float32),
        "w_hh": scale * jax.random.normal(ks[2], (4 * H, H), jnp.float32),
        "b_ih": scale * jax.random.normal(ks[3], (4 * H,), jnp.float32),
        "b_hh": scale * jax.random.normal(ks[4], (4 * H,), jnp.float32),
        "w_a": scale * jax.random.normal(ks[5], (n_acts, H), jnp.float32),
        "b_a": scale * jax.random.normal(ks[6], (n_acts,), jnp.float32),
        "w_t": scale * jax.random.normal(ks[7], (n_targets, H), jnp.float32),
        "b_t": scale * jax.random.normal(ks[8], (n_targets,), jnp.float32),
    }


if __name__ == "__main__":
    # Small shapes consistent with the module.
    B = 8            # batch (== LSTM time axis, since the LSTM sees a 2-D input)
    len_cutoff = 8   # input sequence length per example
    embedding_dim = 4
    n_voc = 16
    encoding_dim = 32
    n_acts = 8
    n_targets = 8

    key = jax.random.PRNGKey(0)
    k_par, k_x = jax.random.split(key)
    params = init_params(k_par, n_voc=n_voc, embedding_dim=embedding_dim,
                         len_cutoff=len_cutoff, encoding_dim=encoding_dim,
                         n_acts=n_acts, n_targets=n_targets)
    # Token ids in [0, n_voc); some will be 0 (padding -> zero embedding row).
    x = jax.random.randint(k_x, (B, len_cutoff), 0, n_voc, dtype=jnp.int32)

    # One-time parameter packing (hoisted out of the forward path).
    packed = jax.tree_util.tree_map(
        jax.block_until_ready,
        pack_params(params, embedding_dim=embedding_dim, len_cutoff=len_cutoff,
                    encoding_dim=encoding_dim, n_voc=n_voc))

    fwd = jax.jit(encoder_decoder_forward)
    out = jax.block_until_ready(fwd(x, packed))

    ref = reference_forward(x, params, embedding_dim=embedding_dim,
                            encoding_dim=encoding_dim)
    assert out.shape == (B, n_acts + n_targets), out.shape
    assert jnp.allclose(out, ref, rtol=1e-3, atol=1e-3), (
        float(jnp.max(jnp.abs(out - ref))))

    print("KERNEL_OK")
</pallas_src>

<mosaic_0001>
module attributes {stable_mosaic.version = 11 : i64} {
  func.func @_encoder_decoder_kernel(%arg0: memref<8x8xi32, #tpu.memory_space<smem>>, %arg1: memref<128x512xf32, #tpu.memory_space<vmem>>, %arg2: memref<32x512xf32, #tpu.memory_space<vmem>>, %arg3: memref<1x512xf32, #tpu.memory_space<vmem>>, %arg4: memref<32x16xf32, #tpu.memory_space<vmem>>, %arg5: memref<1x16xf32, #tpu.memory_space<vmem>>, %arg6: memref<8x16xf32, #tpu.memory_space<vmem>>, %arg7: memref<8x512xf32, #tpu.memory_space<vmem>>) attributes {dimension_semantics = [], scalar_prefetch = 0 : i64, scratch_operands = 1 : i64, tpu.core_type = #tpu.core_type<tc>} {
    %c0 = arith.constant 0 : index
    %c0_0 = arith.constant 0 : index
    %0 = vector.load %arg3[%c0, %c0_0] : memref<1x512xf32, #tpu.memory_space<vmem>>, vector<1x512xf32>
    %c0_1 = arith.constant 0 : index
    %c0_2 = arith.constant 0 : index
    %1 = memref.load %arg0[%c0_1, %c0_2] : memref<8x8xi32, #tpu.memory_space<smem>>
    %c0_i32 = arith.constant 0 : i32
    %2 = arith.addi %c0_i32, %1 : i32
    %3 = arith.index_cast %2 : i32 to index
    %c0_3 = arith.constant 0 : index
    %4 = vector.load %arg1[%3, %c0_3] : memref<128x512xf32, #tpu.memory_space<vmem>>, vector<1x512xf32>
    %5 = arith.addf %0, %4 : vector<1x512xf32>
    %c0_4 = arith.constant 0 : index
    %c1 = arith.constant 1 : index
    %6 = memref.load %arg0[%c0_4, %c1] : memref<8x8xi32, #tpu.memory_space<smem>>
    %c16_i32 = arith.constant 16 : i32
    %7 = arith.addi %c16_i32, %6 : i32
    %8 = arith.index_cast %7 : i32 to index
    %c0_5 = arith.constant 0 : index
    %9 = vector.load %arg1[%8, %c0_5] : memref<128x512xf32, #tpu.memory_space<vmem>>, vector<1x512xf32>
    %10 = arith.addf %5, %9 : vector<1x512xf32>
    %c0_6 = arith.constant 0 : index
    %c2 = arith.constant 2 : index
    %11 = memref.load %arg0[%c0_6, %c2] : memref<8x8xi32, #tpu.memory_space<smem>>
    %c32_i32 = arith.constant 32 : i32
    %12 = arith.addi %c32_i32, %11 : i32
    %13 = arith.index_cast %12 : i32 to index
    %c0_7 = arith.constant 0 : index
    %14 = vector.load %arg1[%13, %c0_7] : memref<128x512xf32, #tpu.memory_space<vmem>>, vector<1x512xf32>
    %15 = arith.addf %10, %14 : vector<1x512xf32>
    %c0_8 = arith.constant 0 : index
    %c3 = arith.constant 3 : index
    %16 = memref.load %arg0[%c0_8, %c3] : memref<8x8xi32, #tpu.memory_space<smem>>
    %c48_i32 = arith.constant 48 : i32
    %17 = arith.addi %c48_i32, %16 : i32
    %18 = arith.index_cast %17 : i32 to index
    %c0_9 = arith.constant 0 : index
    %19 = vector.load %arg1[%18, %c0_9] : memref<128x512xf32, #tpu.memory_space<vmem>>, vector<1x512xf32>
    %20 = arith.addf %15, %19 : vector<1x512xf32>
    %c0_10 = arith.constant 0 : index
    %c4 = arith.constant 4 : index
    %21 = memref.load %arg0[%c0_10, %c4] : memref<8x8xi32, #tpu.memory_space<smem>>
    %c64_i32 = arith.constant 64 : i32
    %22 = arith.addi %c64_i32, %21 : i32
    %23 = arith.index_cast %22 : i32 to index
    %c0_11 = arith.constant 0 : index
    %24 = vector.load %arg1[%23, %c0_11] : memref<128x512xf32, #tpu.memory_space<vmem>>, vector<1x512xf32>
    %25 = arith.addf %20, %24 : vector<1x512xf32>
    %c0_12 = arith.constant 0 : index
    %c5 = arith.constant 5 : index
    %26 = memref.load %arg0[%c0_12, %c5] : memref<8x8xi32, #tpu.memory_space<smem>>
    %c80_i32 = arith.constant 80 : i32
    %27 = arith.addi %c80_i32, %26 : i32
    %28 = arith.index_cast %27 : i32 to index
    %c0_13 = arith.constant 0 : index
    %29 = vector.load %arg1[%28, %c0_13] : memref<128x512xf32, #tpu.memory_space<vmem>>, vector<1x512xf32>
    %30 = arith.addf %25, %29 : vector<1x512xf32>
    %c0_14 = arith.constant 0 : index
    %c6 = arith.constant 6 : index
    %31 = memref.load %arg0[%c0_14, %c6] : memref<8x8xi32, #tpu.memory_space<smem>>
    %c96_i32 = arith.constant 96 : i32
    %32 = arith.addi %c96_i32, %31 : i32
    %33 = arith.index_cast %32 : i32 to index
    %c0_15 = arith.constant 0 : index
    %34 = vector.load %arg1[%33, %c0_15] : memref<128x512xf32, #tpu.memory_space<vmem>>, vector<1x512xf32>
    %35 = arith.addf %30, %34 : vector<1x512xf32>
    %c0_16 = arith.constant 0 : index
    %c7 = arith.constant 7 : index
    %36 = memref.load %arg0[%c0_16, %c7] : memref<8x8xi32, #tpu.memory_space<smem>>
    %c112_i32 = arith.constant 112 : i32
    %37 = arith.addi %c112_i32, %36 : i32
    %38 = arith.index_cast %37 : i32 to index
    %c0_17 = arith.constant 0 : index
    %39 = vector.load %arg1[%38, %c0_17] : memref<128x512xf32, #tpu.memory_space<vmem>>, vector<1x512xf32>
    %40 = arith.addf %35, %39 : vector<1x512xf32>
    %c0_18 = arith.constant 0 : index
    %c0_19 = arith.constant 0 : index
    %41 = vector.load %arg7[%c0_18, %c0_19] : memref<8x512xf32, #tpu.memory_space<vmem>>, vector<1x512xf32>
    tpu.vector_store %arg7[%c0_18, %c0_19], %40 {strides = array<i32>} : memref<8x512xf32, #tpu.memory_space<vmem>>, vector<1x512xf32>,
    %c1_20 = arith.constant 1 : index
    %c0_21 = arith.constant 0 : index
    %42 = memref.load %arg0[%c1_20, %c0_21] : memref<8x8xi32, #tpu.memory_space<smem>>
    %c0_i32_22 = arith.constant 0 : i32
    %43 = arith.addi %c0_i32_22, %42 : i32
    %44 = arith.index_cast %43 : i32 to index
    %c0_23 = arith.constant 0 : index
    %45 = vector.load %arg1[%44, %c0_23] : memref<128x512xf32, #tpu.memory_space<vmem>>, vector<1x512xf32>
    %46 = arith.addf %0, %45 : vector<1x512xf32>
    %c1_24 = arith.constant 1 : index
    %c1_25 = arith.constant 1 : index
    %47 = memref.load %arg0[%c1_24, %c1_25] : memref<8x8xi32, #tpu.memory_space<smem>>
    %c16_i32_26 = arith.constant 16 : i32
    %48 = arith.addi %c16_i32_26, %47 : i32
    %49 = arith.index_cast %48 : i32 to index
    %c0_27 = arith.constant 0 : index
    %50 = vector.load %arg1[%49, %c0_27] : memref<128x512xf32, #tpu.memory_space<vmem>>, vector<1x512xf32>
    %51 = arith.addf %46, %50 : vector<1x512xf32>
    %c1_28 = arith.constant 1 : index
    %c2_29 = arith.constant 2 : index
    %52 = memref.load %arg0[%c1_28, %c2_29] : memref<8x8xi32, #tpu.memory_space<smem>>
    %c32_i32_30 = arith.constant 32 : i32
    %53 = arith.addi %c32_i32_30, %52 : i32
    %54 = arith.index_cast %53 : i32 to index
    %c0_31 = arith.constant 0 : index
    %55 = vector.load %arg1[%54, %c0_31] : memref<128x512xf32, #tpu.memory_space<vmem>>, vector<1x512xf32>
    %56 = arith.addf %51, %55 : vector<1x512xf32>
    %c1_32 = arith.constant 1 : index
    %c3_33 = arith.constant 3 : index
    %57 = memref.load %arg0[%c1_32, %c3_33] : memref<8x8xi32, #tpu.memory_space<smem>>
    %c48_i32_34 = arith.constant 48 : i32
    %58 = arith.addi %c48_i32_34, %57 : i32
    %59 = arith.index_cast %58 : i32 to index
    %c0_35 = arith.constant 0 : index
    %60 = vector.load %arg1[%59, %c0_35] : memref<128x512xf32, #tpu.memory_space<vmem>>, vector<1x512xf32>
    %61 = arith.addf %56, %60 : vector<1x512xf32>
    %c1_36 = arith.constant 1 : index
    %c4_37 = arith.constant 4 : index
    %62 = memref.load %arg0[%c1_36, %c4_37] : memref<8x8xi32, #tpu.memory_space<smem>>
    %c64_i32_38 = arith.constant 64 : i32
    %63 = arith.addi %c64_i32_38, %62 : i32
    %64 = arith.index_cast %63 : i32 to index
    %c0_39 = arith.constant 0 : index
    %65 = vector.load %arg1[%64, %c0_39] : memref<128x512xf32, #tpu.memory_space<vmem>>, vector<1x512xf32>
    %66 = arith.addf %61, %65 : vector<1x512xf32>
    %c1_40 = arith.constant 1 : index
    %c5_41 = arith.constant 5 : index
    %67 = memref.load %arg0[%c1_40, %c5_41] : memref<8x8xi32, #tpu.memory_space<smem>>
    %c80_i32_42 = arith.constant 80 : i32
    %68 = arith.addi %c80_i32_42, %67 : i32
    %69 = arith.index_cast %68 : i32 to index
    %c0_43 = arith.constant 0 : index
    %70 = vector.load %arg1[%69, %c0_43] : memref<128x512xf32, #tpu.memory_space<vmem>>, vector<1x512xf32>
    %71 = arith.addf %66, %70 : vector<1x512xf32>
    %c1_44 = arith.constant 1 : index
    %c6_45 = arith.constant 6 : index
    %72 = memref.load %arg0[%c1_44, %c6_45] : memref<8x8xi32, #tpu.memory_space<smem>>
    %c96_i32_46 = arith.constant 96 : i32
    %73 = arith.addi %c96_i32_46, %72 : i32
    %74 = arith.index_cast %73 : i32 to index
    %c0_47 = arith.constant 0 : index
    %75 = vector.load %arg1[%74, %c0_47] : memref<128x512xf32, #tpu.memory_space<vmem>>, vector<1x512xf32>
    %76 = arith.addf %71, %75 : vector<1x512xf32>
    %c1_48 = arith.constant 1 : index
    %c7_49 = arith.constant 7 : index
    %77 = memref.load %arg0[%c1_48, %c7_49] : memref<8x8xi32, #tpu.memory_space<smem>>
    %c112_i32_50 = arith.constant 112 : i32
    %78 = arith.addi %c112_i32_50, %77 : i32
    %79 = arith.index_cast %78 : i32 to index
    %c0_51 = arith.constant 0 : index
    %80 = vector.load %arg1[%79, %c0_51] : memref<128x512xf32, #tpu.memory_space<vmem>>, vector<1x512xf32>
    %81 = arith.addf %76, %80 : vector<1x512xf32>
    %c1_52 = arith.constant 1 : index
    %c0_53 = arith.constant 0 : index
    %82 = vector.load %arg7[%c1_52, %c0_53] : memref<8x512xf32, #tpu.memory_space<vmem>>, vector<1x512xf32>
    tpu.vector_store %arg7[%c1_52, %c0_53], %81 {strides = array<i32>} : memref<8x512xf32, #tpu.memory_space<vmem>>, vector<1x512xf32>,
    %c2_54 = arith.constant 2 : index
    %c0_55 = arith.constant 0 : index
    %83 = memref.load %arg0[%c2_54, %c0_55] : memref<8x8xi32, #tpu.memory_space<smem>>
    %c0_i32_56 = arith.constant 0 : i32
    %84 = arith.addi %c0_i32_56, %83 : i32
    %85 = arith.index_cast %84 : i32 to index
    %c0_57 = arith.constant 0 : index
    %86 = vector.load %arg1[%85, %c0_57] : memref<128x512xf32, #tpu.memory_space<vmem>>, vector<1x512xf32>
    %87 = arith.addf %0, %86 : vector<1x512xf32>
    %c2_58 = arith.constant 2 : index
    %c1_59 = arith.constant 1 : index
    %88 = memref.load %arg0[%c2_58, %c1_59] : memref<8x8xi32, #tpu.memory_space<smem>>
    %c16_i32_60 = arith.constant 16 : i32
    %89 = arith.addi %c16_i32_60, %88 : i32
    %90 = arith.index_cast %89 : i32 to index
    %c0_61 = arith.constant 0 : index
    %91 = vector.load %arg1[%90, %c0_61] : memref<128x512xf32, #tpu.memory_space<vmem>>, vector<1x512xf32>
    %92 = arith.addf %87, %91 : vector<1x512xf32>
    %c2_62 = arith.constant 2 : index
    %c2_63 = arith.constant 2 : index
    %93 = memref.load %arg0[%c2_62, %c2_63] : memref<8x8xi32, #tpu.memory_space<smem>>
    %c32_i32_64 = arith.constant 32 : i32
    %94 = arith.addi %c32_i32_64, %93 : i32
    %95 = arith.index_cast %94 : i32 to index
    %c0_65 = arith.constant 0 : index
    %96 = vector.load %arg1[%95, %c0_65] : memref<128x512xf32, #tpu.memory_space<vmem>>, vector<1x512xf32>
    %97 = arith.addf %92, %96 : vector<1x512xf32>
    %c2_66 = arith.constant 2 : index
    %c3_67 = arith.constant 3 : index
    %98 = memref.load %arg0[%c2_66, %c3_67] : memref<8x8xi32, #tpu.memory_space<smem>>
    %c48_i32_68 = arith.constant 48 : i32
    %99 = arith.addi %c48_i32_68, %98 : i32
    %100 = arith.index_cast %99 : i32 to index
    %c0_69 = arith.constant 0 : index
    %101 = vector.load %arg1[%100, %c0_69] : memref<128x512xf32, #tpu.memory_space<vmem>>, vector<1x512xf32>
    %102 = arith.addf %97, %101 : vector<1x512xf32>
    %c2_70 = arith.constant 2 : index
    %c4_71 = arith.constant 4 : index
    %103 = memref.load %arg0[%c2_70, %c4_71] : memref<8x8xi32, #tpu.memory_space<smem>>
    %c64_i32_72 = arith.constant 64 : i32
    %104 = arith.addi %c64_i32_72, %103 : i32
    %105 = arith.index_cast %104 : i32 to index
    %c0_73 = arith.constant 0 : index
    %106 = vector.load %arg1[%105, %c0_73] : memref<128x512xf32, #tpu.memory_space<vmem>>, vector<1x512xf32>
    %107 = arith.addf %102, %106 : vector<1x512xf32>
    %c2_74 = arith.constant 2 : index
    %c5_75 = arith.constant 5 : index
    %108 = memref.load %arg0[%c2_74, %c5_75] : memref<8x8xi32, #tpu.memory_space<smem>>
    %c80_i32_76 = arith.constant 80 : i32
    %109 = arith.addi %c80_i32_76, %108 : i32
    %110 = arith.index_cast %109 : i32 to index
    %c0_77 = arith.constant 0 : index
    %111 = vector.load %arg1[%110, %c0_77] : memref<128x512xf32, #tpu.memory_space<vmem>>, vector<1x512xf32>
    %112 = arith.addf %107, %111 : vector<1x512xf32>
    %c2_78 = arith.constant 2 : index
    %c6_79 = arith.constant 6 : index
    %113 = memref.load %arg0[%c2_78, %c6_79] : memref<8x8xi32, #tpu.memory_space<smem>>
    %c96_i32_80 = arith.constant 96 : i32
    %114 = arith.addi %c96_i32_80, %113 : i32
    %115 = arith.index_cast %114 : i32 to index
    %c0_81 = arith.constant 0 : index
    %116 = vector.load %arg1[%115, %c0_81] : memref<128x512xf32, #tpu.memory_space<vmem>>, vector<1x512xf32>
    %117 = arith.addf %112, %116 : vector<1x512xf32>
    %c2_82 = arith.constant 2 : index
    %c7_83 = arith.constant 7 : index
    %118 = memref.load %arg0[%c2_82, %c7_83] : memref<8x8xi32, #tpu.memory_space<smem>>
    %c112_i32_84 = arith.constant 112 : i32
    %119 = arith.addi %c112_i32_84, %118 : i32
    %120 = arith.index_cast %119 : i32 to index
    %c0_85 = arith.constant 0 : index
    %121 = vector.load %arg1[%120, %c0_85] : memref<128x512xf32, #tpu.memory_space<vmem>>, vector<1x512xf32>
    %122 = arith.addf %117, %121 : vector<1x512xf32>
    %c2_86 = arith.constant 2 : index
    %c0_87 = arith.constant 0 : index
    %123 = vector.load %arg7[%c2_86, %c0_87] : memref<8x512xf32, #tpu.memory_space<vmem>>, vector<1x512xf32>
    tpu.vector_store %arg7[%c2_86, %c0_87], %122 {strides = array<i32>} : memref<8x512xf32, #tpu.memory_space<vmem>>, vector<1x512xf32>,
    %c3_88 = arith.constant 3 : index
    %c0_89 = arith.constant 0 : index
    %124 = memref.load %arg0[%c3_88, %c0_89] : memref<8x8xi32, #tpu.memory_space<smem>>
    %c0_i32_90 = arith.constant 0 : i32
    %125 = arith.addi %c0_i32_90, %124 : i32
    %126 = arith.index_cast %125 : i32 to index
    %c0_91 = arith.constant 0 : index
    %127 = vector.load %arg1[%126, %c0_91] : memref<128x512xf32, #tpu.memory_space<vmem>>, vector<1x512xf32>
    %128 = arith.addf %0, %127 : vector<1x512xf32>
    %c3_92 = arith.constant 3 : index
    %c1_93 = arith.constant 1 : index
    %129 = memref.load %arg0[%c3_92, %c1_93] : memref<8x8xi32, #tpu.memory_space<smem>>
    %c16_i32_94 = arith.constant 16 : i32
    %130 = arith.addi %c16_i32_94, %129 : i32
    %131 = arith.index_cast %130 : i32 to index
    %c0_95 = arith.constant 0 : index
    %132 = vector.load %arg1[%131, %c0_95] : memref<128x512xf32, #tpu.memory_space<vmem>>, vector<1x512xf32>
    %133 = arith.addf %128, %132 : vector<1x512xf32>
    %c3_96 = arith.constant 3 : index
    %c2_97 = arith.constant 2 : index
    %134 = memref.load %arg0[%c3_96, %c2_97] : memref<8x8xi32, #tpu.memory_space<smem>>
    %c32_i32_98 = arith.constant 32 : i32
    %135 = arith.addi %c32_i32_98, %134 : i32
    %136 = arith.index_cast %135 : i32 to index
    %c0_99 = arith.constant 0 : index
    %137 = vector.load %arg1[%136, %c0_99] : memref<128x512xf32, #tpu.memory_space<vmem>>, vector<1x512xf32>
    %138 = arith.addf %133, %137 : vector<1x512xf32>
    %c3_100 = arith.constant 3 : index
    %c3_101 = arith.constant 3 : index
    %139 = memref.load %arg0[%c3_100, %c3_101] : memref<8x8xi32, #tpu.memory_space<smem>>
    %c48_i32_102 = arith.constant 48 : i32
    %140 = arith.addi %c48_i32_102, %139 : i32
    %141 = arith.index_cast %140 : i32 to index
    %c0_103 = arith.constant 0 : index
    %142 = vector.load %arg1[%141, %c0_103] : memref<128x512xf32, #tpu.memory_space<vmem>>, vector<1x512xf32>
    %143 = arith.addf %138, %142 : vector<1x512xf32>
    %c3_104 = arith.constant 3 : index
    %c4_105 = arith.constant 4 : index
    %144 = memref.load %arg0[%c3_104, %c4_105] : memref<8x8xi32, #tpu.memory_space<smem>>
    %c64_i32_106 = arith.constant 64 : i32
    %145 = arith.addi %c64_i32_106, %144 : i32
    %146 = arith.index_cast %145 : i32 to index
    %c0_107 = arith.constant 0 : index
    %147 = vector.load %arg1[%146, %c0_107] : memref<128x512xf32, #tpu.memory_space<vmem>>, vector<1x512xf32>
    %148 = arith.addf %143, %147 : vector<1x512xf32>
    %c3_108 = arith.constant 3 : index
    %c5_109 = arith.constant 5 : index
    %149 = memref.load %arg0[%c3_108, %c5_109] : memref<8x8xi32, #tpu.memory_space<smem>>
    %c80_i32_110 = arith.constant 80 : i32
    %150 = arith.addi %c80_i32_110, %149 : i32
    %151 = arith.index_cast %150 : i32 to index
    %c0_111 = arith.constant 0 : index
    %152 = vector.load %arg1[%151, %c0_111] : memref<128x512xf32, #tpu.memory_space<vmem>>, vector<1x512xf32>
    %153 = arith.addf %148, %152 : vector<1x512xf32>
    %c3_112 = arith.constant 3 : index
    %c6_113 = arith.constant 6 : index
    %154 = memref.load %arg0[%c3_112, %c6_113] : memref<8x8xi32, #tpu.memory_space<smem>>
    %c96_i32_114 = arith.constant 96 : i32
    %155 = arith.addi %c96_i32_114, %154 : i32
    %156 = arith.index_cast %155 : i32 to index
    %c0_115 = arith.constant 0 : index
    %157 = vector.load %arg1[%156, %c0_115] : memref<128x512xf32, #tpu.memory_space<vmem>>, vector<1x512xf32>
    %158 = arith.addf %153, %157 : vector<1x512xf32>
    %c3_116 = arith.constant 3 : index
    %c7_117 = arith.constant 7 : index
    %159 = memref.load %arg0[%c3_116, %c7_117] : memref<8x8xi32, #tpu.memory_space<smem>>
    %c112_i32_118 = arith.constant 112 : i32
    %160 = arith.addi %c112_i32_118, %159 : i32
    %161 = arith.index_cast %160 : i32 to index
    %c0_119 = arith.constant 0 : index
    %162 = vector.load %arg1[%161, %c0_119] : memref<128x512xf32, #tpu.memory_space<vmem>>, vector<1x512xf32>
    %163 = arith.addf %158, %162 : vector<1x512xf32>
    %c3_120 = arith.constant 3 : index
    %c0_121 = arith.constant 0 : index
    %164 = vector.load %arg7[%c3_120, %c0_121] : memref<8x512xf32, #tpu.memory_space<vmem>>, vector<1x512xf32>
    tpu.vector_store %arg7[%c3_120, %c0_121], %163 {strides = array<i32>} : memref<8x512xf32, #tpu.memory_space<vmem>>, vector<1x512xf32>,
    %c4_122 = arith.constant 4 : index
    %c0_123 = arith.constant 0 : index
    %165 = memref.load %arg0[%c4_122, %c0_123] : memref<8x8xi32, #tpu.memory_space<smem>>
    %c0_i32_124 = arith.constant 0 : i32
    %166 = arith.addi %c0_i32_124, %165 : i32
    %167 = arith.index_cast %166 : i32 to index
    %c0_125 = arith.constant 0 : index
    %168 = vector.load %arg1[%167, %c0_125] : memref<128x512xf32, #tpu.memory_space<vmem>>, vector<1x512xf32>
    %169 = arith.addf %0, %168 : vector<1x512xf32>
    %c4_126 = arith.constant 4 : index
    %c1_127 = arith.constant 1 : index
    %170 = memref.load %arg0[%c4_126, %c1_127] : memref<8x8xi32, #tpu.memory_space<smem>>
    %c16_i32_128 = arith.constant 16 : i32
    %171 = arith.addi %c16_i32_128, %170 : i32
    %172 = arith.index_cast %171 : i32 to index
    %c0_129 = arith.constant 0 : index
    %173 = vector.load %arg1[%172, %c0_129] : memref<128x512xf32, #tpu.memory_space<vmem>>, vector<1x512xf32>
    %174 = arith.addf %169, %173 : vector<1x512xf32>
    %c4_130 = arith.constant 4 : index
    %c2_131 = arith.constant 2 : index
    %175 = memref.load %arg0[%c4_130, %c2_131] : memref<8x8xi32, #tpu.memory_space<smem>>
    %c32_i32_132 = arith.constant 32 : i32
    %176 = arith.addi %c32_i32_132, %175 : i32
    %177 = arith.index_cast %176 : i32 to index
    %c0_133 = arith.constant 0 : index
    %178 = vector.load %arg1[%177, %c0_133] : memref<128x512xf32, #tpu.memory_space<vmem>>, vector<1x512xf32>
    %179 = arith.addf %174, %178 : vector<1x512xf32>
    %c4_134 = arith.constant 4 : index
    %c3_135 = arith.constant 3 : index
    %180 = memref.load %arg0[%c4_134, %c3_135] : memref<8x8xi32, #tpu.memory_space<smem>>
    %c48_i32_136 = arith.constant 48 : i32
    %181 = arith.addi %c48_i32_136, %180 : i32
    %182 = arith.index_cast %181 : i32 to index
    %c0_137 = arith.constant 0 : index
    %183 = vector.load %arg1[%182, %c0_137] : memref<128x512xf32, #tpu.memory_space<vmem>>, vector<1x512xf32>
    %184 = arith.addf %179, %183 : vector<1x512xf32>
    %c4_138 = arith.constant 4 : index
    %c4_139 = arith.constant 4 : index
    %185 = memref.load %arg0[%c4_138, %c4_139] : memref<8x8xi32, #tpu.memory_space<smem>>
    %c64_i32_140 = arith.constant 64 : i32
    %186 = arith.addi %c64_i32_140, %185 : i32
    %187 = arith.index_cast %186 : i32 to index
    %c0_141 = arith.constant 0 : index
    %188 = vector.load %arg1[%187, %c0_141] : memref<128x512xf32, #tpu.memory_space<vmem>>, vector<1x512xf32>
    %189 = arith.addf %184, %188 : vector<1x512xf32>
    %c4_142 = arith.constant 4 : index
    %c5_143 = arith.constant 5 : index
    %190 = memref.load %arg0[%c4_142, %c5_143] : memref<8x8xi32, #tpu.memory_space<smem>>
    %c80_i32_144 = arith.constant 80 : i32
    %191 = arith.addi %c80_i32_144, %190 : i32
    %192 = arith.index_cast %191 : i32 to index
    %c0_145 = arith.constant 0 : index
    %193 = vector.load %arg1[%192, %c0_145] : memref<128x512xf32, #tpu.memory_space<vmem>>, vector<1x512xf32>
    %194 = arith.addf %189, %193 : vector<1x512xf32>
    %c4_146 = arith.constant 4 : index
    %c6_147 = arith.constant 6 : index
    %195 = memref.load %arg0[%c4_146, %c6_147] : memref<8x8xi32, #tpu.memory_space<smem>>
    %c96_i32_148 = arith.constant 96 : i32
    %196 = arith.addi %c96_i32_148, %195 : i32
    %197 = arith.index_cast %196 : i32 to index
    %c0_149 = arith.constant 0 : index
    %198 = vector.load %arg1[%197, %c0_149] : memref<128x512xf32, #tpu.memory_space<vmem>>, vector<1x512xf32>
    %199 = arith.addf %194, %198 : vector<1x512xf32>
    %c4_150 = arith.constant 4 : index
    %c7_151 = arith.constant 7 : index
    %200 = memref.load %arg0[%c4_150, %c7_151] : memref<8x8xi32, #tpu.memory_space<smem>>
    %c112_i32_152 = arith.constant 112 : i32
    %201 = arith.addi %c112_i32_152, %200 : i32
    %202 = arith.index_cast %201 : i32 to index
    %c0_153 = arith.constant 0 : index
    %203 = vector.load %arg1[%202, %c0_153] : memref<128x512xf32, #tpu.memory_space<vmem>>, vector<1x512xf32>
    %204 = arith.addf %199, %203 : vector<1x512xf32>
    %c4_154 = arith.constant 4 : index
    %c0_155 = arith.constant 0 : index
    %205 = vector.load %arg7[%c4_154, %c0_155] : memref<8x512xf32, #tpu.memory_space<vmem>>, vector<1x512xf32>
    tpu.vector_store %arg7[%c4_154, %c0_155], %204 {strides = array<i32>} : memref<8x512xf32, #tpu.memory_space<vmem>>, vector<1x512xf32>,
    %c5_156 = arith.constant 5 : index
    %c0_157 = arith.constant 0 : index
    %206 = memref.load %arg0[%c5_156, %c0_157] : memref<8x8xi32, #tpu.memory_space<smem>>
    %c0_i32_158 = arith.constant 0 : i32
    %207 = arith.addi %c0_i32_158, %206 : i32
    %208 = arith.index_cast %207 : i32 to index
    %c0_159 = arith.constant 0 : index
    %209 = vector.load %arg1[%208, %c0_159] : memref<128x512xf32, #tpu.memory_space<vmem>>, vector<1x512xf32>
    %210 = arith.addf %0, %209 : vector<1x512xf32>
    %c5_160 = arith.constant 5 : index
    %c1_161 = arith.constant 1 : index
    %211 = memref.load %arg0[%c5_160, %c1_161] : memref<8x8xi32, #tpu.memory_space<smem>>
    %c16_i32_162 = arith.constant 16 : i32
    %212 = arith.addi %c16_i32_162, %211 : i32
    %213 = arith.index_cast %212 : i32 to index
    %c0_163 = arith.constant 0 : index
    %214 = vector.load %arg1[%213, %c0_163] : memref<128x512xf32, #tpu.memory_space<vmem>>, vector<1x512xf32>
    %215 = arith.addf %210, %214 : vector<1x512xf32>
    %c5_164 = arith.constant 5 : index
    %c2_165 = arith.constant 2 : index
    %216 = memref.load %arg0[%c5_164, %c2_165] : memref<8x8xi32, #tpu.memory_space<smem>>
    %c32_i32_166 = arith.constant 32 : i32
    %217 = arith.addi %c32_i32_166, %216 : i32
    %218 = arith.index_cast %217 : i32 to index
    %c0_167 = arith.constant 0 : index
    %219 = vector.load %arg1[%218, %c0_167] : memref<128x512xf32, #tpu.memory_space<vmem>>, vector<1x512xf32>
    %220 = arith.addf %215, %219 : vector<1x512xf32>
    %c5_168 = arith.constant 5 : index
    %c3_169 = arith.constant 3 : index
    %221 = memref.load %arg0[%c5_168, %c3_169] : memref<8x8xi32, #tpu.memory_space<smem>>
    %c48_i32_170 = arith.constant 48 : i32
    %222 = arith.addi %c48_i32_170, %221 : i32
    %223 = arith.index_cast %222 : i32 to index
    %c0_171 = arith.constant 0 : index
    %224 = vector.load %arg1[%223, %c0_171] : memref<128x512xf32, #tpu.memory_space<vmem>>, vector<1x512xf32>
    %225 = arith.addf %220, %224 : vector<1x512xf32>
    %c5_172 = arith.constant 5 : index
    %c4_173 = arith.constant 4 : index
    %226 = memref.load %arg0[%c5_172, %c4_173] : memref<8x8xi32, #tpu.memory_space<smem>>
    %c64_i32_174 = arith.constant 64 : i32
    %227 = arith.addi %c64_i32_174, %226 : i32
    %228 = arith.index_cast %227 : i32 to index
    %c0_175 = arith.constant 0 : index
    %229 = vector.load %arg1[%228, %c0_175] : memref<128x512xf32, #tpu.memory_space<vmem>>, vector<1x512xf32>
    %230 = arith.addf %225, %229 : vector<1x512xf32>
    %c5_176 = arith.constant 5 : index
    %c5_177 = arith.constant 5 : index
    %231 = memref.load %arg0[%c5_176, %c5_177] : memref<8x8xi32, #tpu.memory_space<smem>>
    %c80_i32_178 = arith.constant 80 : i32
    %232 = arith.addi %c80_i32_178, %231 : i32
    %233 = arith.index_cast %232 : i32 to index
    %c0_179 = arith.constant 0 : index
    %234 = vector.load %arg1[%233, %c0_179] : memref<128x512xf32, #tpu.memory_space<vmem>>, vector<1x512xf32>
    %235 = arith.addf %230, %234 : vector<1x512xf32>
    %c5_180 = arith.constant 5 : index
    %c6_181 = arith.constant 6 : index
    %236 = memref.load %arg0[%c5_180, %c6_181] : memref<8x8xi32, #tpu.memory_space<smem>>
    %c96_i32_182 = arith.constant 96 : i32
    %237 = arith.addi %c96_i32_182, %236 : i32
    %238 = arith.index_cast %237 : i32 to index
    %c0_183 = arith.constant 0 : index
    %239 = vector.load %arg1[%238, %c0_183] : memref<128x512xf32, #tpu.memory_space<vmem>>, vector<1x512xf32>
    %240 = arith.addf %235, %239 : vector<1x512xf32>
    %c5_184 = arith.constant 5 : index
    %c7_185 = arith.constant 7 : index
    %241 = memref.load %arg0[%c5_184, %c7_185] : memref<8x8xi32, #tpu.memory_space<smem>>
    %c112_i32_186 = arith.constant 112 : i32
    %242 = arith.addi %c112_i32_186, %241 : i32
    %243 = arith.index_cast %242 : i32 to index
    %c0_187 = arith.constant 0 : index
    %244 = vector.load %arg1[%243, %c0_187] : memref<128x512xf32, #tpu.memory_space<vmem>>, vector<1x512xf32>
    %245 = arith.addf %240, %244 : vector<1x512xf32>
    %c5_188 = arith.constant 5 : index
    %c0_189 = arith.constant 0 : index
    %246 = vector.load %arg7[%c5_188, %c0_189] : memref<8x512xf32, #tpu.memory_space<vmem>>, vector<1x512xf32>
    tpu.vector_store %arg7[%c5_188, %c0_189], %245 {strides = array<i32>} : memref<8x512xf32, #tpu.memory_space<vmem>>, vector<1x512xf32>,
    %c6_190 = arith.constant 6 : index
    %c0_191 = arith.constant 0 : index
    %247 = memref.load %arg0[%c6_190, %c0_191] : memref<8x8xi32, #tpu.memory_space<smem>>
    %c0_i32_192 = arith.constant 0 : i32
    %248 = arith.addi %c0_i32_192, %247 : i32
    %249 = arith.index_cast %248 : i32 to index
    %c0_193 = arith.constant 0 : index
    %250 = vector.load %arg1[%249, %c0_193] : memref<128x512xf32, #tpu.memory_space<vmem>>, vector<1x512xf32>
    %251 = arith.addf %0, %250 : vector<1x512xf32>
    %c6_194 = arith.constant 6 : index
    %c1_195 = arith.constant 1 : index
    %252 = memref.load %arg0[%c6_194, %c1_195] : memref<8x8xi32, #tpu.memory_space<smem>>
    %c16_i32_196 = arith.constant 16 : i32
    %253 = arith.addi %c16_i32_196, %252 : i32
    %254 = arith.index_cast %253 : i32 to index
    %c0_197 = arith.constant 0 : index
    %255 = vector.load %arg1[%254, %c0_197] : memref<128x512xf32, #tpu.memory_space<vmem>>, vector<1x512xf32>
    %256 = arith.addf %251, %255 : vector<1x512xf32>
    %c6_198 = arith.constant 6 : index
    %c2_199 = arith.constant 2 : index
    %257 = memref.load %arg0[%c6_198, %c2_199] : memref<8x8xi32, #tpu.memory_space<smem>>
    %c32_i32_200 = arith.constant 32 : i32
    %258 = arith.addi %c32_i32_200, %257 : i32
    %259 = arith.index_cast %258 : i32 to index
    %c0_201 = arith.constant 0 : index
    %260 = vector.load %arg1[%259, %c0_201] : memref<128x512xf32, #tpu.memory_space<vmem>>, vector<1x512xf32>
    %261 = arith.addf %256, %260 : vector<1x512xf32>
    %c6_202 = arith.constant 6 : index
    %c3_203 = arith.constant 3 : index
    %262 = memref.load %arg0[%c6_202, %c3_203] : memref<8x8xi32, #tpu.memory_space<smem>>
    %c48_i32_204 = arith.constant 48 : i32
    %263 = arith.addi %c48_i32_204, %262 : i32
    %264 = arith.index_cast %263 : i32 to index
    %c0_205 = arith.constant 0 : index
    %265 = vector.load %arg1[%264, %c0_205] : memref<128x512xf32, #tpu.memory_space<vmem>>, vector<1x512xf32>
    %266 = arith.addf %261, %265 : vector<1x512xf32>
    %c6_206 = arith.constant 6 : index
    %c4_207 = arith.constant 4 : index
    %267 = memref.load %arg0[%c6_206, %c4_207] : memref<8x8xi32, #tpu.memory_space<smem>>
    %c64_i32_208 = arith.constant 64 : i32
    %268 = arith.addi %c64_i32_208, %267 : i32
    %269 = arith.index_cast %268 : i32 to index
    %c0_209 = arith.constant 0 : index
    %270 = vector.load %arg1[%269, %c0_209] : memref<128x512xf32, #tpu.memory_space<vmem>>, vector<1x512xf32>
    %271 = arith.addf %266, %270 : vector<1x512xf32>
    %c6_210 = arith.constant 6 : index
    %c5_211 = arith.constant 5 : index
    %272 = memref.load %arg0[%c6_210, %c5_211] : memref<8x8xi32, #tpu.memory_space<smem>>
    %c80_i32_212 = arith.constant 80 : i32
    %273 = arith.addi %c80_i32_212, %272 : i32
    %274 = arith.index_cast %273 : i32 to index
    %c0_213 = arith.constant 0 : index
    %275 = vector.load %arg1[%274, %c0_213] : memref<128x512xf32, #tpu.memory_space<vmem>>, vector<1x512xf32>
    %276 = arith.addf %271, %275 : vector<1x512xf32>
    %c6_214 = arith.constant 6 : index
    %c6_215 = arith.constant 6 : index
    %277 = memref.load %arg0[%c6_214, %c6_215] : memref<8x8xi32, #tpu.memory_space<smem>>
    %c96_i32_216 = arith.constant 96 : i32
    %278 = arith.addi %c96_i32_216, %277 : i32
    %279 = arith.index_cast %278 : i32 to index
    %c0_217 = arith.constant 0 : index
    %280 = vector.load %arg1[%279, %c0_217] : memref<128x512xf32, #tpu.memory_space<vmem>>, vector<1x512xf32>
    %281 = arith.addf %276, %280 : vector<1x512xf32>
    %c6_218 = arith.constant 6 : index
    %c7_219 = arith.constant 7 : index
    %282 = memref.load %arg0[%c6_218, %c7_219] : memref<8x8xi32, #tpu.memory_space<smem>>
    %c112_i32_220 = arith.constant 112 : i32
    %283 = arith.addi %c112_i32_220, %282 : i32
    %284 = arith.index_cast %283 : i32 to index
    %c0_221 = arith.constant 0 : index
    %285 = vector.load %arg1[%284, %c0_221] : memref<128x512xf32, #tpu.memory_space<vmem>>, vector<1x512xf32>
    %286 = arith.addf %281, %285 : vector<1x512xf32>
    %c6_222 = arith.constant 6 : index
    %c0_223 = arith.constant 0 : index
    %287 = vector.load %arg7[%c6_222, %c0_223] : memref<8x512xf32, #tpu.memory_space<vmem>>, vector<1x512xf32>
    tpu.vector_store %arg7[%c6_222, %c0_223], %286 {strides = array<i32>} : memref<8x512xf32, #tpu.memory_space<vmem>>, vector<1x512xf32>,
    %c7_224 = arith.constant 7 : index
    %c0_225 = arith.constant 0 : index
    %288 = memref.load %arg0[%c7_224, %c0_225] : memref<8x8xi32, #tpu.memory_space<smem>>
    %c0_i32_226 = arith.constant 0 : i32
    %289 = arith.addi %c0_i32_226, %288 : i32
    %290 = arith.index_cast %289 : i32 to index
    %c0_227 = arith.constant 0 : index
    %291 = vector.load %arg1[%290, %c0_227] : memref<128x512xf32, #tpu.memory_space<vmem>>, vector<1x512xf32>
    %292 = arith.addf %0, %291 : vector<1x512xf32>
    %c7_228 = arith.constant 7 : index
    %c1_229 = arith.constant 1 : index
    %293 = memref.load %arg0[%c7_228, %c1_229] : memref<8x8xi32, #tpu.memory_space<smem>>
    %c16_i32_230 = arith.constant 16 : i32
    %294 = arith.addi %c16_i32_230, %293 : i32
    %295 = arith.index_cast %294 : i32 to index
    %c0_231 = arith.constant 0 : index
    %296 = vector.load %arg1[%295, %c0_231] : memref<128x512xf32, #tpu.memory_space<vmem>>, vector<1x512xf32>
    %297 = arith.addf %292, %296 : vector<1x512xf32>
    %c7_232 = arith.constant 7 : index
    %c2_233 = arith.constant 2 : index
    %298 = memref.load %arg0[%c7_232, %c2_233] : memref<8x8xi32, #tpu.memory_space<smem>>
    %c32_i32_234 = arith.constant 32 : i32
    %299 = arith.addi %c32_i32_234, %298 : i32
    %300 = arith.index_cast %299 : i32 to index
    %c0_235 = arith.constant 0 : index
    %301 = vector.load %arg1[%300, %c0_235] : memref<128x512xf32, #tpu.memory_space<vmem>>, vector<1x512xf32>
    %302 = arith.addf %297, %301 : vector<1x512xf32>
    %c7_236 = arith.constant 7 : index
    %c3_237 = arith.constant 3 : index
    %303 = memref.load %arg0[%c7_236, %c3_237] : memref<8x8xi32, #tpu.memory_space<smem>>
    %c48_i32_238 = arith.constant 48 : i32
    %304 = arith.addi %c48_i32_238, %303 : i32
    %305 = arith.index_cast %304 : i32 to index
    %c0_239 = arith.constant 0 : index
    %306 = vector.load %arg1[%305, %c0_239] : memref<128x512xf32, #tpu.memory_space<vmem>>, vector<1x512xf32>
    %307 = arith.addf %302, %306 : vector<1x512xf32>
    %c7_240 = arith.constant 7 : index
    %c4_241 = arith.constant 4 : index
    %308 = memref.load %arg0[%c7_240, %c4_241] : memref<8x8xi32, #tpu.memory_space<smem>>
    %c64_i32_242 = arith.constant 64 : i32
    %309 = arith.addi %c64_i32_242, %308 : i32
    %310 = arith.index_cast %309 : i32 to index
    %c0_243 = arith.constant 0 : index
    %311 = vector.load %arg1[%310, %c0_243] : memref<128x512xf32, #tpu.memory_space<vmem>>, vector<1x512xf32>
    %312 = arith.addf %307, %311 : vector<1x512xf32>
    %c7_244 = arith.constant 7 : index
    %c5_245 = arith.constant 5 : index
    %313 = memref.load %arg0[%c7_244, %c5_245] : memref<8x8xi32, #tpu.memory_space<smem>>
    %c80_i32_246 = arith.constant 80 : i32
    %314 = arith.addi %c80_i32_246, %313 : i32
    %315 = arith.index_cast %314 : i32 to index
    %c0_247 = arith.constant 0 : index
    %316 = vector.load %arg1[%315, %c0_247] : memref<128x512xf32, #tpu.memory_space<vmem>>, vector<1x512xf32>
    %317 = arith.addf %312, %316 : vector<1x512xf32>
    %c7_248 = arith.constant 7 : index
    %c6_249 = arith.constant 6 : index
    %318 = memref.load %arg0[%c7_248, %c6_249] : memref<8x8xi32, #tpu.memory_space<smem>>
    %c96_i32_250 = arith.constant 96 : i32
    %319 = arith.addi %c96_i32_250, %318 : i32
    %320 = arith.index_cast %319 : i32 to index
    %c0_251 = arith.constant 0 : index
    %321 = vector.load %arg1[%320, %c0_251] : memref<128x512xf32, #tpu.memory_space<vmem>>, vector<1x512xf32>
    %322 = arith.addf %317, %321 : vector<1x512xf32>
    %c7_252 = arith.constant 7 : index
    %c7_253 = arith.constant 7 : index
    %323 = memref.load %arg0[%c7_252, %c7_253] : memref<8x8xi32, #tpu.memory_space<smem>>
    %c112_i32_254 = arith.constant 112 : i32
    %324 = arith.addi %c112_i32_254, %323 : i32
    %325 = arith.index_cast %324 : i32 to index
    %c0_255 = arith.constant 0 : index
    %326 = vector.load %arg1[%325, %c0_255] : memref<128x512xf32, #tpu.memory_space<vmem>>, vector<1x512xf32>
    %327 = arith.addf %322, %326 : vector<1x512xf32>
    %c7_256 = arith.constant 7 : index
    %c0_257 = arith.constant 0 : index
    %328 = vector.load %arg7[%c7_256, %c0_257] : memref<8x512xf32, #tpu.memory_space<vmem>>, vector<1x512xf32>
    tpu.vector_store %arg7[%c7_256, %c0_257], %327 {strides = array<i32>} : memref<8x512xf32, #tpu.memory_space<vmem>>, vector<1x512xf32>,
    %c0_258 = arith.constant 0 : index
    %c0_259 = arith.constant 0 : index
    %329 = vector.load %arg2[%c0_258, %c0_259] : memref<32x512xf32, #tpu.memory_space<vmem>>, vector<32x512xf32>
    %cst = arith.constant 0.000000e+00 : f32
    %330 = vector.broadcast %cst : f32 to vector<1x32xf32>
    %cst_260 = arith.constant 0.000000e+00 : f32
    %331 = vector.broadcast %cst_260 : f32 to vector<1x32xf32>
    %c0_261 = arith.constant 0 : index
    %c0_262 = arith.constant 0 : index
    %332 = vector.load %arg7[%c0_261, %c0_262] : memref<8x512xf32, #tpu.memory_space<vmem>>, vector<1x512xf32>
    %cst_263 = arith.constant dense<0.000000e+00> : vector<1x512xf32>
    %333 = tpu.matmul %330, %329, %cst_263 {dimension_numbers = #tpu.dot_dimension_numbers<[1], [0], [0], [1], [0, 0, 1, 1], [], []>} : vector<1x32xf32>, vector<32x512xf32>, vector<1x512xf32> -> vector<1x512xf32>
    %334 = arith.addf %332, %333 : vector<1x512xf32>
    %335 = vector.extract_strided_slice %334 {offsets = [0, 0], sizes = [1, 32], strides = [1, 1]} : vector<1x512xf32> to vector<1x32xf32>
    %336 = arith.negf %335 : vector<1x32xf32>
    %337 = math.exp %336 : vector<1x32xf32>
    %cst_264 = arith.constant 1.000000e+00 : f32
    %338 = vector.broadcast %cst_264 : f32 to vector<1x32xf32>
    %339 = arith.addf %338, %337 : vector<1x32xf32>
    %340 = arith.divf %338, %339 : vector<1x32xf32>
    %341 = vector.extract_strided_slice %334 {offsets = [0, 128], sizes = [1, 32], strides = [1, 1]} : vector<1x512xf32> to vector<1x32xf32>
    %342 = arith.negf %341 : vector<1x32xf32>
    %343 = math.exp %342 : vector<1x32xf32>
    %cst_265 = arith.constant 1.000000e+00 : f32
    %344 = vector.broadcast %cst_265 : f32 to vector<1x32xf32>
    %345 = arith.addf %344, %343 : vector<1x32xf32>
    %346 = arith.divf %344, %345 : vector<1x32xf32>
    %347 = vector.extract_strided_slice %334 {offsets = [0, 256], sizes = [1, 32], strides = [1, 1]} : vector<1x512xf32> to vector<1x32xf32>
    %348 = math.tanh %347 : vector<1x32xf32>
    %349 = vector.extract_strided_slice %334 {offsets = [0, 384], sizes = [1, 32], strides = [1, 1]} : vector<1x512xf32> to vector<1x32xf32>
    %350 = arith.negf %349 : vector<1x32xf32>
    %351 = math.exp %350 : vector<1x32xf32>
    %cst_266 = arith.constant 1.000000e+00 : f32
    %352 = vector.broadcast %cst_266 : f32 to vector<1x32xf32>
    %353 = arith.addf %352, %351 : vector<1x32xf32>
    %354 = arith.divf %352, %353 : vector<1x32xf32>
    %355 = arith.mulf %346, %331 : vector<1x32xf32>
    %356 = arith.mulf %340, %348 : vector<1x32xf32>
    %357 = arith.addf %355, %356 : vector<1x32xf32>
    %358 = math.tanh %357 : vector<1x32xf32>
    %359 = arith.mulf %354, %358 : vector<1x32xf32>
    %c1_267 = arith.constant 1 : index
    %c0_268 = arith.constant 0 : index
    %360 = vector.load %arg7[%c1_267, %c0_268] : memref<8x512xf32, #tpu.memory_space<vmem>>, vector<1x512xf32>
    %cst_269 = arith.constant dense<0.000000e+00> : vector<1x512xf32>
    %361 = tpu.matmul %359, %329, %cst_269 {dimension_numbers = #tpu.dot_dimension_numbers<[1], [0], [0], [1], [0, 0, 1, 1], [], []>} : vector<1x32xf32>, vector<32x512xf32>, vector<1x512xf32> -> vector<1x512xf32>
    %362 = arith.addf %360, %361 : vector<1x512xf32>
    %363 = vector.extract_strided_slice %362 {offsets = [0, 0], sizes = [1, 32], strides = [1, 1]} : vector<1x512xf32> to vector<1x32xf32>
    %364 = arith.negf %363 : vector<1x32xf32>
    %365 = math.exp %364 : vector<1x32xf32>
    %cst_270 = arith.constant 1.000000e+00 : f32
    %366 = vector.broadcast %cst_270 : f32 to vector<1x32xf32>
    %367 = arith.addf %366, %365 : vector<1x32xf32>
    %368 = arith.divf %366, %367 : vector<1x32xf32>
    %369 = vector.extract_strided_slice %362 {offsets = [0, 128], sizes = [1, 32], strides = [1, 1]} : vector<1x512xf32> to vector<1x32xf32>
    %370 = arith.negf %369 : vector<1x32xf32>
    %371 = math.exp %370 : vector<1x32xf32>
    %cst_271 = arith.constant 1.000000e+00 : f32
    %372 = vector.broadcast %cst_271 : f32 to vector<1x32xf32>
    %373 = arith.addf %372, %371 : vector<1x32xf32>
    %374 = arith.divf %372, %373 : vector<1x32xf32>
    %375 = vector.extract_strided_slice %362 {offsets = [0, 256], sizes = [1, 32], strides = [1, 1]} : vector<1x512xf32> to vector<1x32xf32>
    %376 = math.tanh %375 : vector<1x32xf32>
    %377 = vector.extract_strided_slice %362 {offsets = [0, 384], sizes = [1, 32], strides = [1, 1]} : vector<1x512xf32> to vector<1x32xf32>
    %378 = arith.negf %377 : vector<1x32xf32>
    %379 = math.exp %378 : vector<1x32xf32>
    %cst_272 = arith.constant 1.000000e+00 : f32
    %380 = vector.broadcast %cst_272 : f32 to vector<1x32xf32>
    %381 = arith.addf %380, %379 : vector<1x32xf32>
    %382 = arith.divf %380, %381 : vector<1x32xf32>
    %383 = arith.mulf %374, %357 : vector<1x32xf32>
    %384 = arith.mulf %368, %376 : vector<1x32xf32>
    %385 = arith.addf %383, %384 : vector<1x32xf32>
    %386 = math.tanh %385 : vector<1x32xf32>
    %387 = arith.mulf %382, %386 : vector<1x32xf32>
    %c2_273 = arith.constant 2 : index
    %c0_274 = arith.constant 0 : index
    %388 = vector.load %arg7[%c2_273, %c0_274] : memref<8x512xf32, #tpu.memory_space<vmem>>, vector<1x512xf32>
    %cst_275 = arith.constant dense<0.000000e+00> : vector<1x512xf32>
    %389 = tpu.matmul %387, %329, %cst_275 {dimension_numbers = #tpu.dot_dimension_numbers<[1], [0], [0], [1], [0, 0, 1, 1], [], []>} : vector<1x32xf32>, vector<32x512xf32>, vector<1x512xf32> -> vector<1x512xf32>
    %390 = arith.addf %388, %389 : vector<1x512xf32>
    %391 = vector.extract_strided_slice %390 {offsets = [0, 0], sizes = [1, 32], strides = [1, 1]} : vector<1x512xf32> to vector<1x32xf32>
    %392 = arith.negf %391 : vector<1x32xf32>
    %393 = math.exp %392 : vector<1x32xf32>
    %cst_276 = arith.constant 1.000000e+00 : f32
    %394 = vector.broadcast %cst_276 : f32 to vector<1x32xf32>
    %395 = arith.addf %394, %393 : vector<1x32xf32>
    %396 = arith.divf %394, %395 : vector<1x32xf32>
    %397 = vector.extract_strided_slice %390 {offsets = [0, 128], sizes = [1, 32], strides = [1, 1]} : vector<1x512xf32> to vector<1x32xf32>
    %398 = arith.negf %397 : vector<1x32xf32>
    %399 = math.exp %398 : vector<1x32xf32>
    %cst_277 = arith.constant 1.000000e+00 : f32
    %400 = vector.broadcast %cst_277 : f32 to vector<1x32xf32>
    %401 = arith.addf %400, %399 : vector<1x32xf32>
    %402 = arith.divf %400, %401 : vector<1x32xf32>
    %403 = vector.extract_strided_slice %390 {offsets = [0, 256], sizes = [1, 32], strides = [1, 1]} : vector<1x512xf32> to vector<1x32xf32>
    %404 = math.tanh %403 : vector<1x32xf32>
    %405 = vector.extract_strided_slice %390 {offsets = [0, 384], sizes = [1, 32], strides = [1, 1]} : vector<1x512xf32> to vector<1x32xf32>
    %406 = arith.negf %405 : vector<1x32xf32>
    %407 = math.exp %406 : vector<1x32xf32>
    %cst_278 = arith.constant 1.000000e+00 : f32
    %408 = vector.broadcast %cst_278 : f32 to vector<1x32xf32>
    %409 = arith.addf %408, %407 : vector<1x32xf32>
    %410 = arith.divf %408, %409 : vector<1x32xf32>
    %411 = arith.mulf %402, %385 : vector<1x32xf32>
    %412 = arith.mulf %396, %404 : vector<1x32xf32>
    %413 = arith.addf %411, %412 : vector<1x32xf32>
    %414 = math.tanh %413 : vector<1x32xf32>
    %415 = arith.mulf %410, %414 : vector<1x32xf32>
    %c3_279 = arith.constant 3 : index
    %c0_280 = arith.constant 0 : index
    %416 = vector.load %arg7[%c3_279, %c0_280] : memref<8x512xf32, #tpu.memory_space<vmem>>, vector<1x512xf32>
    %cst_281 = arith.constant dense<0.000000e+00> : vector<1x512xf32>
    %417 = tpu.matmul %415, %329, %cst_281 {dimension_numbers = #tpu.dot_dimension_numbers<[1], [0], [0], [1], [0, 0, 1, 1], [], []>} : vector<1x32xf32>, vector<32x512xf32>, vector<1x512xf32> -> vector<1x512xf32>
    %418 = arith.addf %416, %417 : vector<1x512xf32>
    %419 = vector.extract_strided_slice %418 {offsets = [0, 0], sizes = [1, 32], strides = [1, 1]} : vector<1x512xf32> to vector<1x32xf32>
    %420 = arith.negf %419 : vector<1x32xf32>
    %421 = math.exp %420 : vector<1x32xf32>
    %cst_282 = arith.constant 1.000000e+00 : f32
    %422 = vector.broadcast %cst_282 : f32 to vector<1x32xf32>
    %423 = arith.addf %422, %421 : vector<1x32xf32>
    %424 = arith.divf %422, %423 : vector<1x32xf32>
    %425 = vector.extract_strided_slice %418 {offsets = [0, 128], sizes = [1, 32], strides = [1, 1]} : vector<1x512xf32> to vector<1x32xf32>
    %426 = arith.negf %425 : vector<1x32xf32>
    %427 = math.exp %426 : vector<1x32xf32>
    %cst_283 = arith.constant 1.000000e+00 : f32
    %428 = vector.broadcast %cst_283 : f32 to vector<1x32xf32>
    %429 = arith.addf %428, %427 : vector<1x32xf32>
    %430 = arith.divf %428, %429 : vector<1x32xf32>
    %431 = vector.extract_strided_slice %418 {offsets = [0, 256], sizes = [1, 32], strides = [1, 1]} : vector<1x512xf32> to vector<1x32xf32>
    %432 = math.tanh %431 : vector<1x32xf32>
    %433 = vector.extract_strided_slice %418 {offsets = [0, 384], sizes = [1, 32], strides = [1, 1]} : vector<1x512xf32> to vector<1x32xf32>
    %434 = arith.negf %433 : vector<1x32xf32>
    %435 = math.exp %434 : vector<1x32xf32>
    %cst_284 = arith.constant 1.000000e+00 : f32
    %436 = vector.broadcast %cst_284 : f32 to vector<1x32xf32>
    %437 = arith.addf %436, %435 : vector<1x32xf32>
    %438 = arith.divf %436, %437 : vector<1x32xf32>
    %439 = arith.mulf %430, %413 : vector<1x32xf32>
    %440 = arith.mulf %424, %432 : vector<1x32xf32>
    %441 = arith.addf %439, %440 : vector<1x32xf32>
    %442 = math.tanh %441 : vector<1x32xf32>
    %443 = arith.mulf %438, %442 : vector<1x32xf32>
    %c4_285 = arith.constant 4 : index
    %c0_286 = arith.constant 0 : index
    %444 = vector.load %arg7[%c4_285, %c0_286] : memref<8x512xf32, #tpu.memory_space<vmem>>, vector<1x512xf32>
    %cst_287 = arith.constant dense<0.000000e+00> : vector<1x512xf32>
    %445 = tpu.matmul %443, %329, %cst_287 {dimension_numbers = #tpu.dot_dimension_numbers<[1], [0], [0], [1], [0, 0, 1, 1], [], []>} : vector<1x32xf32>, vector<32x512xf32>, vector<1x512xf32> -> vector<1x512xf32>
    %446 = arith.addf %444, %445 : vector<1x512xf32>
    %447 = vector.extract_strided_slice %446 {offsets = [0, 0], sizes = [1, 32], strides = [1, 1]} : vector<1x512xf32> to vector<1x32xf32>
    %448 = arith.negf %447 : vector<1x32xf32>
    %449 = math.exp %448 : vector<1x32xf32>
    %cst_288 = arith.constant 1.000000e+00 : f32
    %450 = vector.broadcast %cst_288 : f32 to vector<1x32xf32>
    %451 = arith.addf %450, %449 : vector<1x32xf32>
    %452 = arith.divf %450, %451 : vector<1x32xf32>
    %453 = vector.extract_strided_slice %446 {offsets = [0, 128], sizes = [1, 32], strides = [1, 1]} : vector<1x512xf32> to vector<1x32xf32>
    %454 = arith.negf %453 : vector<1x32xf32>
    %455 = math.exp %454 : vector<1x32xf32>
    %cst_289 = arith.constant 1.000000e+00 : f32
    %456 = vector.broadcast %cst_289 : f32 to vector<1x32xf32>
    %457 = arith.addf %456, %455 : vector<1x32xf32>
    %458 = arith.divf %456, %457 : vector<1x32xf32>
    %459 = vector.extract_strided_slice %446 {offsets = [0, 256], sizes = [1, 32], strides = [1, 1]} : vector<1x512xf32> to vector<1x32xf32>
    %460 = math.tanh %459 : vector<1x32xf32>
    %461 = vector.extract_strided_slice %446 {offsets = [0, 384], sizes = [1, 32], strides = [1, 1]} : vector<1x512xf32> to vector<1x32xf32>
    %462 = arith.negf %461 : vector<1x32xf32>
    %463 = math.exp %462 : vector<1x32xf32>
    %cst_290 = arith.constant 1.000000e+00 : f32
    %464 = vector.broadcast %cst_290 : f32 to vector<1x32xf32>
    %465 = arith.addf %464, %463 : vector<1x32xf32>
    %466 = arith.divf %464, %465 : vector<1x32xf32>
    %467 = arith.mulf %458, %441 : vector<1x32xf32>
    %468 = arith.mulf %452, %460 : vector<1x32xf32>
    %469 = arith.addf %467, %468 : vector<1x32xf32>
    %470 = math.tanh %469 : vector<1x32xf32>
    %471 = arith.mulf %466, %470 : vector<1x32xf32>
    %c5_291 = arith.constant 5 : index
    %c0_292 = arith.constant 0 : index
    %472 = vector.load %arg7[%c5_291, %c0_292] : memref<8x512xf32, #tpu.memory_space<vmem>>, vector<1x512xf32>
    %cst_293 = arith.constant dense<0.000000e+00> : vector<1x512xf32>
    %473 = tpu.matmul %471, %329, %cst_293 {dimension_numbers = #tpu.dot_dimension_numbers<[1], [0], [0], [1], [0, 0, 1, 1], [], []>} : vector<1x32xf32>, vector<32x512xf32>, vector<1x512xf32> -> vector<1x512xf32>
    %474 = arith.addf %472, %473 : vector<1x512xf32>
    %475 = vector.extract_strided_slice %474 {offsets = [0, 0], sizes = [1, 32], strides = [1, 1]} : vector<1x512xf32> to vector<1x32xf32>
    %476 = arith.negf %475 : vector<1x32xf32>
    %477 = math.exp %476 : vector<1x32xf32>
    %cst_294 = arith.constant 1.000000e+00 : f32
    %478 = vector.broadcast %cst_294 : f32 to vector<1x32xf32>
    %479 = arith.addf %478, %477 : vector<1x32xf32>
    %480 = arith.divf %478, %479 : vector<1x32xf32>
    %481 = vector.extract_strided_slice %474 {offsets = [0, 128], sizes = [1, 32], strides = [1, 1]} : vector<1x512xf32> to vector<1x32xf32>
    %482 = arith.negf %481 : vector<1x32xf32>
    %483 = math.exp %482 : vector<1x32xf32>
    %cst_295 = arith.constant 1.000000e+00 : f32
    %484 = vector.broadcast %cst_295 : f32 to vector<1x32xf32>
    %485 = arith.addf %484, %483 : vector<1x32xf32>
    %486 = arith.divf %484, %485 : vector<1x32xf32>
    %487 = vector.extract_strided_slice %474 {offsets = [0, 256], sizes = [1, 32], strides = [1, 1]} : vector<1x512xf32> to vector<1x32xf32>
    %488 = math.tanh %487 : vector<1x32xf32>
    %489 = vector.extract_strided_slice %474 {offsets = [0, 384], sizes = [1, 32], strides = [1, 1]} : vector<1x512xf32> to vector<1x32xf32>
    %490 = arith.negf %489 : vector<1x32xf32>
    %491 = math.exp %490 : vector<1x32xf32>
    %cst_296 = arith.constant 1.000000e+00 : f32
    %492 = vector.broadcast %cst_296 : f32 to vector<1x32xf32>
    %493 = arith.addf %492, %491 : vector<1x32xf32>
    %494 = arith.divf %492, %493 : vector<1x32xf32>
    %495 = arith.mulf %486, %469 : vector<1x32xf32>
    %496 = arith.mulf %480, %488 : vector<1x32xf32>
    %497 = arith.addf %495, %496 : vector<1x32xf32>
    %498 = math.tanh %497 : vector<1x32xf32>
    %499 = arith.mulf %494, %498 : vector<1x32xf32>
    %c6_297 = arith.constant 6 : index
    %c0_298 = arith.constant 0 : index
    %500 = vector.load %arg7[%c6_297, %c0_298] : memref<8x512xf32, #tpu.memory_space<vmem>>, vector<1x512xf32>
    %cst_299 = arith.constant dense<0.000000e+00> : vector<1x512xf32>
    %501 = tpu.matmul %499, %329, %cst_299 {dimension_numbers = #tpu.dot_dimension_numbers<[1], [0], [0], [1], [0, 0, 1, 1], [], []>} : vector<1x32xf32>, vector<32x512xf32>, vector<1x512xf32> -> vector<1x512xf32>
    %502 = arith.addf %500, %501 : vector<1x512xf32>
    %503 = vector.extract_strided_slice %502 {offsets = [0, 0], sizes = [1, 32], strides = [1, 1]} : vector<1x512xf32> to vector<1x32xf32>
    %504 = arith.negf %503 : vector<1x32xf32>
    %505 = math.exp %504 : vector<1x32xf32>
    %cst_300 = arith.constant 1.000000e+00 : f32
    %506 = vector.broadcast %cst_300 : f32 to vector<1x32xf32>
    %507 = arith.addf %506, %505 : vector<1x32xf32>
    %508 = arith.divf %506, %507 : vector<1x32xf32>
    %509 = vector.extract_strided_slice %502 {offsets = [0, 128], sizes = [1, 32], strides = [1, 1]} : vector<1x512xf32> to vector<1x32xf32>
    %510 = arith.negf %509 : vector<1x32xf32>
    %511 = math.exp %510 : vector<1x32xf32>
    %cst_301 = arith.constant 1.000000e+00 : f32
    %512 = vector.broadcast %cst_301 : f32 to vector<1x32xf32>
    %513 = arith.addf %512, %511 : vector<1x32xf32>
    %514 = arith.divf %512, %513 : vector<1x32xf32>
    %515 = vector.extract_strided_slice %502 {offsets = [0, 256], sizes = [1, 32], strides = [1, 1]} : vector<1x512xf32> to vector<1x32xf32>
    %516 = math.tanh %515 : vector<1x32xf32>
    %517 = vector.extract_strided_slice %502 {offsets = [0, 384], sizes = [1, 32], strides = [1, 1]} : vector<1x512xf32> to vector<1x32xf32>
    %518 = arith.negf %517 : vector<1x32xf32>
    %519 = math.exp %518 : vector<1x32xf32>
    %cst_302 = arith.constant 1.000000e+00 : f32
    %520 = vector.broadcast %cst_302 : f32 to vector<1x32xf32>
    %521 = arith.addf %520, %519 : vector<1x32xf32>
    %522 = arith.divf %520, %521 : vector<1x32xf32>
    %523 = arith.mulf %514, %497 : vector<1x32xf32>
    %524 = arith.mulf %508, %516 : vector<1x32xf32>
    %525 = arith.addf %523, %524 : vector<1x32xf32>
    %526 = math.tanh %525 : vector<1x32xf32>
    %527 = arith.mulf %522, %526 : vector<1x32xf32>
    %c7_303 = arith.constant 7 : index
    %c0_304 = arith.constant 0 : index
    %528 = vector.load %arg7[%c7_303, %c0_304] : memref<8x512xf32, #tpu.memory_space<vmem>>, vector<1x512xf32>
    %cst_305 = arith.constant dense<0.000000e+00> : vector<1x512xf32>
    %529 = tpu.matmul %527, %329, %cst_305 {dimension_numbers = #tpu.dot_dimension_numbers<[1], [0], [0], [1], [0, 0, 1, 1], [], []>} : vector<1x32xf32>, vector<32x512xf32>, vector<1x512xf32> -> vector<1x512xf32>
    %530 = arith.addf %528, %529 : vector<1x512xf32>
    %531 = vector.extract_strided_slice %530 {offsets = [0, 0], sizes = [1, 32], strides = [1, 1]} : vector<1x512xf32> to vector<1x32xf32>
    %532 = arith.negf %531 : vector<1x32xf32>
    %533 = math.exp %532 : vector<1x32xf32>
    %cst_306 = arith.constant 1.000000e+00 : f32
    %534 = vector.broadcast %cst_306 : f32 to vector<1x32xf32>
    %535 = arith.addf %534, %533 : vector<1x32xf32>
    %536 = arith.divf %534, %535 : vector<1x32xf32>
    %537 = vector.extract_strided_slice %530 {offsets = [0, 128], sizes = [1, 32], strides = [1, 1]} : vector<1x512xf32> to vector<1x32xf32>
    %538 = arith.negf %537 : vector<1x32xf32>
    %539 = math.exp %538 : vector<1x32xf32>
    %cst_307 = arith.constant 1.000000e+00 : f32
    %540 = vector.broadcast %cst_307 : f32 to vector<1x32xf32>
    %541 = arith.addf %540, %539 : vector<1x32xf32>
    %542 = arith.divf %540, %541 : vector<1x32xf32>
    %543 = vector.extract_strided_slice %530 {offsets = [0, 256], sizes = [1, 32], strides = [1, 1]} : vector<1x512xf32> to vector<1x32xf32>
    %544 = math.tanh %543 : vector<1x32xf32>
    %545 = vector.extract_strided_slice %530 {offsets = [0, 384], sizes = [1, 32], strides = [1, 1]} : vector<1x512xf32> to vector<1x32xf32>
    %546 = arith.negf %545 : vector<1x32xf32>
    %547 = math.exp %546 : vector<1x32xf32>
    %cst_308 = arith.constant 1.000000e+00 : f32
    %548 = vector.broadcast %cst_308 : f32 to vector<1x32xf32>
    %549 = arith.addf %548, %547 : vector<1x32xf32>
    %550 = arith.divf %548, %549 : vector<1x32xf32>
    %551 = arith.mulf %542, %525 : vector<1x32xf32>
    %552 = arith.mulf %536, %544 : vector<1x32xf32>
    %553 = arith.addf %551, %552 : vector<1x32xf32>
    %554 = math.tanh %553 : vector<1x32xf32>
    %555 = arith.mulf %550, %554 : vector<1x32xf32>
    %556 = tpu.concatenate %359, %387, %415, %443, %471, %499, %527, %555 in 0 : vector<1x32xf32>, vector<1x32xf32>, vector<1x32xf32>, vector<1x32xf32>, vector<1x32xf32>, vector<1x32xf32>, vector<1x32xf32>, vector<1x32xf32> -> vector<8x32xf32>
    %c0_309 = arith.constant 0 : index
    %c0_310 = arith.constant 0 : index
    %557 = vector.load %arg4[%c0_309, %c0_310] : memref<32x16xf32, #tpu.memory_space<vmem>>, vector<32x16xf32>
    %cst_311 = arith.constant dense<0.000000e+00> : vector<8x16xf32>
    %558 = tpu.matmul %556, %557, %cst_311 {dimension_numbers = #tpu.dot_dimension_numbers<[1], [0], [0], [1], [0, 0, 1, 1], [], []>} : vector<8x32xf32>, vector<32x16xf32>, vector<8x16xf32> -> vector<8x16xf32>
    %c0_312 = arith.constant 0 : index
    %c0_313 = arith.constant 0 : index
    %559 = vector.load %arg5[%c0_312, %c0_313] : memref<1x16xf32, #tpu.memory_space<vmem>>, vector<1x16xf32>
    %560 = vector.broadcast %559 : vector<1x16xf32> to vector<8x16xf32>
    %561 = arith.addf %558, %560 : vector<8x16xf32>
    %c0_314 = arith.constant 0 : index
    %c0_315 = arith.constant 0 : index
    %562 = vector.load %arg6[%c0_314, %c0_315] : memref<8x16xf32, #tpu.memory_space<vmem>>, vector<8x16xf32>
    tpu.vector_store %arg6[%c0_314, %c0_315], %561 {strides = array<i32>} : memref<8x16xf32, #tpu.memory_space<vmem>>, vector<8x16xf32>,
    return
  }
}

</mosaic_0001>

<llo_original>
// kernel: encoder_decoder_forward.1
$region0: #{encoder_decoder_forward.1}
  #allocation0 [shape = 'u32[]', space=smem, size = 0x4, offset = 0x4, fixed_abs, tag = 'smem constant byte address 0x4 - core index']
  #allocation1 [shape = 'u32[144,128]{1,0:T(1,128)}', space=vmem, size = 0x12000, scoped, tag = 'internal scratch']
  #allocation2 [shape = 'f32[8,512]{1,0:T(8,128)}', space=vmem, size = 0x4000, scoped, tag = 'scratch operand']
  %s0 = inlined_call_operand.vmem [shape: s32[8,8], index: 0, kind: input, shape index: {}]
  %s1 = inlined_call_operand.hbm [shape: f32[128,512], index: 1, kind: input, shape index: {}]
  %s2 = inlined_call_operand.hbm [shape: f32[32,512], index: 2, kind: input, shape index: {}]
  %s3 = inlined_call_operand.vmem [shape: f32[1,512], index: 3, kind: input, shape index: {}]
  %s4 = inlined_call_operand.vmem [shape: f32[32,16], index: 4, kind: input, shape index: {}]
  %s5 = inlined_call_operand.vmem [shape: f32[1,16], index: 5, kind: input, shape index: {}]
  %s6 = inlined_call_operand.hbm [shape: f32[8,16], index: 6, kind: output, shape index: {}]
  %s7 = sld [smem:[#allocation0]]
  $region46: #{encoder_decoder_forward.1} parent=0
    _
  %s9 = ssub.s32 1, %s7
  %s10 = scalar_select 0, %s9, %s7
  $region1: #{encoder_decoder_forward.1} parent=0
    #allocation3 [shape = 'u8[4096]{0}', space=smem, size = 0x1000, scoped, tag = 'input window, operand 0, single buffered']
    #allocation4 [shape = 's32[1]{0}', space=sflag, size = 0x4, scoped, tag = 'scoped memory for encoder_decoder_forward.1']
    #allocation5 [shape = 's32[1]{0}', space=sflag, size = 0x4, scoped, tag = 'scoped memory for encoder_decoder_forward.1']
    #allocation6 [shape = 's32[1]{0}', space=sflag, size = 0x4, scoped, tag = 'scoped memory for encoder_decoder_forward.1']
    #allocation7 [shape = 'u8[262144]{0}', space=vmem, size = 0x40000, scoped, tag = 'input window, operand 1, single buffered']
    #allocation8 [shape = 'u8[65536]{0}', space=vmem, size = 0x10000, scoped, tag = 'input window, operand 2, single buffered']
    #allocation9 [shape = 's32[1]{0}', space=sflag, size = 0x4, scoped, tag = 'scoped memory for encoder_decoder_forward.1']
    #allocation10 [shape = 'u8[4096]{0}', space=vmem, size = 0x1000, scoped, tag = 'output window, operand 0, single buffered']
    %11 = vsyncpa [#allocation6], 0
    %12 = vsyncpa [#allocation4], 0
    %13 = vsyncpa [#allocation9], 0
    %14 = vsyncpa [#allocation5], 0
    // Predicated region
    $region2: #{encoder_decoder_forward.1} parent=1 // pred_check
      _
    $region3: #{encoder_decoder_forward.1} parent=1 // pred_check_branch
      %16 = sbr.rel (0) target = $region5
    $region4: #{encoder_decoder_forward.1} parent=1 // pred_region
      %s18 = ssub.s32 128, 128
      %19 = vsyncadd [#allocation6], %s18
      %s21 = sshll.u32 %s0, 4
      %s22 = int_to_ptr.vmem [resolvable:$true] %s21
      %24 = dma.vmem_to_smem %s22, 128, [#allocation3], [#allocation6]
    $region5: #{encoder_decoder_forward.1} parent=1 // pred_fallthru
      _
    // Predicated region
    $region6: #{encoder_decoder_forward.1} parent=1 // pred_check
      _
    $region7: #{encoder_decoder_forward.1} parent=1 // pred_check_branch
      %26 = sbr.rel (0) target = $region9
    $region8: #{encoder_decoder_forward.1} parent=1 // pred_region
      %s28 = ssub.s32 8192, 8192
      %29 = vsyncadd [#allocation4], %s28
      %s30 = sshll.u32 [#allocation7], 4
      %s31 = int_to_ptr.vmem [resolvable:$true] %s30
      %36 = dma.hbm_to_vmem [thread:$0]  %s1, 8192, %s31, [#allocation4], 512, 512, 32
    $region9: #{encoder_decoder_forward.1} parent=1 // pred_fallthru
      _
    // Predicated region
    $region10: #{encoder_decoder_forward.1} parent=1 // pred_check
      _
    $region11: #{encoder_decoder_forward.1} parent=1 // pred_check_branch
      %38 = sbr.rel (0) target = $region13
    $region12: #{encoder_decoder_forward.1} parent=1 // pred_region
      %s40 = ssub.s32 2048, 2048
      %41 = vsyncadd [#allocation9], %s40
      %s42 = sshll.u32 [#allocation8], 4
      %s43 = int_to_ptr.vmem [resolvable:$true] %s42
      %48 = dma.hbm_to_vmem [thread:$0]  %s2, 2048, %s43, [#allocation9], 512, 512, 32
    $region13: #{encoder_decoder_forward.1} parent=1 // pred_fallthru
      _
    // Predicated region
    $region14: #{encoder_decoder_forward.1} parent=1 // pred_check
      _
    $region15: #{encoder_decoder_forward.1} parent=1 // pred_check_branch
      %50 = sbr.rel (0) target = $region17
    $region16: #{encoder_decoder_forward.1} parent=1 // pred_region
      _
    $region17: #{encoder_decoder_forward.1} parent=1 // pred_fallthru
      _
    // Predicated region
    $region18: #{encoder_decoder_forward.1} parent=1 // pred_check
      _
    $region19: #{encoder_decoder_forward.1} parent=1 // pred_check_branch
      %52 = sbr.rel (0) target = $region21
    $region20: #{encoder_decoder_forward.1} parent=1 // pred_region
      _
    $region21: #{encoder_decoder_forward.1} parent=1 // pred_fallthru
      _
    // Predicated region
    $region22: #{encoder_decoder_forward.1} parent=1 // pred_check
      _
    $region23: #{encoder_decoder_forward.1} parent=1 // pred_check_branch
      %54 = sbr.rel (0) target = $region25
    $region24: #{encoder_decoder_forward.1} parent=1 // pred_region
      _
    $region25: #{encoder_decoder_forward.1} parent=1 // pred_fallthru
      _
    // Predicated region
    $region26: #{encoder_decoder_forward.1} parent=1 // pred_check
      _
    $region27: #{encoder_decoder_forward.1} parent=1 // pred_check_branch
      %56 = sbr.rel (0) target = $region29
    $region28: #{encoder_decoder_forward.1} parent=1 // pred_region
      %57 = dma.done [#allocation6], 128
    $region29: #{encoder_decoder_forward.1} parent=1 // pred_fallthru
      _
    // Predicated region
    $region30: #{encoder_decoder_forward.1} parent=1 // pred_check
      _
    $region31: #{encoder_decoder_forward.1} parent=1 // pred_check_branch
      %59 = sbr.rel (0) target = $region33
    $region32: #{encoder_decoder_forward.1} parent=1 // pred_region
      %60 = dma.done [#allocation4], 8192
    $region33: #{encoder_decoder_forward.1} parent=1 // pred_fallthru
      _
    // Predicated region
    $region34: #{encoder_decoder_forward.1} parent=1 // pred_check
      _
    $region35: #{encoder_decoder_forward.1} parent=1 // pred_check_branch
      %62 = sbr.rel (0) target = $region37
    $region36: #{encoder_decoder_forward.1} parent=1 // pred_region
      %63 = dma.done [#allocation9], 2048
    $region37: #{encoder_decoder_forward.1} parent=1 // pred_fallthru
      _
    %64 = sfence
    %v65 = vld [vmem:[%s3] sm:$0xf]
    %s66 = sld [smem:[#allocation3]]
    %s67 = sshra.s32 %s66, 3
    %s68 = sand.u32 %s66, 7
    %s69 = sshra.s32 %s66, 3
    %s70 = sand.u32 %s66, 7
    %s71 = smul.u32 %s67, 4
    %s72 = smul.u32 %s71, 8
    %s73 = sadd.s32 %s72, %s70
    %s74 = scalar_lea.vmem [#allocation7], %s73
    %v75 = vld [vmem:[%s74] ss:$8 sm:$0xf]
    %v76 = vadd.f32 %v65, %v75
    %s77 = sld [smem:[#allocation3 + $0x1]]
    %s78 = sadd.s32 %s77, 16
    %s79 = sshra.s32 %s78, 3
    %s80 = sand.u32 %s78, 7
    %s81 = sshra.s32 %s78, 3
    %s82 = sand.u32 %s78, 7
    %s83 = smul.u32 %s79, 4
    %s84 = smul.u32 %s83, 8
    %s85 = sadd.s32 %s84, %s82
    %s86 = scalar_lea.vmem [#allocation7], %s85
    %v87 = vld [vmem:[%s86] ss:$8 sm:$0xf]
    %v88 = vadd.f32 %v76, %v87
    %s89 = sld [smem:[#allocation3 + $0x2]]
    %s90 = sadd.s32 %s89, 32
    %s91 = sshra.s32 %s90, 3
    %s92 = sand.u32 %s90, 7
    %s93 = sshra.s32 %s90, 3
    %s94 = sand.u32 %s90, 7
    %s95 = smul.u32 %s91, 4
    %s96 = smul.u32 %s95, 8
    %s97 = sadd.s32 %s96, %s94
    %s98 = scalar_lea.vmem [#allocation7], %s97
    %v99 = vld [vmem:[%s98] ss:$8 sm:$0xf]
    %v100 = vadd.f32 %v88, %v99
    %s101 = sld [smem:[#allocation3 + $0x3]]
    %s102 = sadd.s32 %s101, 48
    %s103 = sshra.s32 %s102, 3
    %s104 = sand.u32 %s102, 7
    %s105 = sshra.s32 %s102, 3
    %s106 = sand.u32 %s102, 7
    %s107 = smul.u32 %s103, 4
    %s108 = smul.u32 %s107, 8
    %s109 = sadd.s32 %s108, %s106
    %s110 = scalar_lea.vmem [#allocation7], %s109
    %v111 = vld [vmem:[%s110] ss:$8 sm:$0xf]
    %v112 = vadd.f32 %v100, %v111
    %s113 = sld [smem:[#allocation3 + $0x4]]
    %s114 = sadd.s32 %s113, 64
    %s115 = sshra.s32 %s114, 3
    %s116 = sand.u32 %s114, 7
    %s117 = sshra.s32 %s114, 3
    %s118 = sand.u32 %s114, 7
    %s119 = smul.u32 %s115, 4
    %s120 = smul.u32 %s119, 8
    %s121 = sadd.s32 %s120, %s118
    %s122 = scalar_lea.vmem [#allocation7], %s121
    %v123 = vld [vmem:[%s122] ss:$8 sm:$0xf]
    %v124 = vadd.f32 %v112, %v123
    %s125 = sld [smem:[#allocation3 + $0x5]]
    %s126 = sadd.s32 %s125, 80
    %s127 = sshra.s32 %s126, 3
    %s128 = sand.u32 %s126, 7
    %s129 = sshra.s32 %s126, 3
    %s130 = sand.u32 %s126, 7
    %s131 = smul.u32 %s127, 4
    %s132 = smul.u32 %s131, 8
    %s133 = sadd.s32 %s132, %s130
    %s134 = scalar_lea.vmem [#allocation7], %s133
    %v135 = vld [vmem:[%s134] ss:$8 sm:$0xf]
    %v136 = vadd.f32 %v124, %v135
    %s137 = sld [smem:[#allocation3 + $0x6]]
    %s138 = sadd.s32 %s137, 96
    %s139 = sshra.s32 %s138, 3
    %s140 = sand.u32 %s138, 7
    %s141 = sshra.s32 %s138, 3
    %s142 = sand.u32 %s138, 7
    %s143 = smul.u32 %s139, 4
    %s144 = smul.u32 %s143, 8
    %s145 = sadd.s32 %s144, %s142
    %s146 = scalar_lea.vmem [#allocation7], %s145
    %v147 = vld [vmem:[%s146] ss:$8 sm:$0xf]
    %v148 = vadd.f32 %v136, %v147
    %s149 = sld [smem:[#allocation3 + $0x7]]
    %s150 = sadd.s32 %s149, 112
    %s151 = sshra.s32 %s150, 3
    %s152 = sand.u32 %s150, 7
    %s153 = sshra.s32 %s150, 3
    %s154 = sand.u32 %s150, 7
    %s155 = smul.u32 %s151, 4
    %s156 = smul.u32 %s155, 8
    %s157 = sadd.s32 %s156, %s154
    %s158 = scalar_lea.vmem [#allocation7], %s157
    %v159 = vld [vmem:[%s158] ss:$8 sm:$0xf]
    %v160 = vadd.f32 %v148, %v159
    %v161 = vlaneseq
    %vm162 = vcmp.ge.s32.totalorder %v161, 0
    %vm163 = vcmp.lt.s32.totalorder %v161, 512
    %vm164 = vmand %vm162, %vm163
    %165 = vst.msk [vmem:[#allocation2] ss:$8 sm:$0xf] %vm164, %v160
    %166 = vst.msk [vmem:[#allocation2] ss:$8 sm:$0x0] %vm164, %v160
    %s167 = sld [smem:[#allocation3 + $0x80]]
    %s168 = sshra.s32 %s167, 3
    %s169 = sand.u32 %s167, 7
    %s170 = sshra.s32 %s167, 3
    %s171 = sand.u32 %s167, 7
    %s172 = smul.u32 %s168, 4
    %s173 = smul.u32 %s172, 8
    %s174 = sadd.s32 %s173, %s171
    %s175 = scalar_lea.vmem [#allocation7], %s174
    %v176 = vld [vmem:[%s175] ss:$8 sm:$0xf]
    %v177 = vadd.f32 %v65, %v176
    %s178 = sld [smem:[#allocation3 + $0x81]]
    %s179 = sadd.s32 %s178, 16
    %s180 = sshra.s32 %s179, 3
    %s181 = sand.u32 %s179, 7
    %s182 = sshra.s32 %s179, 3
    %s183 = sand.u32 %s179, 7
    %s184 = smul.u32 %s180, 4
    %s185 = smul.u32 %s184, 8
    %s186 = sadd.s32 %s185, %s183
    %s187 = scalar_lea.vmem [#allocation7], %s186
    %v188 = vld [vmem:[%s187] ss:$8 sm:$0xf]
    %v189 = vadd.f32 %v177, %v188
    %s190 = sld [smem:[#allocation3 + $0x82]]
    %s191 = sadd.s32 %s190, 32
    %s192 = sshra.s32 %s191, 3
    %s193 = sand.u32 %s191, 7
    %s194 = sshra.s32 %s191, 3
    %s195 = sand.u32 %s191, 7
    %s196 = smul.u32 %s192, 4
    %s197 = smul.u32 %s196, 8
    %s198 = sadd.s32 %s197, %s195
    %s199 = scalar_lea.vmem [#allocation7], %s198
    %v200 = vld [vmem:[%s199] ss:$8 sm:$0xf]
    %v201 = vadd.f32 %v189, %v200
    %s202 = sld [smem:[#allocation3 + $0x83]]
    %s203 = sadd.s32 %s202, 48
    %s204 = sshra.s32 %s203, 3
    %s205 = sand.u32 %s203, 7
    %s206 = sshra.s32 %s203, 3
    %s207 = sand.u32 %s203, 7
    %s208 = smul.u32 %s204, 4
    %s209 = smul.u32 %s208, 8
    %s210 = sadd.s32 %s209, %s207
    %s211 = scalar_lea.vmem [#allocation7], %s210
    %v212 = vld [vmem:[%s211] ss:$8 sm:$0xf]
    %v213 = vadd.f32 %v201, %v212
    %s214 = sld [smem:[#allocation3 + $0x84]]
    %s215 = sadd.s32 %s214, 64
    %s216 = sshra.s32 %s215, 3
    %s217 = sand.u32 %s215, 7
    %s218 = sshra.s32 %s215, 3
    %s219 = sand.u32 %s215, 7
    %s220 = smul.u32 %s216, 4
    %s221 = smul.u32 %s220, 8
    %s222 = sadd.s32 %s221, %s219
    %s223 = scalar_lea.vmem [#allocation7], %s222
    %v224 = vld [vmem:[%s223] ss:$8 sm:$0xf]
    %v225 = vadd.f32 %v213, %v224
    %s226 = sld [smem:[#allocation3 + $0x85]]
    %s227 = sadd.s32 %s226, 80
    %s228 = sshra.s32 %s227, 3
    %s229 = sand.u32 %s227, 7
    %s230 = sshra.s32 %s227, 3
    %s231 = sand.u32 %s227, 7
    %s232 = smul.u32 %s228, 4
    %s233 = smul.u32 %s232, 8
    %s234 = sadd.s32 %s233, %s231
    %s235 = scalar_lea.vmem [#allocation7], %s234
    %v236 = vld [vmem:[%s235] ss:$8 sm:$0xf]
    %v237 = vadd.f32 %v225, %v236
    %s238 = sld [smem:[#allocation3 + $0x86]]
    %s239 = sadd.s32 %s238, 96
    %s240 = sshra.s32 %s239, 3
    %s241 = sand.u32 %s239, 7
    %s242 = sshra.s32 %s239, 3
    %s243 = sand.u32 %s239, 7
    %s244 = smul.u32 %s240, 4
    %s245 = smul.u32 %s244, 8
    %s246 = sadd.s32 %s245, %s243
    %s247 = scalar_lea.vmem [#allocation7], %s246
    %v248 = vld [vmem:[%s247] ss:$8 sm:$0xf]
    %v249 = vadd.f32 %v237, %v248
    %s250 = sld [smem:[#allocation3 + $0x87]]
    %s251 = sadd.s32 %s250, 112
    %s252 = sshra.s32 %s251, 3
    %s253 = sand.u32 %s251, 7
    %s254 = sshra.s32 %s251, 3
    %s255 = sand.u32 %s251, 7
    %s256 = smul.u32 %s252, 4
    %s257 = smul.u32 %s256, 8
    %s258 = sadd.s32 %s257, %s255
    %s259 = scalar_lea.vmem [#allocation7], %s258
    %v260 = vld [vmem:[%s259] ss:$8 sm:$0xf]
    %v261 = vadd.f32 %v249, %v260
    %s262 = scalar_lea.vmem [#allocation2], 1
    %263 = vst.msk [vmem:[%s262] ss:$8 sm:$0xf] %vm164, %v261
    %264 = vst.msk [vmem:[%s262] ss:$8 sm:$0x0] %vm164, %v261
    %s265 = sld [smem:[#allocation3 + $0x100]]
    %s266 = sshra.s32 %s265, 3
    %s267 = sand.u32 %s265, 7
    %s268 = sshra.s32 %s265, 3
    %s269 = sand.u32 %s265, 7
    %s270 = smul.u32 %s266, 4
    %s271 = smul.u32 %s270, 8
    %s272 = sadd.s32 %s271, %s269
    %s273 = scalar_lea.vmem [#allocation7], %s272
    %v274 = vld [vmem:[%s273] ss:$8 sm:$0xf]
    %v275 = vadd.f32 %v65, %v274
    %s276 = sld [smem:[#allocation3 + $0x101]]
    %s277 = sadd.s32 %s276, 16
    %s278 = sshra.s32 %s277, 3
    %s279 = sand.u32 %s277, 7
    %s280 = sshra.s32 %s277, 3
    %s281 = sand.u32 %s277, 7
    %s282 = smul.u32 %s278, 4
    %s283 = smul.u32 %s282, 8
    %s284 = sadd.s32 %s283, %s281
    %s285 = scalar_lea.vmem [#allocation7], %s284
    %v286 = vld [vmem:[%s285] ss:$8 sm:$0xf]
    %v287 = vadd.f32 %v275, %v286
    %s288 = sld [smem:[#allocation3 + $0x102]]
    %s289 = sadd.s32 %s288, 32
    %s290 = sshra.s32 %s289, 3
    %s291 = sand.u32 %s289, 7
    %s292 = sshra.s32 %s289, 3
    %s293 = sand.u32 %s289, 7
    %s294 = smul.u32 %s290, 4
    %s295 = smul.u32 %s294, 8
    %s296 = sadd.s32 %s295, %s293
    %s297 = scalar_lea.vmem [#allocation7], %s296
    %v298 = vld [vmem:[%s297] ss:$8 sm:$0xf]
    %v299 = vadd.f32 %v287, %v298
    %s300 = sld [smem:[#allocation3 + $0x103]]
    %s301 = sadd.s32 %s300, 48
    %s302 = sshra.s32 %s301, 3
    %s303 = sand.u32 %s301, 7
    %s304 = sshra.s32 %s301, 3
    %s305 = sand.u32 %s301, 7
    %s306 = smul.u32 %s302, 4
    %s307 = smul.u32 %s306, 8
    %s308 = sadd.s32 %s307, %s305
    %s309 = scalar_lea.vmem [#allocation7], %s308
    %v310 = vld [vmem:[%s309] ss:$8 sm:$0xf]
    %v311 = vadd.f32 %v299, %v310
    %s312 = sld [smem:[#allocation3 + $0x104]]
    %s313 = sadd.s32 %s312, 64
    %s314 = sshra.s32 %s313, 3
    %s315 = sand.u32 %s313, 7
    %s316 = sshra.s32 %s313, 3
    %s317 = sand.u32 %s313, 7
    %s318 = smul.u32 %s314, 4
    %s319 = smul.u32 %s318, 8
    %s320 = sadd.s32 %s319, %s317
    %s321 = scalar_lea.vmem [#allocation7], %s320
    %v322 = vld [vmem:[%s321] ss:$8 sm:$0xf]
    %v323 = vadd.f32 %v311, %v322
    %s324 = sld [smem:[#allocation3 + $0x105]]
    %s325 = sadd.s32 %s324, 80
    %s326 = sshra.s32 %s325, 3
    %s327 = sand.u32 %s325, 7
    %s328 = sshra.s32 %s325, 3
    %s329 = sand.u32 %s325, 7
    %s330 = smul.u32 %s326, 4
    %s331 = smul.u32 %s330, 8
    %s332 = sadd.s32 %s331, %s329
    %s333 = scalar_lea.vmem [#allocation7], %s332
    %v334 = vld [vmem:[%s333] ss:$8 sm:$0xf]
    %v335 = vadd.f32 %v323, %v334
    %s336 = sld [smem:[#allocation3 + $0x106]]
    %s337 = sadd.s32 %s336, 96
    %s338 = sshra.s32 %s337, 3
    %s339 = sand.u32 %s337, 7
    %s340 = sshra.s32 %s337, 3
    %s341 = sand.u32 %s337, 7
    %s342 = smul.u32 %s338, 4
    %s343 = smul.u32 %s342, 8
    %s344 = sadd.s32 %s343, %s341
    %s345 = scalar_lea.vmem [#allocation7], %s344
    %v346 = vld [vmem:[%s345] ss:$8 sm:$0xf]
    %v347 = vadd.f32 %v335, %v346
    %s348 = sld [smem:[#allocation3 + $0x107]]
    %s349 = sadd.s32 %s348, 112
    %s350 = sshra.s32 %s349, 3
    %s351 = sand.u32 %s349, 7
    %s352 = sshra.s32 %s349, 3
    %s353 = sand.u32 %s349, 7
    %s354 = smul.u32 %s350, 4
    %s355 = smul.u32 %s354, 8
    %s356 = sadd.s32 %s355, %s353
    %s357 = scalar_lea.vmem [#allocation7], %s356
    %v358 = vld [vmem:[%s357] ss:$8 sm:$0xf]
    %v359 = vadd.f32 %v347, %v358
    %s360 = scalar_lea.vmem [#allocation2], 2
    %361 = vst.msk [vmem:[%s360] ss:$8 sm:$0xf] %vm164, %v359
    %362 = vst.msk [vmem:[%s360] ss:$8 sm:$0x0] %vm164, %v359
    %s363 = sld [smem:[#allocation3 + $0x180]]
    %s364 = sshra.s32 %s363, 3
    %s365 = sand.u32 %s363, 7
    %s366 = sshra.s32 %s363, 3
    %s367 = sand.u32 %s363, 7
    %s368 = smul.u32 %s364, 4
    %s369 = smul.u32 %s368, 8
    %s370 = sadd.s32 %s369, %s367
    %s371 = scalar_lea.vmem [#allocation7], %s370
    %v372 = vld [vmem:[%s371] ss:$8 sm:$0xf]
    %v373 = vadd.f32 %v65, %v372
    %s374 = sld [smem:[#allocation3 + $0x181]]
    %s375 = sadd.s32 %s374, 16
    %s376 = sshra.s32 %s375, 3
    %s377 = sand.u32 %s375, 7
    %s378 = sshra.s32 %s375, 3
    %s379 = sand.u32 %s375, 7
    %s380 = smul.u32 %s376, 4
    %s381 = smul.u32 %s380, 8
    %s382 = sadd.s32 %s381, %s379
    %s383 = scalar_lea.vmem [#allocation7], %s382
    %v384 = vld [vmem:[%s383] ss:$8 sm:$0xf]
    %v385 = vadd.f32 %v373, %v384
    %s386 = sld [smem:[#allocation3 + $0x182]]
    %s387 = sadd.s32 %s386, 32
    %s388 = sshra.s32 %s387, 3
    %s389 = sand.u32 %s387, 7
    %s390 = sshra.s32 %s387, 3
    %s391 = sand.u32 %s387, 7
    %s392 = smul.u32 %s388, 4
    %s393 = smul.u32 %s392, 8
    %s394 = sadd.s32 %s393, %s391
    %s395 = scalar_lea.vmem [#allocation7], %s394
    %v396 = vld [vmem:[%s395] ss:$8 sm:$0xf]
    %v397 = vadd.f32 %v385, %v396
    %s398 = sld [smem:[#allocation3 + $0x183]]
    %s399 = sadd.s32 %s398, 48
    %s400 = sshra.s32 %s399, 3
    %s401 = sand.u32 %s399, 7
    %s402 = sshra.s32 %s399, 3
    %s403 = sand.u32 %s399, 7
    %s404 = smul.u32 %s400, 4
    %s405 = smul.u32 %s404, 8
    %s406 = sadd.s32 %s405, %s403
    %s407 = scalar_lea.vmem [#allocation7], %s406
    %v408 = vld [vmem:[%s407] ss:$8 sm:$0xf]
    %v409 = vadd.f32 %v397, %v408
    %s410 = sld [smem:[#allocation3 + $0x184]]
    %s411 = sadd.s32 %s410, 64
    %s412 = sshra.s32 %s411, 3
    %s413 = sand.u32 %s411, 7
    %s414 = sshra.s32 %s411, 3
    %s415 = sand.u32 %s411, 7
    %s416 = smul.u32 %s412, 4
    %s417 = smul.u32 %s416, 8
    %s418 = sadd.s32 %s417, %s415
    %s419 = scalar_lea.vmem [#allocation7], %s418
    %v420 = vld [vmem:[%s419] ss:$8 sm:$0xf]
    %v421 = vadd.f32 %v409, %v420
    %s422 = sld [smem:[#allocation3 + $0x185]]
    %s423 = sadd.s32 %s422, 80
    %s424 = sshra.s32 %s423, 3
    %s425 = sand.u32 %s423, 7
    %s426 = sshra.s32 %s423, 3
    %s427 = sand.u32 %s423, 7
    %s428 = smul.u32 %s424, 4
    %s429 = smul.u32 %s428, 8
    %s430 = sadd.s32 %s429, %s427
    %s431 = scalar_lea.vmem [#allocation7], %s430
    %v432 = vld [vmem:[%s431] ss:$8 sm:$0xf]
    %v433 = vadd.f32 %v421, %v432
    %s434 = sld [smem:[#allocation3 + $0x186]]
    %s435 = sadd.s32 %s434, 96
    %s436 = sshra.s32 %s435, 3
    %s437 = sand.u32 %s435, 7
    %s438 = sshra.s32 %s435, 3
    %s439 = sand.u32 %s435, 7
    %s440 = smul.u32 %s436, 4
    %s441 = smul.u32 %s440, 8
    %s442 = sadd.s32 %s441, %s439
    %s443 = scalar_lea.vmem [#allocation7], %s442
    %v444 = vld [vmem:[%s443] ss:$8 sm:$0xf]
    %v445 = vadd.f32 %v433, %v444
    %s446 = sld [smem:[#allocation3 + $0x187]]
    %s447 = sadd.s32 %s446, 112
    %s448 = sshra.s32 %s447, 3
    %s449 = sand.u32 %s447, 7
    %s450 = sshra.s32 %s447, 3
    %s451 = sand.u32 %s447, 7
    %s452 = smul.u32 %s448, 4
    %s453 = smul.u32 %s452, 8
    %s454 = sadd.s32 %s453, %s451
    %s455 = scalar_lea.vmem [#allocation7], %s454
    %v456 = vld [vmem:[%s455] ss:$8 sm:$0xf]
    %v457 = vadd.f32 %v445, %v456
    %s458 = scalar_lea.vmem [#allocation2], 3
    %459 = vst.msk [vmem:[%s458] ss:$8 sm:$0xf] %vm164, %v457
    %460 = vst.msk [vmem:[%s458] ss:$8 sm:$0x0] %vm164, %v457
    %s461 = sld [smem:[#allocation3 + $0x200]]
    %s462 = sshra.s32 %s461, 3
    %s463 = sand.u32 %s461, 7
    %s464 = sshra.s32 %s461, 3
    %s465 = sand.u32 %s461, 7
    %s466 = smul.u32 %s462, 4
    %s467 = smul.u32 %s466, 8
    %s468 = sadd.s32 %s467, %s465
    %s469 = scalar_lea.vmem [#allocation7], %s468
    %v470 = vld [vmem:[%s469] ss:$8 sm:$0xf]
    %v471 = vadd.f32 %v65, %v470
    %s472 = sld [smem:[#allocation3 + $0x201]]
    %s473 = sadd.s32 %s472, 16
    %s474 = sshra.s32 %s473, 3
    %s475 = sand.u32 %s473, 7
    %s476 = sshra.s32 %s473, 3
    %s477 = sand.u32 %s473, 7
    %s478 = smul.u32 %s474, 4
    %s479 = smul.u32 %s478, 8
    %s480 = sadd.s32 %s479, %s477
    %s481 = scalar_lea.vmem [#allocation7], %s480
    %v482 = vld [vmem:[%s481] ss:$8 sm:$0xf]
    %v483 = vadd.f32 %v471, %v482
    %s484 = sld [smem:[#allocation3 + $0x202]]
    %s485 = sadd.s32 %s484, 32
    %s486 = sshra.s32 %s485, 3
    %s487 = sand.u32 %s485, 7
    %s488 = sshra.s32 %s485, 3
    %s489 = sand.u32 %s485, 7
    %s490 = smul.u32 %s486, 4
    %s491 = smul.u32 %s490, 8
    %s492 = sadd.s32 %s491, %s489
    %s493 = scalar_lea.vmem [#allocation7], %s492
    %v494 = vld [vmem:[%s493] ss:$8 sm:$0xf]
    %v495 = vadd.f32 %v483, %v494
    %s496 = sld [smem:[#allocation3 + $0x203]]
    %s497 = sadd.s32 %s496, 48
    %s498 = sshra.s32 %s497, 3
    %s499 = sand.u32 %s497, 7
    %s500 = sshra.s32 %s497, 3
    %s501 = sand.u32 %s497, 7
    %s502 = smul.u32 %s498, 4
    %s503 = smul.u32 %s502, 8
    %s504 = sadd.s32 %s503, %s501
    %s505 = scalar_lea.vmem [#allocation7], %s504
    %v506 = vld [vmem:[%s505] ss:$8 sm:$0xf]
    %v507 = vadd.f32 %v495, %v506
    %s508 = sld [smem:[#allocation3 + $0x204]]
    %s509 = sadd.s32 %s508, 64
    %s510 = sshra.s32 %s509, 3
    %s511 = sand.u32 %s509, 7
    %s512 = sshra.s32 %s509, 3
    %s513 = sand.u32 %s509, 7
    %s514 = smul.u32 %s510, 4
    %s515 = smul.u32 %s514, 8
    %s516 = sadd.s32 %s515, %s513
    %s517 = scalar_lea.vmem [#allocation7], %s516
    %v518 = vld [vmem:[%s517] ss:$8 sm:$0xf]
    %v519 = vadd.f32 %v507, %v518
    %s520 = sld [smem:[#allocation3 + $0x205]]
    %s521 = sadd.s32 %s520, 80
    %s522 = sshra.s32 %s521, 3
    %s523 = sand.u32 %s521, 7
    %s524 = sshra.s32 %s521, 3
    %s525 = sand.u32 %s521, 7
    %s526 = smul.u32 %s522, 4
    %s527 = smul.u32 %s526, 8
    %s528 = sadd.s32 %s527, %s525
    %s529 = scalar_lea.vmem [#allocation7], %s528
    %v530 = vld [vmem:[%s529] ss:$8 sm:$0xf]
    %v531 = vadd.f32 %v519, %v530
    %s532 = sld [smem:[#allocation3 + $0x206]]
    %s533 = sadd.s32 %s532, 96
    %s534 = sshra.s32 %s533, 3
    %s535 = sand.u32 %s533, 7
    %s536 = sshra.s32 %s533, 3
    %s537 = sand.u32 %s533, 7
    %s538 = smul.u32 %s534, 4
    %s539 = smul.u32 %s538, 8
    %s540 = sadd.s32 %s539, %s537
    %s541 = scalar_lea.vmem [#allocation7], %s540
    %v542 = vld [vmem:[%s541] ss:$8 sm:$0xf]
    %v543 = vadd.f32 %v531, %v542
    %s544 = sld [smem:[#allocation3 + $0x207]]
    %s545 = sadd.s32 %s544, 112
    %s546 = sshra.s32 %s545, 3
    %s547 = sand.u32 %s545, 7
    %s548 = sshra.s32 %s545, 3
    %s549 = sand.u32 %s545, 7
    %s550 = smul.u32 %s546, 4
    %s551 = smul.u32 %s550, 8
    %s552 = sadd.s32 %s551, %s549
    %s553 = scalar_lea.vmem [#allocation7], %s552
    %v554 = vld [vmem:[%s553] ss:$8 sm:$0xf]
    %v555 = vadd.f32 %v543, %v554
    %s556 = scalar_lea.vmem [#allocation2], 4
    %557 = vst.msk [vmem:[%s556] ss:$8 sm:$0xf] %vm164, %v555
    %558 = vst.msk [vmem:[%s556] ss:$8 sm:$0x0] %vm164, %v555
    %s559 = sld [smem:[#allocation3 + $0x280]]
    %s560 = sshra.s32 %s559, 3
    %s561 = sand.u32 %s559, 7
    %s562 = sshra.s32 %s559, 3
    %s563 = sand.u32 %s559, 7
    %s564 = smul.u32 %s560, 4
    %s565 = smul.u32 %s564, 8
    %s566 = sadd.s32 %s565, %s563
    %s567 = scalar_lea.vmem [#allocation7], %s566
    %v568 = vld [vmem:[%s567] ss:$8 sm:$0xf]
    %v569 = vadd.f32 %v65, %v568
    %s570 = sld [smem:[#allocation3 + $0x281]]
    %s571 = sadd.s32 %s570, 16
    %s572 = sshra.s32 %s571, 3
    %s573 = sand.u32 %s571, 7
    %s574 = sshra.s32 %s571, 3
    %s575 = sand.u32 %s571, 7
    %s576 = smul.u32 %s572, 4
    %s577 = smul.u32 %s576, 8
    %s578 = sadd.s32 %s577, %s575
    %s579 = scalar_lea.vmem [#allocation7], %s578
    %v580 = vld [vmem:[%s579] ss:$8 sm:$0xf]
    %v581 = vadd.f32 %v569, %v580
    %s582 = sld [smem:[#allocation3 + $0x282]]
    %s583 = sadd.s32 %s582, 32
    %s584 = sshra.s32 %s583, 3
    %s585 = sand.u32 %s583, 7
    %s586 = sshra.s32 %s583, 3
    %s587 = sand.u32 %s583, 7
    %s588 = smul.u32 %s584, 4
    %s589 = smul.u32 %s588, 8
    %s590 = sadd.s32 %s589, %s587
    %s591 = scalar_lea.vmem [#allocation7], %s590
    %v592 = vld [vmem:[%s591] ss:$8 sm:$0xf]
    %v593 = vadd.f32 %v581, %v592
    %s594 = sld [smem:[#allocation3 + $0x283]]
    %s595 = sadd.s32 %s594, 48
    %s596 = sshra.s32 %s595, 3
    %s597 = sand.u32 %s595, 7
    %s598 = sshra.s32 %s595, 3
    %s599 = sand.u32 %s595, 7
    %s600 = smul.u32 %s596, 4
    %s601 = smul.u32 %s600, 8
    %s602 = sadd.s32 %s601, %s599
    %s603 = scalar_lea.vmem [#allocation7], %s602
    %v604 = vld [vmem:[%s603] ss:$8 sm:$0xf]
    %v605 = vadd.f32 %v593, %v604
    %s606 = sld [smem:[#allocation3 + $0x284]]
    %s607 = sadd.s32 %s606, 64
    %s608 = sshra.s32 %s607, 3
    %s609 = sand.u32 %s607, 7
    %s610 = sshra.s32 %s607, 3
    %s611 = sand.u32 %s607, 7
    %s612 = smul.u32 %s608, 4
    %s613 = smul.u32 %s612, 8
    %s614 = sadd.s32 %s613, %s611
    %s615 = scalar_lea.vmem [#allocation7], %s614
    %v616 = vld [vmem:[%s615] ss:$8 sm:$0xf]
    %v617 = vadd.f32 %v605, %v616
    %s618 = sld [smem:[#allocation3 + $0x285]]
    %s619 = sadd.s32 %s618, 80
    %s620 = sshra.s32 %s619, 3
    %s621 = sand.u32 %s619, 7
    %s622 = sshra.s32 %s619, 3
    %s623 = sand.u32 %s619, 7
    %s624 = smul.u32 %s620, 4
    %s625 = smul.u32 %s624, 8
    %s626 = sadd.s32 %s625, %s623
    %s627 = scalar_lea.vmem [#allocation7], %s626
    %v628 = vld [vmem:[%s627] ss:$8 sm:$0xf]
    %v629 = vadd.f32 %v617, %v628
    %s630 = sld [smem:[#allocation3 + $0x286]]
    %s631 = sadd.s32 %s630, 96
    %s632 = sshra.s32 %s631, 3
    %s633 = sand.u32 %s631, 7
    %s634 = sshra.s32 %s631, 3
    %s635 = sand.u32 %s631, 7
    %s636 = smul.u32 %s632, 4
    %s637 = smul.u32 %s636, 8
    %s638 = sadd.s32 %s637, %s635
    %s639 = scalar_lea.vmem [#allocation7], %s638
    %v640 = vld [vmem:[%s639] ss:$8 sm:$0xf]
    %v641 = vadd.f32 %v629, %v640
    %s642 = sld [smem:[#allocation3 + $0x287]]
    %s643 = sadd.s32 %s642, 112
    %s644 = sshra.s32 %s643, 3
    %s645 = sand.u32 %s643, 7
    %s646 = sshra.s32 %s643, 3
    %s647 = sand.u32 %s643, 7
    %s648 = smul.u32 %s644, 4
    %s649 = smul.u32 %s648, 8
    %s650 = sadd.s32 %s649, %s647
    %s651 = scalar_lea.vmem [#allocation7], %s650
    %v652 = vld [vmem:[%s651] ss:$8 sm:$0xf]
    %v653 = vadd.f32 %v641, %v652
    %s654 = scalar_lea.vmem [#allocation2], 5
    %655 = vst.msk [vmem:[%s654] ss:$8 sm:$0xf] %vm164, %v653
    %656 = vst.msk [vmem:[%s654] ss:$8 sm:$0x0] %vm164, %v653
    %s657 = sld [smem:[#allocation3 + $0x300]]
    %s658 = sshra.s32 %s657, 3
    %s659 = sand.u32 %s657, 7
    %s660 = sshra.s32 %s657, 3
    %s661 = sand.u32 %s657, 7
    %s662 = smul.u32 %s658, 4
    %s663 = smul.u32 %s662, 8
    %s664 = sadd.s32 %s663, %s661
    %s665 = scalar_lea.vmem [#allocation7], %s664
    %v666 = vld [vmem:[%s665] ss:$8 sm:$0xf]
    %v667 = vadd.f32 %v65, %v666
    %s668 = sld [smem:[#allocation3 + $0x301]]
    %s669 = sadd.s32 %s668, 16
    %s670 = sshra.s32 %s669, 3
    %s671 = sand.u32 %s669, 7
    %s672 = sshra.s32 %s669, 3
    %s673 = sand.u32 %s669, 7
    %s674 = smul.u32 %s670, 4
    %s675 = smul.u32 %s674, 8
    %s676 = sadd.s32 %s675, %s673
    %s677 = scalar_lea.vmem [#allocation7], %s676
    %v678 = vld [vmem:[%s677] ss:$8 sm:$0xf]
    %v679 = vadd.f32 %v667, %v678
    %s680 = sld [smem:[#allocation3 + $0x302]]
    %s681 = sadd.s32 %s680, 32
    %s682 = sshra.s32 %s681, 3
    %s683 = sand.u32 %s681, 7
    %s684 = sshra.s32 %s681, 3
    %s685 = sand.u32 %s681, 7
    %s686 = smul.u32 %s682, 4
    %s687 = smul.u32 %s686, 8
    %s688 = sadd.s32 %s687, %s685
    %s689 = scalar_lea.vmem [#allocation7], %s688
    %v690 = vld [vmem:[%s689] ss:$8 sm:$0xf]
    %v691 = vadd.f32 %v679, %v690
    %s692 = sld [smem:[#allocation3 + $0x303]]
    %s693 = sadd.s32 %s692, 48
    %s694 = sshra.s32 %s693, 3
    %s695 = sand.u32 %s693, 7
    %s696 = sshra.s32 %s693, 3
    %s697 = sand.u32 %s693, 7
    %s698 = smul.u32 %s694, 4
    %s699 = smul.u32 %s698, 8
    %s700 = sadd.s32 %s699, %s697
    %s701 = scalar_lea.vmem [#allocation7], %s700
    %v702 = vld [vmem:[%s701] ss:$8 sm:$0xf]
    %v703 = vadd.f32 %v691, %v702
    %s704 = sld [smem:[#allocation3 + $0x304]]
    %s705 = sadd.s32 %s704, 64
    %s706 = sshra.s32 %s705, 3
    %s707 = sand.u32 %s705, 7
    %s708 = sshra.s32 %s705, 3
    %s709 = sand.u32 %s705, 7
    %s710 = smul.u32 %s706, 4
    %s711 = smul.u32 %s710, 8
    %s712 = sadd.s32 %s711, %s709
    %s713 = scalar_lea.vmem [#allocation7], %s712
    %v714 = vld [vmem:[%s713] ss:$8 sm:$0xf]
    %v715 = vadd.f32 %v703, %v714
    %s716 = sld [smem:[#allocation3 + $0x305]]
    %s717 = sadd.s32 %s716, 80
    %s718 = sshra.s32 %s717, 3
    %s719 = sand.u32 %s717, 7
    %s720 = sshra.s32 %s717, 3
    %s721 = sand.u32 %s717, 7
    %s722 = smul.u32 %s718, 4
    %s723 = smul.u32 %s722, 8
    %s724 = sadd.s32 %s723, %s721
    %s725 = scalar_lea.vmem [#allocation7], %s724
    %v726 = vld [vmem:[%s725] ss:$8 sm:$0xf]
    %v727 = vadd.f32 %v715, %v726
    %s728 = sld [smem:[#allocation3 + $0x306]]
    %s729 = sadd.s32 %s728, 96
    %s730 = sshra.s32 %s729, 3
    %s731 = sand.u32 %s729, 7
    %s732 = sshra.s32 %s729, 3
    %s733 = sand.u32 %s729, 7
    %s734 = smul.u32 %s730, 4
    %s735 = smul.u32 %s734, 8
    %s736 = sadd.s32 %s735, %s733
    %s737 = scalar_lea.vmem [#allocation7], %s736
    %v738 = vld [vmem:[%s737] ss:$8 sm:$0xf]
    %v739 = vadd.f32 %v727, %v738
    %s740 = sld [smem:[#allocation3 + $0x307]]
    %s741 = sadd.s32 %s740, 112
    %s742 = sshra.s32 %s741, 3
    %s743 = sand.u32 %s741, 7
    %s744 = sshra.s32 %s741, 3
    %s745 = sand.u32 %s741, 7
    %s746 = smul.u32 %s742, 4
    %s747 = smul.u32 %s746, 8
    %s748 = sadd.s32 %s747, %s745
    %s749 = scalar_lea.vmem [#allocation7], %s748
    %v750 = vld [vmem:[%s749] ss:$8 sm:$0xf]
    %v751 = vadd.f32 %v739, %v750
    %s752 = scalar_lea.vmem [#allocation2], 6
    %753 = vst.msk [vmem:[%s752] ss:$8 sm:$0xf] %vm164, %v751
    %754 = vst.msk [vmem:[%s752] ss:$8 sm:$0x0] %vm164, %v751
    %s755 = sld [smem:[#allocation3 + $0x380]]
    %s756 = sshra.s32 %s755, 3
    %s757 = sand.u32 %s755, 7
    %s758 = sshra.s32 %s755, 3
    %s759 = sand.u32 %s755, 7
    %s760 = smul.u32 %s756, 4
    %s761 = smul.u32 %s760, 8
    %s762 = sadd.s32 %s761, %s759
    %s763 = scalar_lea.vmem [#allocation7], %s762
    %v764 = vld [vmem:[%s763] ss:$8 sm:$0xf]
    %v765 = vadd.f32 %v65, %v764
    %s766 = sld [smem:[#allocation3 + $0x381]]
    %s767 = sadd.s32 %s766, 16
    %s768 = sshra.s32 %s767, 3
    %s769 = sand.u32 %s767, 7
    %s770 = sshra.s32 %s767, 3
    %s771 = sand.u32 %s767, 7
    %s772 = smul.u32 %s768, 4
    %s773 = smul.u32 %s772, 8
    %s774 = sadd.s32 %s773, %s771
    %s775 = scalar_lea.vmem [#allocation7], %s774
    %v776 = vld [vmem:[%s775] ss:$8 sm:$0xf]
    %v777 = vadd.f32 %v765, %v776
    %s778 = sld [smem:[#allocation3 + $0x382]]
    %s779 = sadd.s32 %s778, 32
    %s780 = sshra.s32 %s779, 3
    %s781 = sand.u32 %s779, 7
    %s782 = sshra.s32 %s779, 3
    %s783 = sand.u32 %s779, 7
    %s784 = smul.u32 %s780, 4
    %s785 = smul.u32 %s784, 8
    %s786 = sadd.s32 %s785, %s783
    %s787 = scalar_lea.vmem [#allocation7], %s786
    %v788 = vld [vmem:[%s787] ss:$8 sm:$0xf]
    %v789 = vadd.f32 %v777, %v788
    %s790 = sld [smem:[#allocation3 + $0x383]]
    %s791 = sadd.s32 %s790, 48
    %s792 = sshra.s32 %s791, 3
    %s793 = sand.u32 %s791, 7
    %s794 = sshra.s32 %s791, 3
    %s795 = sand.u32 %s791, 7
    %s796 = smul.u32 %s792, 4
    %s797 = smul.u32 %s796, 8
    %s798 = sadd.s32 %s797, %s795
    %s799 = scalar_lea.vmem [#allocation7], %s798
    %v800 = vld [vmem:[%s799] ss:$8 sm:$0xf]
    %v801 = vadd.f32 %v789, %v800
    %s802 = sld [smem:[#allocation3 + $0x384]]
    %s803 = sadd.s32 %s802, 64
    %s804 = sshra.s32 %s803, 3
    %s805 = sand.u32 %s803, 7
    %s806 = sshra.s32 %s803, 3
    %s807 = sand.u32 %s803, 7
    %s808 = smul.u32 %s804, 4
    %s809 = smul.u32 %s808, 8
    %s810 = sadd.s32 %s809, %s807
    %s811 = scalar_lea.vmem [#allocation7], %s810
    %v812 = vld [vmem:[%s811] ss:$8 sm:$0xf]
    %v813 = vadd.f32 %v801, %v812
    %s814 = sld [smem:[#allocation3 + $0x385]]
    %s815 = sadd.s32 %s814, 80
    %s816 = sshra.s32 %s815, 3
    %s817 = sand.u32 %s815, 7
    %s818 = sshra.s32 %s815, 3
    %s819 = sand.u32 %s815, 7
    %s820 = smul.u32 %s816, 4
    %s821 = smul.u32 %s820, 8
    %s822 = sadd.s32 %s821, %s819
    %s823 = scalar_lea.vmem [#allocation7], %s822
    %v824 = vld [vmem:[%s823] ss:$8 sm:$0xf]
    %v825 = vadd.f32 %v813, %v824
    %s826 = sld [smem:[#allocation3 + $0x386]]
    %s827 = sadd.s32 %s826, 96
    %s828 = sshra.s32 %s827, 3
    %s829 = sand.u32 %s827, 7
    %s830 = sshra.s32 %s827, 3
    %s831 = sand.u32 %s827, 7
    %s832 = smul.u32 %s828, 4
    %s833 = smul.u32 %s832, 8
    %s834 = sadd.s32 %s833, %s831
    %s835 = scalar_lea.vmem [#allocation7], %s834
    %v836 = vld [vmem:[%s835] ss:$8 sm:$0xf]
    %v837 = vadd.f32 %v825, %v836
    %s838 = sld [smem:[#allocation3 + $0x387]]
    %s839 = sadd.s32 %s838, 112
    %s840 = sshra.s32 %s839, 3
    %s841 = sand.u32 %s839, 7
    %s842 = sshra.s32 %s839, 3
    %s843 = sand.u32 %s839, 7
    %s844 = smul.u32 %s840, 4
    %s845 = smul.u32 %s844, 8
    %s846 = sadd.s32 %s845, %s843
    %s847 = scalar_lea.vmem [#allocation7], %s846
    %v848 = vld [vmem:[%s847] ss:$8 sm:$0xf]
    %v849 = vadd.f32 %v837, %v848
    %s850 = scalar_lea.vmem [#allocation2], 7
    %851 = vst.msk [vmem:[%s850] ss:$8 sm:$0xf] %vm164, %v849
    %852 = vst.msk [vmem:[%s850] ss:$8 sm:$0x0] %vm164, %v849
    %v853 = vld [vmem:[#allocation8] sm:$0xff]
    %v854 = vld [vmem:[#allocation8 + $0x8] sm:$0xff]
    %v855 = vld [vmem:[#allocation8 + $0x10] sm:$0xff]
    %v856 = vld [vmem:[#allocation8 + $0x18] sm:$0xff]
    %v857 = vld [vmem:[#allocation8 + $0x20] sm:$0xff]
    %v858 = vld [vmem:[#allocation8 + $0x28] sm:$0xff]
    %v859 = vld [vmem:[#allocation8 + $0x30] sm:$0xff]
    %v860 = vld [vmem:[#allocation8 + $0x38] sm:$0xff]
    %v861 = vld [vmem:[#allocation8 + $0x40] sm:$0xff]
    %v862 = vld [vmem:[#allocation8 + $0x48] sm:$0xff]
    %v863 = vld [vmem:[#allocation8 + $0x50] sm:$0xff]
    %v864 = vld [vmem:[#allocation8 + $0x58] sm:$0xff]
    %v865 = vld [vmem:[#allocation8 + $0x60] sm:$0xff]
    %v866 = vld [vmem:[#allocation8 + $0x68] sm:$0xff]
    %v867 = vld [vmem:[#allocation8 + $0x70] sm:$0xff]
    %v868 = vld [vmem:[#allocation8 + $0x78] sm:$0xff]
    %v869 = vld [vmem:[#allocation2] ss:$8 sm:$0xf]
    %vm870 = vcmask 261120
    %v872 = vsel %vm870, 0.0, 0
    %874 = vmatprep.subr.mxu0 %v854
    %875 = vmatpush1.msra.mxu0 %v853
    %876 = vmatprep.subr.mxu0 %v858
    %877 = vmatpush1.msra.mxu0 %v857
    %878 = vmatprep.subr.mxu0 %v862
    %879 = vmatpush1.msra.mxu0 %v861
    %880 = vmatprep.subr.mxu0 %v866
    %881 = vmatpush1.msra.mxu0 %v865
    %882 = vmatprep.subr.mxu0 0.0
    %883 = vmatpush1.msra.mxu0 0.0
    %884 = vmatprep.subr.mxu0 0.0
    %885 = vmatpush1.msra.mxu0 0.0
    %886 = vmatprep.subr.mxu0 0.0
    %887 = vmatpush1.msra.mxu0 0.0
    %888 = vmatprep.subr.mxu0 0.0
    %889 = vmatpush1.msra.mxu0 0.0
    %890 = vmatprep.subr.mxu0 0.0
    %891 = vmatpush1.msra.mxu0 0.0
    %892 = vmatprep.subr.mxu0 0.0
    %893 = vmatpush1.msra.mxu0 0.0
    %894 = vmatprep.subr.mxu0 0.0
    %895 = vmatpush1.msra.mxu0 0.0
    %896 = vmatprep.subr.mxu0 0.0
    %897 = vmatpush1.msra.mxu0 0.0
    %898 = vmatprep.subr.mxu0 0.0
    %899 = vmatpush1.msra.mxu0 0.0
    %900 = vmatprep.subr.mxu0 0.0
    %901 = vmatpush1.msra.mxu0 0.0
    %902 = vmatprep.subr.mxu0 0.0
    %903 = vmatpush1.msra.mxu0 0.0
    %904 = vmatprep.subr.mxu0 0.0
    %905 = vmatpush1.msra.mxu0 0.0
    %906 = vmatprep.subr.mxu0 0.0
    %907 = vmatpush1.msra.mxu0 0.0
    %908 = vmatprep.subr.mxu0 0.0
    %909 = vmatpush1.msra.mxu0 0.0
    %910 = vmatprep.subr.mxu0 0.0
    %911 = vmatpush1.msra.mxu0 0.0
    %912 = vmatprep.subr.mxu0 0.0
    %913 = vmatpush1.msra.mxu0 0.0
    %914 = vmatprep.subr.mxu0 0.0
    %915 = vmatpush1.msra.mxu0 0.0
    %916 = vmatprep.subr.mxu0 0.0
    %917 = vmatpush1.msra.mxu0 0.0
    %918 = vmatprep.subr.mxu0 0.0
    %919 = vmatpush1.msra.mxu0 0.0
    %920 = vmatprep.subr.mxu0 0.0
    %921 = vmatpush1.msra.mxu0 0.0
    %922 = vmatprep.subr.mxu0 0.0
    %923 = vmatpush1.msra.mxu0 0.0
    %924 = vmatprep.subr.mxu0 0.0
    %925 = vmatpush1.msra.mxu0 0.0
    %926 = vmatprep.subr.mxu0 0.0
    %927 = vmatpush1.msra.mxu0 0.0
    %928 = vmatprep.subr.mxu0 0.0
    %929 = vmatpush1.msra.mxu0 0.0
    %930 = vmatprep.subr.mxu0 0.0
    %931 = vmatpush1.msra.mxu0 0.0
    %932 = vmatprep.subr.mxu0 0.0
    %933 = vmatpush1.msra.mxu0 0.0
    %934 = vmatprep.subr.mxu0 0.0
    %935 = vmatpush1.msra.mxu0 0.0
    %936 = vmatprep.subr.mxu0 0.0
    %937 = vmatpush1.msra.mxu0 0.0
    %938 = vmatprep.mubr.f32.mxu0 0.0
    %939 = vmatmul.mubr.f32.gmra.mrb[0].mxu0 %v872
    %v940 = vpop.f32.mrb[0].mxu0
    %v941 = vadd.f32 0.0, %v940
    %v942 = vpop.f32.mrb[0].mxu0
    %v943 = vadd.f32 0.0, %v942
    %944 = vdwg.mxu0
    %945 = vmatprep.subr.mxu0 %v856
    %946 = vmatpush1.msra.mxu0 %v855
    %947 = vmatprep.subr.mxu0 %v860
    %948 = vmatpush1.msra.mxu0 %v859
    %949 = vmatprep.subr.mxu0 %v864
    %950 = vmatpush1.msra.mxu0 %v863
    %951 = vmatprep.subr.mxu0 %v868
    %952 = vmatpush1.msra.mxu0 %v867
    %953 = vmatprep.subr.mxu0 0.0
    %954 = vmatpush1.msra.mxu0 0.0
    %955 = vmatprep.subr.mxu0 0.0
    %956 = vmatpush1.msra.mxu0 0.0
    %957 = vmatprep.subr.mxu0 0.0
    %958 = vmatpush1.msra.mxu0 0.0
    %959 = vmatprep.subr.mxu0 0.0
    %960 = vmatpush1.msra.mxu0 0.0
    %961 = vmatprep.subr.mxu0 0.0
    %962 = vmatpush1.msra.mxu0 0.0
    %963 = vmatprep.subr.mxu0 0.0
    %964 = vmatpush1.msra.mxu0 0.0
    %965 = vmatprep.subr.mxu0 0.0
    %966 = vmatpush1.msra.mxu0 0.0
    %967 = vmatprep.subr.mxu0 0.0
    %968 = vmatpush1.msra.mxu0 0.0
    %969 = vmatprep.subr.mxu0 0.0
    %970 = vmatpush1.msra.mxu0 0.0
    %971 = vmatprep.subr.mxu0 0.0
    %972 = vmatpush1.msra.mxu0 0.0
    %973 = vmatprep.subr.mxu0 0.0
    %974 = vmatpush1.msra.mxu0 0.0
    %975 = vmatprep.subr.mxu0 0.0
    %976 = vmatpush1.msra.mxu0 0.0
    %977 = vmatprep.subr.mxu0 0.0
    %978 = vmatpush1.msra.mxu0 0.0
    %979 = vmatprep.subr.mxu0 0.0
    %980 = vmatpush1.msra.mxu0 0.0
    %981 = vmatprep.subr.mxu0 0.0
    %982 = vmatpush1.msra.mxu0 0.0
    %983 = vmatprep.subr.mxu0 0.0
    %984 = vmatpush1.msra.mxu0 0.0
    %985 = vmatprep.subr.mxu0 0.0
    %986 = vmatpush1.msra.mxu0 0.0
    %987 = vmatprep.subr.mxu0 0.0
    %988 = vmatpush1.msra.mxu0 0.0
    %989 = vmatprep.subr.mxu0 0.0
    %990 = vmatpush1.msra.mxu0 0.0
    %991 = vmatprep.subr.mxu0 0.0
    %992 = vmatpush1.msra.mxu0 0.0
    %993 = vmatprep.subr.mxu0 0.0
    %994 = vmatpush1.msra.mxu0 0.0
    %995 = vmatprep.subr.mxu0 0.0
    %996 = vmatpush1.msra.mxu0 0.0
    %997 = vmatprep.subr.mxu0 0.0
    %998 = vmatpush1.msra.mxu0 0.0
    %999 = vmatprep.subr.mxu0 0.0
    %1000 = vmatpush1.msra.mxu0 0.0
    %1001 = vmatprep.subr.mxu0 0.0
    %1002 = vmatpush1.msra.mxu0 0.0
    %1003 = vmatprep.subr.mxu0 0.0
    %1004 = vmatpush1.msra.mxu0 0.0
    %1005 = vmatprep.subr.mxu0 0.0
    %1006 = vmatpush1.msra.mxu0 0.0
    %1007 = vmatprep.subr.mxu0 0.0
    %1008 = vmatpush1.msra.mxu0 0.0
    %1009 = vmatprep.mubr.f32.mxu0 0.0
    %1010 = vmatmul.mubr.f32.gmra.mrb[0].mxu0 %v872
    %v1011 = vpop.f32.mrb[0].mxu0
    %v1012 = vadd.f32 0.0, %v1011
    %v1013 = vpop.f32.mrb[0].mxu0
    %v1014 = vadd.f32 0.0, %v1013
    %1015 = vdwg.mxu0
    %v1020 = vcombine.low %v941, %v943
    %v1021 = vcombine.low %v1012, %v1014
    %v1023 = vunpack.c.l.s4 1966171168
    %v1024 = vunpack.c.0.s8 %v1023
    %v1025 = vlaneseq
    %v1026 = vshrl.u32 %v1025, 7
    %v1027 = vsub.s32 %v1024, %v1026
    %v1028 = vrot.slane %v1020, %v1027
    %v1030 = vunpack.c.l.s4 1966171168
    %v1031 = vunpack.c.0.s8 %v1030
    %v1032 = vlaneseq
    %v1033 = vshrl.u32 %v1032, 7
    %v1034 = vsub.s32 %v1031, %v1033
    %v1035 = vrot.slane %v1021, %v1034
    %v1036 = vcombine.low %v1028, %v1035
    %v1038 = vunpack.c.l.s4 1966171168
    %v1039 = vunpack.c.0.s8 %v1038
    %v1040 = vlaneseq
    %v1041 = vshrl.u32 %v1040, 7
    %v1042 = vsub.s32 %v1039, %v1041
    %v1043 = vrot.slane %v1036, %v1042
    %v1045 = vadd.f32 %v869, %v1043
    %v1046 = vxor.u32 %v1045, 2147483648
    %v1047 = vmul.f32 %v1046, 1.442695
    %v1048 = vpow.pop %v1047
    %v1049 = vadd.f32 %v1048, 1.0
    %v1050 = vrcp.pop %v1049
    %v1051 = vmul.f32 1.0, %v1050
    %v1053 = vrot.slane %v1045, 1
    %v1055 = vxor.u32 %v1053, 2147483648
    %v1056 = vmul.f32 %v1055, 1.442695
    %v1057 = vpow.pop %v1056
    %v1058 = vadd.f32 %v1057, 1.0
    %v1059 = vrcp.pop %v1058
    %v1060 = vmul.f32 1.0, %v1059
    %v1061 = vrot.slane %v1045, 2
    %v1063 = vtanh.pop %v1061
    %v1064 = vrot.slane %v1045, 3
    %v1066 = vxor.u32 %v1064, 2147483648
    %v1067 = vmul.f32 %v1066, 1.442695
    %v1068 = vpow.pop %v1067
    %v1069 = vadd.f32 %v1068, 1.0
    %v1070 = vrcp.pop %v1069
    %v1071 = vmul.f32 1.0, %v1070
    %v1072 = vmul.f32 %v1060, 0.0
    %v1073 = vmul.f32 %v1051, %v1063
    %v1074 = vadd.f32 %v1072, %v1073
    %v1075 = vtanh.pop %v1074
    %v1076 = vmul.f32 %v1071, %v1075
    %v1077 = vld [vmem:[%s262] ss:$8 sm:$0xf]
    %v1079 = vsel %vm870, %v1076, 0
    %1081 = vmatprep.subr.mxu0 %v854
    %1082 = vmatpush1.msra.mxu0 %v853
    %1083 = vmatprep.subr.mxu0 %v858
    %1084 = vmatpush1.msra.mxu0 %v857
    %1085 = vmatprep.subr.mxu0 %v862
    %1086 = vmatpush1.msra.mxu0 %v861
    %1087 = vmatprep.subr.mxu0 %v866
    %1088 = vmatpush1.msra.mxu0 %v865
    %1089 = vmatprep.subr.mxu0 0.0
    %1090 = vmatpush1.msra.mxu0 0.0
    %1091 = vmatprep.subr.mxu0 0.0
    %1092 = vmatpush1.msra.mxu0 0.0
    %1093 = vmatprep.subr.mxu0 0.0
    %1094 = vmatpush1.msra.mxu0 0.0
    %1095 = vmatprep.subr.mxu0 0.0
    %1096 = vmatpush1.msra.mxu0 0.0
    %1097 = vmatprep.subr.mxu0 0.0
    %1098 = vmatpush1.msra.mxu0 0.0
    %1099 = vmatprep.subr.mxu0 0.0
    %1100 = vmatpush1.msra.mxu0 0.0
    %1101 = vmatprep.subr.mxu0 0.0
    %1102 = vmatpush1.msra.mxu0 0.0
    %1103 = vmatprep.subr.mxu0 0.0
    %1104 = vmatpush1.msra.mxu0 0.0
    %1105 = vmatprep.subr.mxu0 0.0
    %1106 = vmatpush1.msra.mxu0 0.0
    %1107 = vmatprep.subr.mxu0 0.0
    %1108 = vmatpush1.msra.mxu0 0.0
    %1109 = vmatprep.subr.mxu0 0.0
    %1110 = vmatpush1.msra.mxu0 0.0
    %1111 = vmatprep.subr.mxu0 0.0
    %1112 = vmatpush1.msra.mxu0 0.0
    %1113 = vmatprep.subr.mxu0 0.0
    %1114 = vmatpush1.msra.mxu0 0.0
    %1115 = vmatprep.subr.mxu0 0.0
    %1116 = vmatpush1.msra.mxu0 0.0
    %1117 = vmatprep.subr.mxu0 0.0
    %1118 = vmatpush1.msra.mxu0 0.0
    %1119 = vmatprep.subr.mxu0 0.0
    %1120 = vmatpush1.msra.mxu0 0.0
    %1121 = vmatprep.subr.mxu0 0.0
    %1122 = vmatpush1.msra.mxu0 0.0
    %1123 = vmatprep.subr.mxu0 0.0
    %1124 = vmatpush1.msra.mxu0 0.0
    %1125 = vmatprep.subr.mxu0 0.0
    %1126 = vmatpush1.msra.mxu0 0.0
    %1127 = vmatprep.subr.mxu0 0.0
    %1128 = vmatpush1.msra.mxu0 0.0
    %1129 = vmatprep.subr.mxu0 0.0
    %1130 = vmatpush1.msra.mxu0 0.0
    %1131 = vmatprep.subr.mxu0 0.0
    %1132 = vmatpush1.msra.mxu0 0.0
    %1133 = vmatprep.subr.mxu0 0.0
    %1134 = vmatpush1.msra.mxu0 0.0
    %1135 = vmatprep.subr.mxu0 0.0
    %1136 = vmatpush1.msra.mxu0 0.0
    %1137 = vmatprep.subr.mxu0 0.0
    %1138 = vmatpush1.msra.mxu0 0.0
    %1139 = vmatprep.subr.mxu0 0.0
    %1140 = vmatpush1.msra.mxu0 0.0
    %1141 = vmatprep.subr.mxu0 0.0
    %1142 = vmatpush1.msra.mxu0 0.0
    %1143 = vmatprep.subr.mxu0 0.0
    %1144 = vmatpush1.msra.mxu0 0.0
    %1145 = vmatprep.mubr.f32.mxu0 0.0
    %1146 = vmatmul.mubr.f32.gmra.mrb[0].mxu0 %v1079
    %v1147 = vpop.f32.mrb[0].mxu0
    %v1148 = vadd.f32 0.0, %v1147
    %v1149 = vpop.f32.mrb[0].mxu0
    %v1150 = vadd.f32 0.0, %v1149
    %1151 = vdwg.mxu0
    %1152 = vmatprep.subr.mxu0 %v856
    %1153 = vmatpush1.msra.mxu0 %v855
    %1154 = vmatprep.subr.mxu0 %v860
    %1155 = vmatpush1.msra.mxu0 %v859
    %1156 = vmatprep.subr.mxu0 %v864
    %1157 = vmatpush1.msra.mxu0 %v863
    %1158 = vmatprep.subr.mxu0 %v868
    %1159 = vmatpush1.msra.mxu0 %v867
    %1160 = vmatprep.subr.mxu0 0.0
    %1161 = vmatpush1.msra.mxu0 0.0
    %1162 = vmatprep.subr.mxu0 0.0
    %1163 = vmatpush1.msra.mxu0 0.0
    %1164 = vmatprep.subr.mxu0 0.0
    %1165 = vmatpush1.msra.mxu0 0.0
    %1166 = vmatprep.subr.mxu0 0.0
    %1167 = vmatpush1.msra.mxu0 0.0
    %1168 = vmatprep.subr.mxu0 0.0
    %1169 = vmatpush1.msra.mxu0 0.0
    %1170 = vmatprep.subr.mxu0 0.0
    %1171 = vmatpush1.msra.mxu0 0.0
    %1172 = vmatprep.subr.mxu0 0.0
    %1173 = vmatpush1.msra.mxu0 0.0
    %1174 = vmatprep.subr.mxu0 0.0
    %1175 = vmatpush1.msra.mxu0 0.0
    %1176 = vmatprep.subr.mxu0 0.0
    %1177 = vmatpush1.msra.mxu0 0.0
    %1178 = vmatprep.subr.mxu0 0.0
    %1179 = vmatpush1.msra.mxu0 0.0
    %1180 = vmatprep.subr.mxu0 0.0
    %1181 = vmatpush1.msra.mxu0 0.0
    %1182 = vmatprep.subr.mxu0 0.0
    %1183 = vmatpush1.msra.mxu0 0.0
    %1184 = vmatprep.subr.mxu0 0.0
    %1185 = vmatpush1.msra.mxu0 0.0
    %1186 = vmatprep.subr.mxu0 0.0
    %1187 = vmatpush1.msra.mxu0 0.0
    %1188 = vmatprep.subr.mxu0 0.0
    %1189 = vmatpush1.msra.mxu0 0.0
    %1190 = vmatprep.subr.mxu0 0.0
    %1191 = vmatpush1.msra.mxu0 0.0
    %1192 = vmatprep.subr.mxu0 0.0
    %1193 = vmatpush1.msra.mxu0 0.0
    %1194 = vmatprep.subr.mxu0 0.0
    %1195 = vmatpush1.msra.mxu0 0.0
    %1196 = vmatprep.subr.mxu0 0.0
    %1197 = vmatpush1.msra.mxu0 0.0
    %1198 = vmatprep.subr.mxu0 0.0
    %1199 = vmatpush1.msra.mxu0 0.0
    %1200 = vmatprep.subr.mxu0 0.0
    %1201 = vmatpush1.msra.mxu0 0.0
    %1202 = vmatprep.subr.mxu0 0.0
    %1203 = vmatpush1.msra.mxu0 0.0
    %1204 = vmatprep.subr.mxu0 0.0
    %1205 = vmatpush1.msra.mxu0 0.0
    %1206 = vmatprep.subr.mxu0 0.0
    %1207 = vmatpush1.msra.mxu0 0.0
    %1208 = vmatprep.subr.mxu0 0.0
    %1209 = vmatpush1.msra.mxu0 0.0
    %1210 = vmatprep.subr.mxu0 0.0
    %1211 = vmatpush1.msra.mxu0 0.0
    %1212 = vmatprep.subr.mxu0 0.0
    %1213 = vmatpush1.msra.mxu0 0.0
    %1214 = vmatprep.subr.mxu0 0.0
    %1215 = vmatpush1.msra.mxu0 0.0
    %1216 = vmatprep.mubr.f32.mxu0 0.0
    %1217 = vmatmul.mubr.f32.gmra.mrb[0].mxu0 %v1079
    %v1218 = vpop.f32.mrb[0].mxu0
    %v1219 = vadd.f32 0.0, %v1218
    %v1220 = vpop.f32.mrb[0].mxu0
    %v1221 = vadd.f32 0.0, %v1220
    %1222 = vdwg.mxu0
    %v1227 = vcombine.low %v1148, %v1150
    %v1228 = vcombine.low %v1219, %v1221
    %v1230 = vunpack.c.l.s4 1966171168
    %v1231 = vunpack.c.0.s8 %v1230
    %v1232 = vlaneseq
    %v1233 = vshrl.u32 %v1232, 7
    %v1234 = vsub.s32 %v1231, %v1233
    %v1235 = vrot.slane %v1227, %v1234
    %v1237 = vunpack.c.l.s4 1966171168
    %v1238 = vunpack.c.0.s8 %v1237
    %v1239 = vlaneseq
    %v1240 = vshrl.u32 %v1239, 7
    %v1241 = vsub.s32 %v1238, %v1240
    %v1242 = vrot.slane %v1228, %v1241
    %v1243 = vcombine.low %v1235, %v1242
    %v1245 = vunpack.c.l.s4 1966171168
    %v1246 = vunpack.c.0.s8 %v1245
    %v1247 = vlaneseq
    %v1248 = vshrl.u32 %v1247, 7
    %v1249 = vsub.s32 %v1246, %v1248
    %v1250 = vrot.slane %v1243, %v1249
    %v1252 = vadd.f32 %v1077, %v1250
    %v1253 = vxor.u32 %v1252, 2147483648
    %v1254 = vmul.f32 %v1253, 1.442695
    %v1255 = vpow.pop %v1254
    %v1256 = vadd.f32 %v1255, 1.0
    %v1257 = vrcp.pop %v1256
    %v1258 = vmul.f32 1.0, %v1257
    %v1260 = vrot.slane %v1252, 1
    %v1262 = vxor.u32 %v1260, 2147483648
    %v1263 = vmul.f32 %v1262, 1.442695
    %v1264 = vpow.pop %v1263
    %v1265 = vadd.f32 %v1264, 1.0
    %v1266 = vrcp.pop %v1265
    %v1267 = vmul.f32 1.0, %v1266
    %v1268 = vrot.slane %v1252, 2
    %v1270 = vtanh.pop %v1268
    %v1271 = vrot.slane %v1252, 3
    %v1273 = vxor.u32 %v1271, 2147483648
    %v1274 = vmul.f32 %v1273, 1.442695
    %v1275 = vpow.pop %v1274
    %v1276 = vadd.f32 %v1275, 1.0
    %v1277 = vrcp.pop %v1276
    %v1278 = vmul.f32 1.0, %v1277
    %v1279 = vmul.f32 %v1267, %v1074
    %v1280 = vmul.f32 %v1258, %v1270
    %v1281 = vadd.f32 %v1279, %v1280
    %v1282 = vtanh.pop %v1281
    %v1283 = vmul.f32 %v1278, %v1282
    %v1284 = vld [vmem:[%s360] ss:$8 sm:$0xf]
    %v1286 = vsel %vm870, %v1283, 0
    %1288 = vmatprep.subr.mxu0 %v854
    %1289 = vmatpush1.msra.mxu0 %v853
    %1290 = vmatprep.subr.mxu0 %v858
    %1291 = vmatpush1.msra.mxu0 %v857
    %1292 = vmatprep.subr.mxu0 %v862
    %1293 = vmatpush1.msra.mxu0 %v861
    %1294 = vmatprep.subr.mxu0 %v866
    %1295 = vmatpush1.msra.mxu0 %v865
    %1296 = vmatprep.subr.mxu0 0.0
    %1297 = vmatpush1.msra.mxu0 0.0
    %1298 = vmatprep.subr.mxu0 0.0
    %1299 = vmatpush1.msra.mxu0 0.0
    %1300 = vmatprep.subr.mxu0 0.0
    %1301 = vmatpush1.msra.mxu0 0.0
    %1302 = vmatprep.subr.mxu0 0.0
    %1303 = vmatpush1.msra.mxu0 0.0
    %1304 = vmatprep.subr.mxu0 0.0
    %1305 = vmatpush1.msra.mxu0 0.0
    %1306 = vmatprep.subr.mxu0 0.0
    %1307 = vmatpush1.msra.mxu0 0.0
    %1308 = vmatprep.subr.mxu0 0.0
    %1309 = vmatpush1.msra.mxu0 0.0
    %1310 = vmatprep.subr.mxu0 0.0
    %1311 = vmatpush1.msra.mxu0 0.0
    %1312 = vmatprep.subr.mxu0 0.0
    %1313 = vmatpush1.msra.mxu0 0.0
    %1314 = vmatprep.subr.mxu0 0.0
    %1315 = vmatpush1.msra.mxu0 0.0
    %1316 = vmatprep.subr.mxu0 0.0
    %1317 = vmatpush1.msra.mxu0 0.0
    %1318 = vmatprep.subr.mxu0 0.0
    %1319 = vmatpush1.msra.mxu0 0.0
    %1320 = vmatprep.subr.mxu0 0.0
    %1321 = vmatpush1.msra.mxu0 0.0
    %1322 = vmatprep.subr.mxu0 0.0
    %1323 = vmatpush1.msra.mxu0 0.0
    %1324 = vmatprep.subr.mxu0 0.0
    %1325 = vmatpush1.msra.mxu0 0.0
    %1326 = vmatprep.subr.mxu0 0.0
    %1327 = vmatpush1.msra.mxu0 0.0
    %1328 = vmatprep.subr.mxu0 0.0
    %1329 = vmatpush1.msra.mxu0 0.0
    %1330 = vmatprep.subr.mxu0 0.0
    %1331 = vmatpush1.msra.mxu0 0.0
    %1332 = vmatprep.subr.mxu0 0.0
    %1333 = vmatpush1.msra.mxu0 0.0
    %1334 = vmatprep.subr.mxu0 0.0
    %1335 = vmatpush1.msra.mxu0 0.0
    %1336 = vmatprep.subr.mxu0 0.0
    %1337 = vmatpush1.msra.mxu0 0.0
    %1338 = vmatprep.subr.mxu0 0.0
    %1339 = vmatpush1.msra.mxu0 0.0
    %1340 = vmatprep.subr.mxu0 0.0
    %1341 = vmatpush1.msra.mxu0 0.0
    %1342 = vmatprep.subr.mxu0 0.0
    %1343 = vmatpush1.msra.mxu0 0.0
    %1344 = vmatprep.subr.mxu0 0.0
    %1345 = vmatpush1.msra.mxu0 0.0
    %1346 = vmatprep.subr.mxu0 0.0
    %1347 = vmatpush1.msra.mxu0 0.0
    %1348 = vmatprep.subr.mxu0 0.0
    %1349 = vmatpush1.msra.mxu0 0.0
    %1350 = vmatprep.subr.mxu0 0.0
    %1351 = vmatpush1.msra.mxu0 0.0
    %1352 = vmatprep.mubr.f32.mxu0 0.0
    %1353 = vmatmul.mubr.f32.gmra.mrb[0].mxu0 %v1286
    %v1354 = vpop.f32.mrb[0].mxu0
    %v1355 = vadd.f32 0.0, %v1354
    %v1356 = vpop.f32.mrb[0].mxu0
    %v1357 = vadd.f32 0.0, %v1356
    %1358 = vdwg.mxu0
    %1359 = vmatprep.subr.mxu0 %v856
    %1360 = vmatpush1.msra.mxu0 %v855
    %1361 = vmatprep.subr.mxu0 %v860
    %1362 = vmatpush1.msra.mxu0 %v859
    %1363 = vmatprep.subr.mxu0 %v864
    %1364 = vmatpush1.msra.mxu0 %v863
    %1365 = vmatprep.subr.mxu0 %v868
    %1366 = vmatpush1.msra.mxu0 %v867
    %1367 = vmatprep.subr.mxu0 0.0
    %1368 = vmatpush1.msra.mxu0 0.0
    %1369 = vmatprep.subr.mxu0 0.0
    %1370 = vmatpush1.msra.mxu0 0.0
    %1371 = vmatprep.subr.mxu0 0.0
    %1372 = vmatpush1.msra.mxu0 0.0
    %1373 = vmatprep.subr.mxu0 0.0
    %1374 = vmatpush1.msra.mxu0 0.0
    %1375 = vmatprep.subr.mxu0 0.0
    %1376 = vmatpush1.msra.mxu0 0.0
    %1377 = vmatprep.subr.mxu0 0.0
    %1378 = vmatpush1.msra.mxu0 0.0
    %1379 = vmatprep.subr.mxu0 0.0
    %1380 = vmatpush1.msra.mxu0 0.0
    %1381 = vmatprep.subr.mxu0 0.0
    %1382 = vmatpush1.msra.mxu0 0.0
    %1383 = vmatprep.subr.mxu0 0.0
    %1384 = vmatpush1.msra.mxu0 0.0
    %1385 = vmatprep.subr.mxu0 0.0
    %1386 = vmatpush1.msra.mxu0 0.0
    %1387 = vmatprep.subr.mxu0 0.0
    %1388 = vmatpush1.msra.mxu0 0.0
    %1389 = vmatprep.subr.mxu0 0.0
    %1390 = vmatpush1.msra.mxu0 0.0
    %1391 = vmatprep.subr.mxu0 0.0
    %1392 = vmatpush1.msra.mxu0 0.0
    %1393 = vmatprep.subr.mxu0 0.0
    %1394 = vmatpush1.msra.mxu0 0.0
    %1395 = vmatprep.subr.mxu0 0.0
    %1396 = vmatpush1.msra.mxu0 0.0
    %1397 = vmatprep.subr.mxu0 0.0
    %1398 = vmatpush1.msra.mxu0 0.0
    %1399 = vmatprep.subr.mxu0 0.0
    %1400 = vmatpush1.msra.mxu0 0.0
    %1401 = vmatprep.subr.mxu0 0.0
    %1402 = vmatpush1.msra.mxu0 0.0
    %1403 = vmatprep.subr.mxu0 0.0
    %1404 = vmatpush1.msra.mxu0 0.0
    %1405 = vmatprep.subr.mxu0 0.0
    %1406 = vmatpush1.msra.mxu0 0.0
    %1407 = vmatprep.subr.mxu0 0.0
    %1408 = vmatpush1.msra.mxu0 0.0
    %1409 = vmatprep.subr.mxu0 0.0
    %1410 = vmatpush1.msra.mxu0 0.0
    %1411 = vmatprep.subr.mxu0 0.0
    %1412 = vmatpush1.msra.mxu0 0.0
    %1413 = vmatprep.subr.mxu0 0.0
    %1414 = vmatpush1.msra.mxu0 0.0
    %1415 = vmatprep.subr.mxu0 0.0
    %1416 = vmatpush1.msra.mxu0 0.0
    %1417 = vmatprep.subr.mxu0 0.0
    %1418 = vmatpush1.msra.mxu0 0.0
    %1419 = vmatprep.subr.mxu0 0.0
    %1420 = vmatpush1.msra.mxu0 0.0
    %1421 = vmatprep.subr.mxu0 0.0
    %1422 = vmatpush1.msra.mxu0 0.0
    %1423 = vmatprep.mubr.f32.mxu0 0.0
    %1424 = vmatmul.mubr.f32.gmra.mrb[0].mxu0 %v1286
    %v1425 = vpop.f32.mrb[0].mxu0
    %v1426 = vadd.f32 0.0, %v1425
    %v1427 = vpop.f32.mrb[0].mxu0
    %v1428 = vadd.f32 0.0, %v1427
    %1429 = vdwg.mxu0
    %v1434 = vcombine.low %v1355, %v1357
    %v1435 = vcombine.low %v1426, %v1428
    %v1437 = vunpack.c.l.s4 1966171168
    %v1438 = vunpack.c.0.s8 %v1437
    %v1439 = vlaneseq
    %v1440 = vshrl.u32 %v1439, 7
    %v1441 = vsub.s32 %v1438, %v1440
    %v1442 = vrot.slane %v1434, %v1441
    %v1444 = vunpack.c.l.s4 1966171168
    %v1445 = vunpack.c.0.s8 %v1444
    %v1446 = vlaneseq
    %v1447 = vshrl.u32 %v1446, 7
    %v1448 = vsub.s32 %v1445, %v1447
    %v1449 = vrot.slane %v1435, %v1448
    %v1450 = vcombine.low %v1442, %v1449
    %v1452 = vunpack.c.l.s4 1966171168
    %v1453 = vunpack.c.0.s8 %v1452
    %v1454 = vlaneseq
    %v1455 = vshrl.u32 %v1454, 7
    %v1456 = vsub.s32 %v1453, %v1455
    %v1457 = vrot.slane %v1450, %v1456
    %v1459 = vadd.f32 %v1284, %v1457
    %v1460 = vxor.u32 %v1459, 2147483648
    %v1461 = vmul.f32 %v1460, 1.442695
    %v1462 = vpow.pop %v1461
    %v1463 = vadd.f32 %v1462, 1.0
    %v1464 = vrcp.pop %v1463
    %v1465 = vmul.f32 1.0, %v1464
    %v1467 = vrot.slane %v1459, 1
    %v1469 = vxor.u32 %v1467, 2147483648
    %v1470 = vmul.f32 %v1469, 1.442695
    %v1471 = vpow.pop %v1470
    %v1472 = vadd.f32 %v1471, 1.0
    %v1473 = vrcp.pop %v1472
    %v1474 = vmul.f32 1.0, %v1473
    %v1475 = vrot.slane %v1459, 2
    %v1477 = vtanh.pop %v1475
    %v1478 = vrot.slane %v1459, 3
    %v1480 = vxor.u32 %v1478, 2147483648
    %v1481 = vmul.f32 %v1480, 1.442695
    %v1482 = vpow.pop %v1481
    %v1483 = vadd.f32 %v1482, 1.0
    %v1484 = vrcp.pop %v1483
    %v1485 = vmul.f32 1.0, %v1484
    %v1486 = vmul.f32 %v1474, %v1281
    %v1487 = vmul.f32 %v1465, %v1477
    %v1488 = vadd.f32 %v1486, %v1487
    %v1489 = vtanh.pop %v1488
    %v1490 = vmul.f32 %v1485, %v1489
    %v1491 = vld [vmem:[%s458] ss:$8 sm:$0xf]
    %v1493 = vsel %vm870, %v1490, 0
    %1495 = vmatprep.subr.mxu0 %v854
    %1496 = vmatpush1.msra.mxu0 %v853
    %1497 = vmatprep.subr.mxu0 %v858
    %1498 = vmatpush1.msra.mxu0 %v857
    %1499 = vmatprep.subr.mxu0 %v862
    %1500 = vmatpush1.msra.mxu0 %v861
    %1501 = vmatprep.subr.mxu0 %v866
    %1502 = vmatpush1.msra.mxu0 %v865
    %1503 = vmatprep.subr.mxu0 0.0
    %1504 = vmatpush1.msra.mxu0 0.0
    %1505 = vmatprep.subr.mxu0 0.0
    %1506 = vmatpush1.msra.mxu0 0.0
    %1507 = vmatprep.subr.mxu0 0.0
    %1508 = vmatpush1.msra.mxu0 0.0
    %1509 = vmatprep.subr.mxu0 0.0
    %1510 = vmatpush1.msra.mxu0 0.0
    %1511 = vmatprep.subr.mxu0 0.0
    %1512 = vmatpush1.msra.mxu0 0.0
    %1513 = vmatprep.subr.mxu0 0.0
    %1514 = vmatpush1.msra.mxu0 0.0
    %1515 = vmatprep.subr.mxu0 0.0
    %1516 = vmatpush1.msra.mxu0 0.0
    %1517 = vmatprep.subr.mxu0 0.0
    %1518 = vmatpush1.msra.mxu0 0.0
    %1519 = vmatprep.subr.mxu0 0.0
    %1520 = vmatpush1.msra.mxu0 0.0
    %1521 = vmatprep.subr.mxu0 0.0
    %1522 = vmatpush1.msra.mxu0 0.0
    %1523 = vmatprep.subr.mxu0 0.0
    %1524 = vmatpush1.msra.mxu0 0.0
    %1525 = vmatprep.subr.mxu0 0.0
    %1526 = vmatpush1.msra.mxu0 0.0
    %1527 = vmatprep.subr.mxu0 0.0
    %1528 = vmatpush1.msra.mxu0 0.0
    %1529 = vmatprep.subr.mxu0 0.0
    %1530 = vmatpush1.msra.mxu0 0.0
    %1531 = vmatprep.subr.mxu0 0.0
    %1532 = vmatpush1.msra.mxu0 0.0
    %1533 = vmatprep.subr.mxu0 0.0
    %1534 = vmatpush1.msra.mxu0 0.0
    %1535 = vmatprep.subr.mxu0 0.0
    %1536 = vmatpush1.msra.mxu0 0.0
    %1537 = vmatprep.subr.mxu0 0.0
    %1538 = vmatpush1.msra.mxu0 0.0
    %1539 = vmatprep.subr.mxu0 0.0
    %1540 = vmatpush1.msra.mxu0 0.0
    %1541 = vmatprep.subr.mxu0 0.0
    %1542 = vmatpush1.msra.mxu0 0.0
    %1543 = vmatprep.subr.mxu0 0.0
    %1544 = vmatpush1.msra.mxu0 0.0
    %1545 = vmatprep.subr.mxu0 0.0
    %1546 = vmatpush1.msra.mxu0 0.0
    %1547 = vmatprep.subr.mxu0 0.0
    %1548 = vmatpush1.msra.mxu0 0.0
    %1549 = vmatprep.subr.mxu0 0.0
    %1550 = vmatpush1.msra.mxu0 0.0
    %1551 = vmatprep.subr.mxu0 0.0
    %1552 = vmatpush1.msra.mxu0 0.0
    %1553 = vmatprep.subr.mxu0 0.0
    %1554 = vmatpush1.msra.mxu0 0.0
    %1555 = vmatprep.subr.mxu0 0.0
    %1556 = vmatpush1.msra.mxu0 0.0
    %1557 = vmatprep.subr.mxu0 0.0
    %1558 = vmatpush1.msra.mxu0 0.0
    %1559 = vmatprep.mubr.f32.mxu0 0.0
    %1560 = vmatmul.mubr.f32.gmra.mrb[0].mxu0 %v1493
    %v1561 = vpop.f32.mrb[0].mxu0
    %v1562 = vadd.f32 0.0, %v1561
    %v1563 = vpop.f32.mrb[0].mxu0
    %v1564 = vadd.f32 0.0, %v1563
    %1565 = vdwg.mxu0
    %1566 = vmatprep.subr.mxu0 %v856
    %1567 = vmatpush1.msra.mxu0 %v855
    %1568 = vmatprep.subr.mxu0 %v860
    %1569 = vmatpush1.msra.mxu0 %v859
    %1570 = vmatprep.subr.mxu0 %v864
    %1571 = vmatpush1.msra.mxu0 %v863
    %1572 = vmatprep.subr.mxu0 %v868
    %1573 = vmatpush1.msra.mxu0 %v867
    %1574 = vmatprep.subr.mxu0 0.0
    %1575 = vmatpush1.msra.mxu0 0.0
    %1576 = vmatprep.subr.mxu0 0.0
    %1577 = vmatpush1.msra.mxu0 0.0
    %1578 = vmatprep.subr.mxu0 0.0
    %1579 = vmatpush1.msra.mxu0 0.0
    %1580 = vmatprep.subr.mxu0 0.0
    %1581 = vmatpush1.msra.mxu0 0.0
    %1582 = vmatprep.subr.mxu0 0.0
    %1583 = vmatpush1.msra.mxu0 0.0
    %1584 = vmatprep.subr.mxu0 0.0
    %1585 = vmatpush1.msra.mxu0 0.0
    %1586 = vmatprep.subr.mxu0 0.0
    %1587 = vmatpush1.msra.mxu0 0.0
    %1588 = vmatprep.subr.mxu0 0.0
    %1589 = vmatpush1.msra.mxu0 0.0
    %1590 = vmatprep.subr.mxu0 0.0
    %1591 = vmatpush1.msra.mxu0 0.0
    %1592 = vmatprep.subr.mxu0 0.0
    %1593 = vmatpush1.msra.mxu0 0.0
    %1594 = vmatprep.subr.mxu0 0.0
    %1595 = vmatpush1.msra.mxu0 0.0
    %1596 = vmatprep.subr.mxu0 0.0
    %1597 = vmatpush1.msra.mxu0 0.0
    %1598 = vmatprep.subr.mxu0 0.0
    %1599 = vmatpush1.msra.mxu0 0.0
    %1600 = vmatprep.subr.mxu0 0.0
    %1601 = vmatpush1.msra.mxu0 0.0
    %1602 = vmatprep.subr.mxu0 0.0
    %1603 = vmatpush1.msra.mxu0 0.0
    %1604 = vmatprep.subr.mxu0 0.0
    %1605 = vmatpush1.msra.mxu0 0.0
    %1606 = vmatprep.subr.mxu0 0.0
    %1607 = vmatpush1.msra.mxu0 0.0
    %1608 = vmatprep.subr.mxu0 0.0
    %1609 = vmatpush1.msra.mxu0 0.0
    %1610 = vmatprep.subr.mxu0 0.0
    %1611 = vmatpush1.msra.mxu0 0.0
    %1612 = vmatprep.subr.mxu0 0.0
    %1613 = vmatpush1.msra.mxu0 0.0
    %1614 = vmatprep.subr.mxu0 0.0
    %1615 = vmatpush1.msra.mxu0 0.0
    %1616 = vmatprep.subr.mxu0 0.0
    %1617 = vmatpush1.msra.mxu0 0.0
    %1618 = vmatprep.subr.mxu0 0.0
    %1619 = vmatpush1.msra.mxu0 0.0
    %1620 = vmatprep.subr.mxu0 0.0
    %1621 = vmatpush1.msra.mxu0 0.0
    %1622 = vmatprep.subr.mxu0 0.0
    %1623 = vmatpush1.msra.mxu0 0.0
    %1624 = vmatprep.subr.mxu0 0.0
    %1625 = vmatpush1.msra.mxu0 0.0
    %1626 = vmatprep.subr.mxu0 0.0
    %1627 = vmatpush1.msra.mxu0 0.0
    %1628 = vmatprep.subr.mxu0 0.0
    %1629 = vmatpush1.msra.mxu0 0.0
    %1630 = vmatprep.mubr.f32.mxu0 0.0
    %1631 = vmatmul.mubr.f32.gmra.mrb[0].mxu0 %v1493
    %v1632 = vpop.f32.mrb[0].mxu0
    %v1633 = vadd.f32 0.0, %v1632
    %v1634 = vpop.f32.mrb[0].mxu0
    %v1635 = vadd.f32 0.0, %v1634
    %1636 = vdwg.mxu0
    %v1641 = vcombine.low %v1562, %v1564
    %v1642 = vcombine.low %v1633, %v1635
    %v1644 = vunpack.c.l.s4 1966171168
    %v1645 = vunpack.c.0.s8 %v1644
    %v1646 = vlaneseq
    %v1647 = vshrl.u32 %v1646, 7
    %v1648 = vsub.s32 %v1645, %v1647
    %v1649 = vrot.slane %v1641, %v1648
    %v1651 = vunpack.c.l.s4 1966171168
    %v1652 = vunpack.c.0.s8 %v1651
    %v1653 = vlaneseq
    %v1654 = vshrl.u32 %v1653, 7
    %v1655 = vsub.s32 %v1652, %v1654
    %v1656 = vrot.slane %v1642, %v1655
    %v1657 = vcombine.low %v1649, %v1656
    %v1659 = vunpack.c.l.s4 1966171168
    %v1660 = vunpack.c.0.s8 %v1659
    %v1661 = vlaneseq
    %v1662 = vshrl.u32 %v1661, 7
    %v1663 = vsub.s32 %v1660, %v1662
    %v1664 = vrot.slane %v1657, %v1663
    %v1666 = vadd.f32 %v1491, %v1664
    %v1667 = vxor.u32 %v1666, 2147483648
    %v1668 = vmul.f32 %v1667, 1.442695
    %v1669 = vpow.pop %v1668
    %v1670 = vadd.f32 %v1669, 1.0
    %v1671 = vrcp.pop %v1670
    %v1672 = vmul.f32 1.0, %v1671
    %v1674 = vrot.slane %v1666, 1
    %v1676 = vxor.u32 %v1674, 2147483648
    %v1677 = vmul.f32 %v1676, 1.442695
    %v1678 = vpow.pop %v1677
    %v1679 = vadd.f32 %v1678, 1.0
    %v1680 = vrcp.pop %v1679
    %v1681 = vmul.f32 1.0, %v1680
    %v1682 = vrot.slane %v1666, 2
    %v1684 = vtanh.pop %v1682
    %v1685 = vrot.slane %v1666, 3
    %v1687 = vxor.u32 %v1685, 2147483648
    %v1688 = vmul.f32 %v1687, 1.442695
    %v1689 = vpow.pop %v1688
    %v1690 = vadd.f32 %v1689, 1.0
    %v1691 = vrcp.pop %v1690
    %v1692 = vmul.f32 1.0, %v1691
    %v1693 = vmul.f32 %v1681, %v1488
    %v1694 = vmul.f32 %v1672, %v1684
    %v1695 = vadd.f32 %v1693, %v1694
    %v1696 = vtanh.pop %v1695
    %v1697 = vmul.f32 %v1692, %v1696
    %v1698 = vld [vmem:[%s556] ss:$8 sm:$0xf]
    %v1700 = vsel %vm870, %v1697, 0
    %1702 = vmatprep.subr.mxu0 %v854
    %1703 = vmatpush1.msra.mxu0 %v853
    %1704 = vmatprep.subr.mxu0 %v858
    %1705 = vmatpush1.msra.mxu0 %v857
    %1706 = vmatprep.subr.mxu0 %v862
    %1707 = vmatpush1.msra.mxu0 %v861
    %1708 = vmatprep.subr.mxu0 %v866
    %1709 = vmatpush1.msra.mxu0 %v865
    %1710 = vmatprep.subr.mxu0 0.0
    %1711 = vmatpush1.msra.mxu0 0.0
    %1712 = vmatprep.subr.mxu0 0.0
    %1713 = vmatpush1.msra.mxu0 0.0
    %1714 = vmatprep.subr.mxu0 0.0
    %1715 = vmatpush1.msra.mxu0 0.0
    %1716 = vmatprep.subr.mxu0 0.0
    %1717 = vmatpush1.msra.mxu0 0.0
    %1718 = vmatprep.subr.mxu0 0.0
    %1719 = vmatpush1.msra.mxu0 0.0
    %1720 = vmatprep.subr.mxu0 0.0
    %1721 = vmatpush1.msra.mxu0 0.0
    %1722 = vmatprep.subr.mxu0 0.0
    %1723 = vmatpush1.msra.mxu0 0.0
    %1724 = vmatprep.subr.mxu0 0.0
    %1725 = vmatpush1.msra.mxu0 0.0
    %1726 = vmatprep.subr.mxu0 0.0
    %1727 = vmatpush1.msra.mxu0 0.0
    %1728 = vmatprep.subr.mxu0 0.0
    %1729 = vmatpush1.msra.mxu0 0.0
    %1730 = vmatprep.subr.mxu0 0.0
    %1731 = vmatpush1.msra.mxu0 0.0
    %1732 = vmatprep.subr.mxu0 0.0
    %1733 = vmatpush1.msra.mxu0 0.0
    %1734 = vmatprep.subr.mxu0 0.0
    %1735 = vmatpush1.msra.mxu0 0.0
    %1736 = vmatprep.subr.mxu0 0.0
    %1737 = vmatpush1.msra.mxu0 0.0
    %1738 = vmatprep.subr.mxu0 0.0
    %1739 = vmatpush1.msra.mxu0 0.0
    %1740 = vmatprep.subr.mxu0 0.0
    %1741 = vmatpush1.msra.mxu0 0.0
    %1742 = vmatprep.subr.mxu0 0.0
    %1743 = vmatpush1.msra.mxu0 0.0
    %1744 = vmatprep.subr.mxu0 0.0
    %1745 = vmatpush1.msra.mxu0 0.0
    %1746 = vmatprep.subr.mxu0 0.0
    %1747 = vmatpush1.msra.mxu0 0.0
    %1748 = vmatprep.subr.mxu0 0.0
    %1749 = vmatpush1.msra.mxu0 0.0
    %1750 = vmatprep.subr.mxu0 0.0
    %1751 = vmatpush1.msra.mxu0 0.0
    %1752 = vmatprep.subr.mxu0 0.0
    %1753 = vmatpush1.msra.mxu0 0.0
    %1754 = vmatprep.subr.mxu0 0.0
    %1755 = vmatpush1.msra.mxu0 0.0
    %1756 = vmatprep.subr.mxu0 0.0
    %1757 = vmatpush1.msra.mxu0 0.0
    %1758 = vmatprep.subr.mxu0 0.0
    %1759 = vmatpush1.msra.mxu0 0.0
    %1760 = vmatprep.subr.mxu0 0.0
    %1761 = vmatpush1.msra.mxu0 0.0
    %1762 = vmatprep.subr.mxu0 0.0
    %1763 = vmatpush1.msra.mxu0 0.0
    %1764 = vmatprep.subr.mxu0 0.0
    %1765 = vmatpush1.msra.mxu0 0.0
    %1766 = vmatprep.mubr.f32.mxu0 0.0
    %1767 = vmatmul.mubr.f32.gmra.mrb[0].mxu0 %v1700
    %v1768 = vpop.f32.mrb[0].mxu0
    %v1769 = vadd.f32 0.0, %v1768
    %v1770 = vpop.f32.mrb[0].mxu0
    %v1771 = vadd.f32 0.0, %v1770
    %1772 = vdwg.mxu0
    %1773 = vmatprep.subr.mxu0 %v856
    %1774 = vmatpush1.msra.mxu0 %v855
    %1775 = vmatprep.subr.mxu0 %v860
    %1776 = vmatpush1.msra.mxu0 %v859
    %1777 = vmatprep.subr.mxu0 %v864
    %1778 = vmatpush1.msra.mxu0 %v863
    %1779 = vmatprep.subr.mxu0 %v868
    %1780 = vmatpush1.msra.mxu0 %v867
    %1781 = vmatprep.subr.mxu0 0.0
    %1782 = vmatpush1.msra.mxu0 0.0
    %1783 = vmatprep.subr.mxu0 0.0
    %1784 = vmatpush1.msra.mxu0 0.0
    %1785 = vmatprep.subr.mxu0 0.0
    %1786 = vmatpush1.msra.mxu0 0.0
    %1787 = vmatprep.subr.mxu0 0.0
    %1788 = vmatpush1.msra.mxu0 0.0
    %1789 = vmatprep.subr.mxu0 0.0
    %1790 = vmatpush1.msra.mxu0 0.0
    %1791 = vmatprep.subr.mxu0 0.0
    %1792 = vmatpush1.msra.mxu0 0.0
    %1793 = vmatprep.subr.mxu0 0.0
    %1794 = vmatpush1.msra.mxu0 0.0
    %1795 = vmatprep.subr.mxu0 0.0
    %1796 = vmatpush1.msra.mxu0 0.0
    %1797 = vmatprep.subr.mxu0 0.0
    %1798 = vmatpush1.msra.mxu0 0.0
    %1799 = vmatprep.subr.mxu0 0.0
    %1800 = vmatpush1.msra.mxu0 0.0
    %1801 = vmatprep.subr.mxu0 0.0
    %1802 = vmatpush1.msra.mxu0 0.0
    %1803 = vmatprep.subr.mxu0 0.0
    %1804 = vmatpush1.msra.mxu0 0.0
    %1805 = vmatprep.subr.mxu0 0.0
    %1806 = vmatpush1.msra.mxu0 0.0
    %1807 = vmatprep.subr.mxu0 0.0
    %1808 = vmatpush1.msra.mxu0 0.0
    %1809 = vmatprep.subr.mxu0 0.0
    %1810 = vmatpush1.msra.mxu0 0.0
    %1811 = vmatprep.subr.mxu0 0.0
    %1812 = vmatpush1.msra.mxu0 0.0
    %1813 = vmatprep.subr.mxu0 0.0
    %1814 = vmatpush1.msra.mxu0 0.0
    %1815 = vmatprep.subr.mxu0 0.0
    %1816 = vmatpush1.msra.mxu0 0.0
    %1817 = vmatprep.subr.mxu0 0.0
    %1818 = vmatpush1.msra.mxu0 0.0
    %1819 = vmatprep.subr.mxu0 0.0
    %1820 = vmatpush1.msra.mxu0 0.0
    %1821 = vmatprep.subr.mxu0 0.0
    %1822 = vmatpush1.msra.mxu0 0.0
    %1823 = vmatprep.subr.mxu0 0.0
    %1824 = vmatpush1.msra.mxu0 0.0
    %1825 = vmatprep.subr.mxu0 0.0
    %1826 = vmatpush1.msra.mxu0 0.0
    %1827 = vmatprep.subr.mxu0 0.0
    %1828 = vmatpush1.msra.mxu0 0.0
    %1829 = vmatprep.subr.mxu0 0.0
    %1830 = vmatpush1.msra.mxu0 0.0
    %1831 = vmatprep.subr.mxu0 0.0
    %1832 = vmatpush1.msra.mxu0 0.0
    %1833 = vmatprep.subr.mxu0 0.0
    %1834 = vmatpush1.msra.mxu0 0.0
    %1835 = vmatprep.subr.mxu0 0.0
    %1836 = vmatpush1.msra.mxu0 0.0
    %1837 = vmatprep.mubr.f32.mxu0 0.0
    %1838 = vmatmul.mubr.f32.gmra.mrb[0].mxu0 %v1700
    %v1839 = vpop.f32.mrb[0].mxu0
    %v1840 = vadd.f32 0.0, %v1839
    %v1841 = vpop.f32.mrb[0].mxu0
    %v1842 = vadd.f32 0.0, %v1841
    %1843 = vdwg.mxu0
    %v1848 = vcombine.low %v1769, %v1771
    %v1849 = vcombine.low %v1840, %v1842
    %v1851 = vunpack.c.l.s4 1966171168
    %v1852 = vunpack.c.0.s8 %v1851
    %v1853 = vlaneseq
    %v1854 = vshrl.u32 %v1853, 7
    %v1855 = vsub.s32 %v1852, %v1854
    %v1856 = vrot.slane %v1848, %v1855
    %v1858 = vunpack.c.l.s4 1966171168
    %v1859 = vunpack.c.0.s8 %v1858
    %v1860 = vlaneseq
    %v1861 = vshrl.u32 %v1860, 7
    %v1862 = vsub.s32 %v1859, %v1861
    %v1863 = vrot.slane %v1849, %v1862
    %v1864 = vcombine.low %v1856, %v1863
    %v1866 = vunpack.c.l.s4 1966171168
    %v1867 = vunpack.c.0.s8 %v1866
    %v1868 = vlaneseq
    %v1869 = vshrl.u32 %v1868, 7
    %v1870 = vsub.s32 %v1867, %v1869
    %v1871 = vrot.slane %v1864, %v1870
    %v1873 = vadd.f32 %v1698, %v1871
    %v1874 = vxor.u32 %v1873, 2147483648
    %v1875 = vmul.f32 %v1874, 1.442695
    %v1876 = vpow.pop %v1875
    %v1877 = vadd.f32 %v1876, 1.0
    %v1878 = vrcp.pop %v1877
    %v1879 = vmul.f32 1.0, %v1878
    %v1881 = vrot.slane %v1873, 1
    %v1883 = vxor.u32 %v1881, 2147483648
    %v1884 = vmul.f32 %v1883, 1.442695
    %v1885 = vpow.pop %v1884
    %v1886 = vadd.f32 %v1885, 1.0
    %v1887 = vrcp.pop %v1886
    %v1888 = vmul.f32 1.0, %v1887
    %v1889 = vrot.slane %v1873, 2
    %v1891 = vtanh.pop %v1889
    %v1892 = vrot.slane %v1873, 3
    %v1894 = vxor.u32 %v1892, 2147483648
    %v1895 = vmul.f32 %v1894, 1.442695
    %v1896 = vpow.pop %v1895
    %v1897 = vadd.f32 %v1896, 1.0
    %v1898 = vrcp.pop %v1897
    %v1899 = vmul.f32 1.0, %v1898
    %v1900 = vmul.f32 %v1888, %v1695
    %v1901 = vmul.f32 %v1879, %v1891
    %v1902 = vadd.f32 %v1900, %v1901
    %v1903 = vtanh.pop %v1902
    %v1904 = vmul.f32 %v1899, %v1903
    %v1905 = vld [vmem:[%s654] ss:$8 sm:$0xf]
    %v1907 = vsel %vm870, %v1904, 0
    %1909 = vmatprep.subr.mxu0 %v854
    %1910 = vmatpush1.msra.mxu0 %v853
    %1911 = vmatprep.subr.mxu0 %v858
    %1912 = vmatpush1.msra.mxu0 %v857
    %1913 = vmatprep.subr.mxu0 %v862
    %1914 = vmatpush1.msra.mxu0 %v861
    %1915 = vmatprep.subr.mxu0 %v866
    %1916 = vmatpush1.msra.mxu0 %v865
    %1917 = vmatprep.subr.mxu0 0.0
    %1918 = vmatpush1.msra.mxu0 0.0
    %1919 = vmatprep.subr.mxu0 0.0
    %1920 = vmatpush1.msra.mxu0 0.0
    %1921 = vmatprep.subr.mxu0 0.0
    %1922 = vmatpush1.msra.mxu0 0.0
    %1923 = vmatprep.subr.mxu0 0.0
    %1924 = vmatpush1.msra.mxu0 0.0
    %1925 = vmatprep.subr.mxu0 0.0
    %1926 = vmatpush1.msra.mxu0 0.0
    %1927 = vmatprep.subr.mxu0 0.0
    %1928 = vmatpush1.msra.mxu0 0.0
    %1929 = vmatprep.subr.mxu0 0.0
    %1930 = vmatpush1.msra.mxu0 0.0
    %1931 = vmatprep.subr.mxu0 0.0
    %1932 = vmatpush1.msra.mxu0 0.0
    %1933 = vmatprep.subr.mxu0 0.0
    %1934 = vmatpush1.msra.mxu0 0.0
    %1935 = vmatprep.subr.mxu0 0.0
    %1936 = vmatpush1.msra.mxu0 0.0
    %1937 = vmatprep.subr.mxu0 0.0
    %1938 = vmatpush1.msra.mxu0 0.0
    %1939 = vmatprep.subr.mxu0 0.0
    %1940 = vmatpush1.msra.mxu0 0.0
    %1941 = vmatprep.subr.mxu0 0.0
    %1942 = vmatpush1.msra.mxu0 0.0
    %1943 = vmatprep.subr.mxu0 0.0
    %1944 = vmatpush1.msra.mxu0 0.0
    %1945 = vmatprep.subr.mxu0 0.0
    %1946 = vmatpush1.msra.mxu0 0.0
    %1947 = vmatprep.subr.mxu0 0.0
    %1948 = vmatpush1.msra.mxu0 0.0
    %1949 = vmatprep.subr.mxu0 0.0
    %1950 = vmatpush1.msra.mxu0 0.0
    %1951 = vmatprep.subr.mxu0 0.0
    %1952 = vmatpush1.msra.mxu0 0.0
    %1953 = vmatprep.subr.mxu0 0.0
    %1954 = vmatpush1.msra.mxu0 0.0
    %1955 = vmatprep.subr.mxu0 0.0
    %1956 = vmatpush1.msra.mxu0 0.0
    %1957 = vmatprep.subr.mxu0 0.0
    %1958 = vmatpush1.msra.mxu0 0.0
    %1959 = vmatprep.subr.mxu0 0.0
    %1960 = vmatpush1.msra.mxu0 0.0
    %1961 = vmatprep.subr.mxu0 0.0
    %1962 = vmatpush1.msra.mxu0 0.0
    %1963 = vmatprep.subr.mxu0 0.0
    %1964 = vmatpush1.msra.mxu0 0.0
    %1965 = vmatprep.subr.mxu0 0.0
    %1966 = vmatpush1.msra.mxu0 0.0
    %1967 = vmatprep.subr.mxu0 0.0
    %1968 = vmatpush1.msra.mxu0 0.0
    %1969 = vmatprep.subr.mxu0 0.0
    %1970 = vmatpush1.msra.mxu0 0.0
    %1971 = vmatprep.subr.mxu0 0.0
    %1972 = vmatpush1.msra.mxu0 0.0
    %1973 = vmatprep.mubr.f32.mxu0 0.0
    %1974 = vmatmul.mubr.f32.gmra.mrb[0].mxu0 %v1907
    %v1975 = vpop.f32.mrb[0].mxu0
    %v1976 = vadd.f32 0.0, %v1975
    %v1977 = vpop.f32.mrb[0].mxu0
    %v1978 = vadd.f32 0.0, %v1977
    %1979 = vdwg.mxu0
    %1980 = vmatprep.subr.mxu0 %v856
    %1981 = vmatpush1.msra.mxu0 %v855
    %1982 = vmatprep.subr.mxu0 %v860
    %1983 = vmatpush1.msra.mxu0 %v859
    %1984 = vmatprep.subr.mxu0 %v864
    %1985 = vmatpush1.msra.mxu0 %v863
    %1986 = vmatprep.subr.mxu0 %v868
    %1987 = vmatpush1.msra.mxu0 %v867
    %1988 = vmatprep.subr.mxu0 0.0
    %1989 = vmatpush1.msra.mxu0 0.0
    %1990 = vmatprep.subr.mxu0 0.0
    %1991 = vmatpush1.msra.mxu0 0.0
    %1992 = vmatprep.subr.mxu0 0.0
    %1993 = vmatpush1.msra.mxu0 0.0
    %1994 = vmatprep.subr.mxu0 0.0
    %1995 = vmatpush1.msra.mxu0 0.0
    %1996 = vmatprep.subr.mxu0 0.0
    %1997 = vmatpush1.msra.mxu0 0.0
    %1998 = vmatprep.subr.mxu0 0.0
    %1999 = vmatpush1.msra.mxu0 0.0
    %2000 = vmatprep.subr.mxu0 0.0
    %2001 = vmatpush1.msra.mxu0 0.0
    %2002 = vmatprep.subr.mxu0 0.0
    %2003 = vmatpush1.msra.mxu0 0.0
    %2004 = vmatprep.subr.mxu0 0.0
    %2005 = vmatpush1.msra.mxu0 0.0
    %2006 = vmatprep.subr.mxu0 0.0
    %2007 = vmatpush1.msra.mxu0 0.0
    %2008 = vmatprep.subr.mxu0 0.0
    %2009 = vmatpush1.msra.mxu0 0.0
    %2010 = vmatprep.subr.mxu0 0.0
    %2011 = vmatpush1.msra.mxu0 0.0
    %2012 = vmatprep.subr.mxu0 0.0
    %2013 = vmatpush1.msra.mxu0 0.0
    %2014 = vmatprep.subr.mxu0 0.0
    %2015 = vmatpush1.msra.mxu0 0.0
    %2016 = vmatprep.subr.mxu0 0.0
    %2017 = vmatpush1.msra.mxu0 0.0
    %2018 = vmatprep.subr.mxu0 0.0
    %2019 = vmatpush1.msra.mxu0 0.0
    %2020 = vmatprep.subr.mxu0 0.0
    %2021 = vmatpush1.msra.mxu0 0.0
    %2022 = vmatprep.subr.mxu0 0.0
    %2023 = vmatpush1.msra.mxu0 0.0
    %2024 = vmatprep.subr.mxu0 0.0
    %2025 = vmatpush1.msra.mxu0 0.0
    %2026 = vmatprep.subr.mxu0 0.0
    %2027 = vmatpush1.msra.mxu0 0.0
    %2028 = vmatprep.subr.mxu0 0.0
    %2029 = vmatpush1.msra.mxu0 0.0
    %2030 = vmatprep.subr.mxu0 0.0
    %2031 = vmatpush1.msra.mxu0 0.0
    %2032 = vmatprep.subr.mxu0 0.0
    %2033 = vmatpush1.msra.mxu0 0.0
    %2034 = vmatprep.subr.mxu0 0.0
    %2035 = vmatpush1.msra.mxu0 0.0
    %2036 = vmatprep.subr.mxu0 0.0
    %2037 = vmatpush1.msra.mxu0 0.0
    %2038 = vmatprep.subr.mxu0 0.0
    %2039 = vmatpush1.msra.mxu0 0.0
    %2040 = vmatprep.subr.mxu0 0.0
    %2041 = vmatpush1.msra.mxu0 0.0
    %2042 = vmatprep.subr.mxu0 0.0
    %2043 = vmatpush1.msra.mxu0 0.0
    %2044 = vmatprep.mubr.f32.mxu0 0.0
    %2045 = vmatmul.mubr.f32.gmra.mrb[0].mxu0 %v1907
    %v2046 = vpop.f32.mrb[0].mxu0
    %v2047 = vadd.f32 0.0, %v2046
    %v2048 = vpop.f32.mrb[0].mxu0
    %v2049 = vadd.f32 0.0, %v2048
    %2050 = vdwg.mxu0
    %v2055 = vcombine.low %v1976, %v1978
    %v2056 = vcombine.low %v2047, %v2049
    %v2058 = vunpack.c.l.s4 1966171168
    %v2059 = vunpack.c.0.s8 %v2058
    %v2060 = vlaneseq
    %v2061 = vshrl.u32 %v2060, 7
    %v2062 = vsub.s32 %v2059, %v2061
    %v2063 = vrot.slane %v2055, %v2062
    %v2065 = vunpack.c.l.s4 1966171168
    %v2066 = vunpack.c.0.s8 %v2065
    %v2067 = vlaneseq
    %v2068 = vshrl.u32 %v2067, 7
    %v2069 = vsub.s32 %v2066, %v2068
    %v2070 = vrot.slane %v2056, %v2069
    %v2071 = vcombine.low %v2063, %v2070
    %v2073 = vunpack.c.l.s4 1966171168
    %v2074 = vunpack.c.0.s8 %v2073
    %v2075 = vlaneseq
    %v2076 = vshrl.u32 %v2075, 7
    %v2077 = vsub.s32 %v2074, %v2076
    %v2078 = vrot.slane %v2071, %v2077
    %v2080 = vadd.f32 %v1905, %v2078
    %v2081 = vxor.u32 %v2080, 2147483648
    %v2082 = vmul.f32 %v2081, 1.442695
    %v2083 = vpow.pop %v2082
    %v2084 = vadd.f32 %v2083, 1.0
    %v2085 = vrcp.pop %v2084
    %v2086 = vmul.f32 1.0, %v2085
    %v2088 = vrot.slane %v2080, 1
    %v2090 = vxor.u32 %v2088, 2147483648
    %v2091 = vmul.f32 %v2090, 1.442695
    %v2092 = vpow.pop %v2091
    %v2093 = vadd.f32 %v2092, 1.0
    %v2094 = vrcp.pop %v2093
    %v2095 = vmul.f32 1.0, %v2094
    %v2096 = vrot.slane %v2080, 2
    %v2098 = vtanh.pop %v2096
    %v2099 = vrot.slane %v2080, 3
    %v2101 = vxor.u32 %v2099, 2147483648
    %v2102 = vmul.f32 %v2101, 1.442695
    %v2103 = vpow.pop %v2102
    %v2104 = vadd.f32 %v2103, 1.0
    %v2105 = vrcp.pop %v2104
    %v2106 = vmul.f32 1.0, %v2105
    %v2107 = vmul.f32 %v2095, %v1902
    %v2108 = vmul.f32 %v2086, %v2098
    %v2109 = vadd.f32 %v2107, %v2108
    %v2110 = vtanh.pop %v2109
    %v2111 = vmul.f32 %v2106, %v2110
    %v2112 = vld [vmem:[%s752] ss:$8 sm:$0xf]
    %v2114 = vsel %vm870, %v2111, 0
    %2116 = vmatprep.subr.mxu0 %v854
    %2117 = vmatpush1.msra.mxu0 %v853
    %2118 = vmatprep.subr.mxu0 %v858
    %2119 = vmatpush1.msra.mxu0 %v857
    %2120 = vmatprep.subr.mxu0 %v862
    %2121 = vmatpush1.msra.mxu0 %v861
    %2122 = vmatprep.subr.mxu0 %v866
    %2123 = vmatpush1.msra.mxu0 %v865
    %2124 = vmatprep.subr.mxu0 0.0
    %2125 = vmatpush1.msra.mxu0 0.0
    %2126 = vmatprep.subr.mxu0 0.0
    %2127 = vmatpush1.msra.mxu0 0.0
    %2128 = vmatprep.subr.mxu0 0.0
    %2129 = vmatpush1.msra.mxu0 0.0
    %2130 = vmatprep.subr.mxu0 0.0
    %2131 = vmatpush1.msra.mxu0 0.0
    %2132 = vmatprep.subr.mxu0 0.0
    %2133 = vmatpush1.msra.mxu0 0.0
    %2134 = vmatprep.subr.mxu0 0.0
    %2135 = vmatpush1.msra.mxu0 0.0
    %2136 = vmatprep.subr.mxu0 0.0
    %2137 = vmatpush1.msra.mxu0 0.0
    %2138 = vmatprep.subr.mxu0 0.0
    %2139 = vmatpush1.msra.mxu0 0.0
    %2140 = vmatprep.subr.mxu0 0.0
    %2141 = vmatpush1.msra.mxu0 0.0
    %2142 = vmatprep.subr.mxu0 0.0
    %2143 = vmatpush1.msra.mxu0 0.0
    %2144 = vmatprep.subr.mxu0 0.0
    %2145 = vmatpush1.msra.mxu0 0.0
    %2146 = vmatprep.subr.mxu0 0.0
    %2147 = vmatpush1.msra.mxu0 0.0
    %2148 = vmatprep.subr.mxu0 0.0
    %2149 = vmatpush1.msra.mxu0 0.0
    %2150 = vmatprep.subr.mxu0 0.0
    %2151 = vmatpush1.msra.mxu0 0.0
    %2152 = vmatprep.subr.mxu0 0.0
    %2153 = vmatpush1.msra.mxu0 0.0
    %2154 = vmatprep.subr.mxu0 0.0
    %2155 = vmatpush1.msra.mxu0 0.0
    %2156 = vmatprep.subr.mxu0 0.0
    %2157 = vmatpush1.msra.mxu0 0.0
    %2158 = vmatprep.subr.mxu0 0.0
    %2159 = vmatpush1.msra.mxu0 0.0
    %2160 = vmatprep.subr.mxu0 0.0
    %2161 = vmatpush1.msra.mxu0 0.0
    %2162 = vmatprep.subr.mxu0 0.0
    %2163 = vmatpush1.msra.mxu0 0.0
    %2164 = vmatprep.subr.mxu0 0.0
    %2165 = vmatpush1.msra.mxu0 0.0
    %2166 = vmatprep.subr.mxu0 0.0
    %2167 = vmatpush1.msra.mxu0 0.0
    %2168 = vmatprep.subr.mxu0 0.0
    %2169 = vmatpush1.msra.mxu0 0.0
    %2170 = vmatprep.subr.mxu0 0.0
    %2171 = vmatpush1.msra.mxu0 0.0
    %2172 = vmatprep.subr.mxu0 0.0
    %2173 = vmatpush1.msra.mxu0 0.0
    %2174 = vmatprep.subr.mxu0 0.0
    %2175 = vmatpush1.msra.mxu0 0.0
    %2176 = vmatprep.subr.mxu0 0.0
    %2177 = vmatpush1.msra.mxu0 0.0
    %2178 = vmatprep.subr.mxu0 0.0
    %2179 = vmatpush1.msra.mxu0 0.0
    %2180 = vmatprep.mubr.f32.mxu0 0.0
    %2181 = vmatmul.mubr.f32.gmra.mrb[0].mxu0 %v2114
    %v2182 = vpop.f32.mrb[0].mxu0
    %v2183 = vadd.f32 0.0, %v2182
    %v2184 = vpop.f32.mrb[0].mxu0
    %v2185 = vadd.f32 0.0, %v2184
    %2186 = vdwg.mxu0
    %2187 = vmatprep.subr.mxu0 %v856
    %2188 = vmatpush1.msra.mxu0 %v855
    %2189 = vmatprep.subr.mxu0 %v860
    %2190 = vmatpush1.msra.mxu0 %v859
    %2191 = vmatprep.subr.mxu0 %v864
    %2192 = vmatpush1.msra.mxu0 %v863
    %2193 = vmatprep.subr.mxu0 %v868
    %2194 = vmatpush1.msra.mxu0 %v867
    %2195 = vmatprep.subr.mxu0 0.0
    %2196 = vmatpush1.msra.mxu0 0.0
    %2197 = vmatprep.subr.mxu0 0.0
    %2198 = vmatpush1.msra.mxu0 0.0
    %2199 = vmatprep.subr.mxu0 0.0
    %2200 = vmatpush1.msra.mxu0 0.0
    %2201 = vmatprep.subr.mxu0 0.0
    %2202 = vmatpush1.msra.mxu0 0.0
    %2203 = vmatprep.subr.mxu0 0.0
    %2204 = vmatpush1.msra.mxu0 0.0
    %2205 = vmatprep.subr.mxu0 0.0
    %2206 = vmatpush1.msra.mxu0 0.0
    %2207 = vmatprep.subr.mxu0 0.0
    %2208 = vmatpush1.msra.mxu0 0.0
    %2209 = vmatprep.subr.mxu0 0.0
    %2210 = vmatpush1.msra.mxu0 0.0
    %2211 = vmatprep.subr.mxu0 0.0
    %2212 = vmatpush1.msra.mxu0 0.0
    %2213 = vmatprep.subr.mxu0 0.0
    %2214 = vmatpush1.msra.mxu0 0.0
    %2215 = vmatprep.subr.mxu0 0.0
    %2216 = vmatpush1.msra.mxu0 0.0
    %2217 = vmatprep.subr.mxu0 0.0
    %2218 = vmatpush1.msra.mxu0 0.0
    %2219 = vmatprep.subr.mxu0 0.0
    %2220 = vmatpush1.msra.mxu0 0.0
    %2221 = vmatprep.subr.mxu0 0.0
    %2222 = vmatpush1.msra.mxu0 0.0
    %2223 = vmatprep.subr.mxu0 0.0
    %2224 = vmatpush1.msra.mxu0 0.0
    %2225 = vmatprep.subr.mxu0 0.0
    %2226 = vmatpush1.msra.mxu0 0.0
    %2227 = vmatprep.subr.mxu0 0.0
    %2228 = vmatpush1.msra.mxu0 0.0
    %2229 = vmatprep.subr.mxu0 0.0
    %2230 = vmatpush1.msra.mxu0 0.0
    %2231 = vmatprep.subr.mxu0 0.0
    %2232 = vmatpush1.msra.mxu0 0.0
    %2233 = vmatprep.subr.mxu0 0.0
    %2234 = vmatpush1.msra.mxu0 0.0
    %2235 = vmatprep.subr.mxu0 0.0
    %2236 = vmatpush1.msra.mxu0 0.0
    %2237 = vmatprep.subr.mxu0 0.0
    %2238 = vmatpush1.msra.mxu0 0.0
    %2239 = vmatprep.subr.mxu0 0.0
    %2240 = vmatpush1.msra.mxu0 0.0
    %2241 = vmatprep.subr.mxu0 0.0
    %2242 = vmatpush1.msra.mxu0 0.0
    %2243 = vmatprep.subr.mxu0 0.0
    %2244 = vmatpush1.msra.mxu0 0.0
    %2245 = vmatprep.subr.mxu0 0.0
    %2246 = vmatpush1.msra.mxu0 0.0
    %2247 = vmatprep.subr.mxu0 0.0
    %2248 = vmatpush1.msra.mxu0 0.0
    %2249 = vmatprep.subr.mxu0 0.0
    %2250 = vmatpush1.msra.mxu0 0.0
    %2251 = vmatprep.mubr.f32.mxu0 0.0
    %2252 = vmatmul.mubr.f32.gmra.mrb[0].mxu0 %v2114
    %v2253 = vpop.f32.mrb[0].mxu0
    %v2254 = vadd.f32 0.0, %v2253
    %v2255 = vpop.f32.mrb[0].mxu0
    %v2256 = vadd.f32 0.0, %v2255
    %2257 = vdwg.mxu0
    %v2262 = vcombine.low %v2183, %v2185
    %v2263 = vcombine.low %v2254, %v2256
    %v2265 = vunpack.c.l.s4 1966171168
    %v2266 = vunpack.c.0.s8 %v2265
    %v2267 = vlaneseq
    %v2268 = vshrl.u32 %v2267, 7
    %v2269 = vsub.s32 %v2266, %v2268
    %v2270 = vrot.slane %v2262, %v2269
    %v2272 = vunpack.c.l.s4 1966171168
    %v2273 = vunpack.c.0.s8 %v2272
    %v2274 = vlaneseq
    %v2275 = vshrl.u32 %v2274, 7
    %v2276 = vsub.s32 %v2273, %v2275
    %v2277 = vrot.slane %v2263, %v2276
    %v2278 = vcombine.low %v2270, %v2277
    %v2280 = vunpack.c.l.s4 1966171168
    %v2281 = vunpack.c.0.s8 %v2280
    %v2282 = vlaneseq
    %v2283 = vshrl.u32 %v2282, 7
    %v2284 = vsub.s32 %v2281, %v2283
    %v2285 = vrot.slane %v2278, %v2284
    %v2287 = vadd.f32 %v2112, %v2285
    %v2288 = vxor.u32 %v2287, 2147483648
    %v2289 = vmul.f32 %v2288, 1.442695
    %v2290 = vpow.pop %v2289
    %v2291 = vadd.f32 %v2290, 1.0
    %v2292 = vrcp.pop %v2291
    %v2293 = vmul.f32 1.0, %v2292
    %v2295 = vrot.slane %v2287, 1
    %v2297 = vxor.u32 %v2295, 2147483648
    %v2298 = vmul.f32 %v2297, 1.442695
    %v2299 = vpow.pop %v2298
    %v2300 = vadd.f32 %v2299, 1.0
    %v2301 = vrcp.pop %v2300
    %v2302 = vmul.f32 1.0, %v2301
    %v2303 = vrot.slane %v2287, 2
    %v2305 = vtanh.pop %v2303
    %v2306 = vrot.slane %v2287, 3
    %v2308 = vxor.u32 %v2306, 2147483648
    %v2309 = vmul.f32 %v2308, 1.442695
    %v2310 = vpow.pop %v2309
    %v2311 = vadd.f32 %v2310, 1.0
    %v2312 = vrcp.pop %v2311
    %v2313 = vmul.f32 1.0, %v2312
    %v2314 = vmul.f32 %v2302, %v2109
    %v2315 = vmul.f32 %v2293, %v2305
    %v2316 = vadd.f32 %v2314, %v2315
    %v2317 = vtanh.pop %v2316
    %v2318 = vmul.f32 %v2313, %v2317
    %v2319 = vld [vmem:[%s850] ss:$8 sm:$0xf]
    %v2321 = vsel %vm870, %v2318, 0
    %2323 = vmatprep.subr.mxu0 %v854
    %2324 = vmatpush1.msra.mxu0 %v853
    %2325 = vmatprep.subr.mxu0 %v858
    %2326 = vmatpush1.msra.mxu0 %v857
    %2327 = vmatprep.subr.mxu0 %v862
    %2328 = vmatpush1.msra.mxu0 %v861
    %2329 = vmatprep.subr.mxu0 %v866
    %2330 = vmatpush1.msra.mxu0 %v865
    %2331 = vmatprep.subr.mxu0 0.0
    %2332 = vmatpush1.msra.mxu0 0.0
    %2333 = vmatprep.subr.mxu0 0.0
    %2334 = vmatpush1.msra.mxu0 0.0
    %2335 = vmatprep.subr.mxu0 0.0
    %2336 = vmatpush1.msra.mxu0 0.0
    %2337 = vmatprep.subr.mxu0 0.0
    %2338 = vmatpush1.msra.mxu0 0.0
    %2339 = vmatprep.subr.mxu0 0.0
    %2340 = vmatpush1.msra.mxu0 0.0
    %2341 = vmatprep.subr.mxu0 0.0
    %2342 = vmatpush1.msra.mxu0 0.0
    %2343 = vmatprep.subr.mxu0 0.0
    %2344 = vmatpush1.msra.mxu0 0.0
    %2345 = vmatprep.subr.mxu0 0.0
    %2346 = vmatpush1.msra.mxu0 0.0
    %2347 = vmatprep.subr.mxu0 0.0
    %2348 = vmatpush1.msra.mxu0 0.0
    %2349 = vmatprep.subr.mxu0 0.0
    %2350 = vmatpush1.msra.mxu0 0.0
    %2351 = vmatprep.subr.mxu0 0.0
    %2352 = vmatpush1.msra.mxu0 0.0
    %2353 = vmatprep.subr.mxu0 0.0
    %2354 = vmatpush1.msra.mxu0 0.0
    %2355 = vmatprep.subr.mxu0 0.0
    %2356 = vmatpush1.msra.mxu0 0.0
    %2357 = vmatprep.subr.mxu0 0.0
    %2358 = vmatpush1.msra.mxu0 0.0
    %2359 = vmatprep.subr.mxu0 0.0
    %2360 = vmatpush1.msra.mxu0 0.0
    %2361 = vmatprep.subr.mxu0 0.0
    %2362 = vmatpush1.msra.mxu0 0.0
    %2363 = vmatprep.subr.mxu0 0.0
    %2364 = vmatpush1.msra.mxu0 0.0
    %2365 = vmatprep.subr.mxu0 0.0
    %2366 = vmatpush1.msra.mxu0 0.0
    %2367 = vmatprep.subr.mxu0 0.0
    %2368 = vmatpush1.msra.mxu0 0.0
    %2369 = vmatprep.subr.mxu0 0.0
    %2370 = vmatpush1.msra.mxu0 0.0
    %2371 = vmatprep.subr.mxu0 0.0
    %2372 = vmatpush1.msra.mxu0 0.0
    %2373 = vmatprep.subr.mxu0 0.0
    %2374 = vmatpush1.msra.mxu0 0.0
    %2375 = vmatprep.subr.mxu0 0.0
    %2376 = vmatpush1.msra.mxu0 0.0
    %2377 = vmatprep.subr.mxu0 0.0
    %2378 = vmatpush1.msra.mxu0 0.0
    %2379 = vmatprep.subr.mxu0 0.0
    %2380 = vmatpush1.msra.mxu0 0.0
    %2381 = vmatprep.subr.mxu0 0.0
    %2382 = vmatpush1.msra.mxu0 0.0
    %2383 = vmatprep.subr.mxu0 0.0
    %2384 = vmatpush1.msra.mxu0 0.0
    %2385 = vmatprep.subr.mxu0 0.0
    %2386 = vmatpush1.msra.mxu0 0.0
    %2387 = vmatprep.mubr.f32.mxu0 0.0
    %2388 = vmatmul.mubr.f32.gmra.mrb[0].mxu0 %v2321
    %v2389 = vpop.f32.mrb[0].mxu0
    %v2390 = vadd.f32 0.0, %v2389
    %v2391 = vpop.f32.mrb[0].mxu0
    %v2392 = vadd.f32 0.0, %v2391
    %2393 = vdwg.mxu0
    %2394 = vmatprep.subr.mxu0 %v856
    %2395 = vmatpush1.msra.mxu0 %v855
    %2396 = vmatprep.subr.mxu0 %v860
    %2397 = vmatpush1.msra.mxu0 %v859
    %2398 = vmatprep.subr.mxu0 %v864
    %2399 = vmatpush1.msra.mxu0 %v863
    %2400 = vmatprep.subr.mxu0 %v868
    %2401 = vmatpush1.msra.mxu0 %v867
    %2402 = vmatprep.subr.mxu0 0.0
    %2403 = vmatpush1.msra.mxu0 0.0
    %2404 = vmatprep.subr.mxu0 0.0
    %2405 = vmatpush1.msra.mxu0 0.0
    %2406 = vmatprep.subr.mxu0 0.0
    %2407 = vmatpush1.msra.mxu0 0.0
    %2408 = vmatprep.subr.mxu0 0.0
    %2409 = vmatpush1.msra.mxu0 0.0
    %2410 = vmatprep.subr.mxu0 0.0
    %2411 = vmatpush1.msra.mxu0 0.0
    %2412 = vmatprep.subr.mxu0 0.0
    %2413 = vmatpush1.msra.mxu0 0.0
    %2414 = vmatprep.subr.mxu0 0.0
    %2415 = vmatpush1.msra.mxu0 0.0
    %2416 = vmatprep.subr.mxu0 0.0
    %2417 = vmatpush1.msra.mxu0 0.0
    %2418 = vmatprep.subr.mxu0 0.0
    %2419 = vmatpush1.msra.mxu0 0.0
    %2420 = vmatprep.subr.mxu0 0.0
    %2421 = vmatpush1.msra.mxu0 0.0
    %2422 = vmatprep.subr.mxu0 0.0
    %2423 = vmatpush1.msra.mxu0 0.0
    %2424 = vmatprep.subr.mxu0 0.0
    %2425 = vmatpush1.msra.mxu0 0.0
    %2426 = vmatprep.subr.mxu0 0.0
    %2427 = vmatpush1.msra.mxu0 0.0
    %2428 = vmatprep.subr.mxu0 0.0
    %2429 = vmatpush1.msra.mxu0 0.0
    %2430 = vmatprep.subr.mxu0 0.0
    %2431 = vmatpush1.msra.mxu0 0.0
    %2432 = vmatprep.subr.mxu0 0.0
    %2433 = vmatpush1.msra.mxu0 0.0
    %2434 = vmatprep.subr.mxu0 0.0
    %2435 = vmatpush1.msra.mxu0 0.0
    %2436 = vmatprep.subr.mxu0 0.0
    %2437 = vmatpush1.msra.mxu0 0.0
    %2438 = vmatprep.subr.mxu0 0.0
    %2439 = vmatpush1.msra.mxu0 0.0
    %2440 = vmatprep.subr.mxu0 0.0
    %2441 = vmatpush1.msra.mxu0 0.0
    %2442 = vmatprep.subr.mxu0 0.0
    %2443 = vmatpush1.msra.mxu0 0.0
    %2444 = vmatprep.subr.mxu0 0.0
    %2445 = vmatpush1.msra.mxu0 0.0
    %2446 = vmatprep.subr.mxu0 0.0
    %2447 = vmatpush1.msra.mxu0 0.0
    %2448 = vmatprep.subr.mxu0 0.0
    %2449 = vmatpush1.msra.mxu0 0.0
    %2450 = vmatprep.subr.mxu0 0.0
    %2451 = vmatpush1.msra.mxu0 0.0
    %2452 = vmatprep.subr.mxu0 0.0
    %2453 = vmatpush1.msra.mxu0 0.0
    %2454 = vmatprep.subr.mxu0 0.0
    %2455 = vmatpush1.msra.mxu0 0.0
    %2456 = vmatprep.subr.mxu0 0.0
    %2457 = vmatpush1.msra.mxu0 0.0
    %2458 = vmatprep.mubr.f32.mxu0 0.0
    %2459 = vmatmul.mubr.f32.gmra.mrb[0].mxu0 %v2321
    %v2460 = vpop.f32.mrb[0].mxu0
    %v2461 = vadd.f32 0.0, %v2460
    %v2462 = vpop.f32.mrb[0].mxu0
    %v2463 = vadd.f32 0.0, %v2462
    %2464 = vdwg.mxu0
    %v2469 = vcombine.low %v2390, %v2392
    %v2470 = vcombine.low %v2461, %v2463
    %v2472 = vunpack.c.l.s4 1966171168
    %v2473 = vunpack.c.0.s8 %v2472
    %v2474 = vlaneseq
    %v2475 = vshrl.u32 %v2474, 7
    %v2476 = vsub.s32 %v2473, %v2475
    %v2477 = vrot.slane %v2469, %v2476
    %v2479 = vunpack.c.l.s4 1966171168
    %v2480 = vunpack.c.0.s8 %v2479
    %v2481 = vlaneseq
    %v2482 = vshrl.u32 %v2481, 7
    %v2483 = vsub.s32 %v2480, %v2482
    %v2484 = vrot.slane %v2470, %v2483
    %v2485 = vcombine.low %v2477, %v2484
    %v2487 = vunpack.c.l.s4 1966171168
    %v2488 = vunpack.c.0.s8 %v2487
    %v2489 = vlaneseq
    %v2490 = vshrl.u32 %v2489, 7
    %v2491 = vsub.s32 %v2488, %v2490
    %v2492 = vrot.slane %v2485, %v2491
    %v2494 = vadd.f32 %v2319, %v2492
    %v2495 = vxor.u32 %v2494, 2147483648
    %v2496 = vmul.f32 %v2495, 1.442695
    %v2497 = vpow.pop %v2496
    %v2498 = vadd.f32 %v2497, 1.0
    %v2499 = vrcp.pop %v2498
    %v2500 = vmul.f32 1.0, %v2499
    %v2502 = vrot.slane %v2494, 1
    %v2504 = vxor.u32 %v2502, 2147483648
    %v2505 = vmul.f32 %v2504, 1.442695
    %v2506 = vpow.pop %v2505
    %v2507 = vadd.f32 %v2506, 1.0
    %v2508 = vrcp.pop %v2507
    %v2509 = vmul.f32 1.0, %v2508
    %v2510 = vrot.slane %v2494, 2
    %v2512 = vtanh.pop %v2510
    %v2513 = vrot.slane %v2494, 3
    %v2515 = vxor.u32 %v2513, 2147483648
    %v2516 = vmul.f32 %v2515, 1.442695
    %v2517 = vpow.pop %v2516
    %v2518 = vadd.f32 %v2517, 1.0
    %v2519 = vrcp.pop %v2518
    %v2520 = vmul.f32 1.0, %v2519
    %v2521 = vmul.f32 %v2509, %v2316
    %v2522 = vmul.f32 %v2500, %v2512
    %v2523 = vadd.f32 %v2521, %v2522
    %v2524 = vtanh.pop %v2523
    %v2525 = vmul.f32 %v2520, %v2524
    %v2526 = vlaneseq
    %v2527 = vshrl.u32 %v2526, 7
    %v2528 = vsub.s32 0, %v2527
    %v2529 = vrot.slane %v1283, %v2528
    %v2531 = vlaneseq
    %v2532 = vshrl.u32 %v2531, 7
    %v2533 = vsub.s32 0, %v2532
    %v2534 = vrot.slane %v1490, %v2533
    %v2536 = vlaneseq
    %v2537 = vshrl.u32 %v2536, 7
    %v2538 = vsub.s32 0, %v2537
    %v2539 = vrot.slane %v1697, %v2538
    %v2541 = vlaneseq
    %v2542 = vshrl.u32 %v2541, 7
    %v2543 = vsub.s32 0, %v2542
    %v2544 = vrot.slane %v1904, %v2543
    %v2546 = vlaneseq
    %v2547 = vshrl.u32 %v2546, 7
    %v2548 = vsub.s32 0, %v2547
    %v2549 = vrot.slane %v2111, %v2548
    %v2551 = vlaneseq
    %v2552 = vshrl.u32 %v2551, 7
    %v2553 = vsub.s32 0, %v2552
    %v2554 = vrot.slane %v2318, %v2553
    %v2557 = vlaneseq
    %v2558 = vshrl.u32 %v2557, 7
    %v2559 = vsub.s32 0, %v2558
    %v2560 = vrot.slane %v2525, %v2559
    %vm2562 = vcmask 1040384
    %v2563 = vsel %vm2562, %v1076, %v2529
    %vm2564 = vcmask 1041408
    %v2565 = vsel %vm2564, %v2563, %v2534
    %vm2566 = vcmask 1042432
    %v2567 = vsel %vm2566, %v2565, %v2539
    %vm2568 = vcmask 1043456
    %v2569 = vsel %vm2568, %v2567, %v2544
    %vm2570 = vcmask 1044480
    %v2571 = vsel %vm2570, %v2569, %v2549
    %vm2572 = vcmask 1045504
    %v2573 = vsel %vm2572, %v2571, %v2554
    %vm2574 = vcmask 1046528
    %v2575 = vsel %vm2574, %v2573, %v2560
    %v2576 = vld [vmem:[%s4] sm:$0xff]
    %v2577 = vld [vmem:[%s4 + $0x8] sm:$0xff]
    %v2578 = vld [vmem:[%s4 + $0x10] sm:$0xff]
    %v2579 = vld [vmem:[%s4 + $0x18] sm:$0xff]
    %v2580 = vld [vmem:[%s5] sm:$0x1]
    %v2582 = vlaneseq
    %v2583 = vshrl.u32 %v2582, 7
    %v2584 = vsub.s32 0, %v2583
    %v2585 = vrot.slane %v2580, %v2584
    %v2588 = vsel %vm870, %v2575, 0
    %2590 = vmatprep.subr.mxu0 0.0
    %2591 = vmatpush1.msra.mxu0 %v2576
    %2592 = vmatprep.subr.mxu0 0.0
    %2593 = vmatpush1.msra.mxu0 %v2577
    %2594 = vmatprep.subr.mxu0 0.0
    %2595 = vmatpush1.msra.mxu0 %v2578
    %2596 = vmatprep.subr.mxu0 0.0
    %2597 = vmatpush1.msra.mxu0 %v2579
    %2598 = vmatprep.subr.mxu0 0.0
    %2599 = vmatpush1.msra.mxu0 0.0
    %2600 = vmatprep.subr.mxu0 0.0
    %2601 = vmatpush1.msra.mxu0 0.0
    %2602 = vmatprep.subr.mxu0 0.0
    %2603 = vmatpush1.msra.mxu0 0.0
    %2604 = vmatprep.subr.mxu0 0.0
    %2605 = vmatpush1.msra.mxu0 0.0
    %2606 = vmatprep.subr.mxu0 0.0
    %2607 = vmatpush1.msra.mxu0 0.0
    %2608 = vmatprep.subr.mxu0 0.0
    %2609 = vmatpush1.msra.mxu0 0.0
    %2610 = vmatprep.subr.mxu0 0.0
    %2611 = vmatpush1.msra.mxu0 0.0
    %2612 = vmatprep.subr.mxu0 0.0
    %2613 = vmatpush1.msra.mxu0 0.0
    %2614 = vmatprep.subr.mxu0 0.0
    %2615 = vmatpush1.msra.mxu0 0.0
    %2616 = vmatprep.subr.mxu0 0.0
    %2617 = vmatpush1.msra.mxu0 0.0
    %2618 = vmatprep.subr.mxu0 0.0
    %2619 = vmatpush1.msra.mxu0 0.0
    %2620 = vmatprep.subr.mxu0 0.0
    %2621 = vmatpush1.msra.mxu0 0.0
    %2622 = vmatprep.subr.mxu0 0.0
    %2623 = vmatpush1.msra.mxu0 0.0
    %2624 = vmatprep.subr.mxu0 0.0
    %2625 = vmatpush1.msra.mxu0 0.0
    %2626 = vmatprep.subr.mxu0 0.0
    %2627 = vmatpush1.msra.mxu0 0.0
    %2628 = vmatprep.subr.mxu0 0.0
    %2629 = vmatpush1.msra.mxu0 0.0
    %2630 = vmatprep.subr.mxu0 0.0
    %2631 = vmatpush1.msra.mxu0 0.0
    %2632 = vmatprep.subr.mxu0 0.0
    %2633 = vmatpush1.msra.mxu0 0.0
    %2634 = vmatprep.subr.mxu0 0.0
    %2635 = vmatpush1.msra.mxu0 0.0
    %2636 = vmatprep.subr.mxu0 0.0
    %2637 = vmatpush1.msra.mxu0 0.0
    %2638 = vmatprep.subr.mxu0 0.0
    %2639 = vmatpush1.msra.mxu0 0.0
    %2640 = vmatprep.subr.mxu0 0.0
    %2641 = vmatpush1.msra.mxu0 0.0
    %2642 = vmatprep.subr.mxu0 0.0
    %2643 = vmatpush1.msra.mxu0 0.0
    %2644 = vmatprep.subr.mxu0 0.0
    %2645 = vmatpush1.msra.mxu0 0.0
    %2646 = vmatprep.subr.mxu0 0.0
    %2647 = vmatpush1.msra.mxu0 0.0
    %2648 = vmatprep.subr.mxu0 0.0
    %2649 = vmatpush1.msra.mxu0 0.0
    %2650 = vmatprep.subr.mxu0 0.0
    %2651 = vmatpush1.msra.mxu0 0.0
    %2652 = vmatprep.subr.mxu0 0.0
    %2653 = vmatpush1.msra.mxu0 0.0
    %2654 = vmatprep.mubr.f32.mxu0 0.0
    %2655 = vmatmul.mubr.f32.gmra.mrb[0].mxu0 %v2588
    %v2656 = vpop.f32.mrb[0].mxu0
    %v2657 = vadd.f32 %v2585, %v2656
    %v2658 = vpop.f32.mrb[0].mxu0
    %2659 = vdwg.mxu0
    %vm2660 = vcmask 130048
    %2661 = vst.msk [vmem:[#allocation10] sm:$0xff] %vm2660, %v2657
    // Predicated region
    $region38: #{encoder_decoder_forward.1} parent=1 // pred_check
      _
    $region39: #{encoder_decoder_forward.1} parent=1 // pred_check_branch
      %2663 = sbr.rel (0) target = $region41
    $region40: #{encoder_decoder_forward.1} parent=1 // pred_region
      %s2665 = ssub.s32 128, 128
      %2666 = vsyncadd [#allocation5], %s2665
      %s2668 = sshll.u32 [#allocation10], 4
      %s2669 = int_to_ptr.vmem [resolvable:$true] %s2668
      %2671 = dma.vmem_to_hbm [thread:$0]  %s2669, 128, %s6, [#allocation5]
    $region41: #{encoder_decoder_forward.1} parent=1 // pred_fallthru
      _
    // Predicated region
    $region42: #{encoder_decoder_forward.1} parent=1 // pred_check
      _
    $region43: #{encoder_decoder_forward.1} parent=1 // pred_check_branch
      %2673 = sbr.rel (0) target = $region45
    $region44: #{encoder_decoder_forward.1} parent=1 // pred_region
      %2674 = dma.done [#allocation5], 128
    $region45: #{encoder_decoder_forward.1} parent=1 // pred_fallthru
      _
    %2675 = vsyncpa [#allocation4], 1
    %2676 = vsyncpa [#allocation9], 1
    %2677 = vsyncpa [#allocation5], 1
    %2678 = vsyncpa [#allocation6], 1

</llo_original>
